<compile_context>
chip_gen: v5e
topology: v5e:2x2
jax: 0.10.0
libtpu: 0.0.40
codegen_flags: <defaults>
</compile_context>

<pallas_src>
import functools

import jax
import jax.numpy as jnp
from jax import lax
from jax.experimental import pallas as pl
from jax.experimental.pallas import tpu as pltpu


def _round_up(n, m):
    return ((n + m - 1) // m) * m


# ----------------------------------------------------------------------------
# Kernel
# ----------------------------------------------------------------------------
def tlstm_kernel(pad_s, x_ref, t_ref, wg_ref, bg_ref, ug_ref, wd_ref, bd_ref,
                 wfc_ref, bfc_ref, wcls_ref, bcls_ref,
                 out_ref, gx_scr, h_scr, c_scr):
    s = pl.program_id(1)
    last_s = pl.num_programs(1) - 1

    t_chunk, bt, in_p = x_ref.shape
    hidden = h_scr.shape[1]
    four_h = 4 * hidden

    # Re-init recurrent state at the start of each batch tile's sequence.
    @pl.when(s == 0)
    def _init():
        h_scr[...] = jnp.zeros_like(h_scr)
        c_scr[...] = jnp.zeros_like(c_scr)

    # --- chunk-level input projection (one big MXU matmul, pipelines with the
    #     recurrence of the previous chunk; bias added in f32) ---------------
    x2d = x_ref[...].reshape(t_chunk * bt, in_p)                       # bf16
    proj = jnp.dot(x2d, wg_ref[...], preferred_element_type=jnp.float32)
    gx_scr[...] = proj.reshape(t_chunk, bt, four_h) + bg_ref[...]      # f32

    # Front-padded (invalid) timesteps need exactly-zero pre-activations so the
    # recurrent state stays 0 through them. pad_s is a static Python constant,
    # so this code is only emitted when padding exists (only chunk 0 has it).
    if pad_s > 0:
        @pl.when(s == 0)
        def _mask_pad():
            gx_scr[pl.ds(0, pad_s), :, :] = jnp.zeros(
                (pad_s, bt, four_h), jnp.float32)

    ug = ug_ref[...]                                  # (Hp, 4Hp) bf16, resident
    wd = wd_ref[...]                                  # (Hp, Hp)  bf16, resident
    # hoist bias broadcast out of the step loop (no CSE of broadcast_in_dim)
    bd = jnp.broadcast_to(bd_ref[...], (bt, hidden))  # (bt, Hp) f32

    def step(i, carry):
        t_t = t_ref[i]                # (bt, 1)   f32 : 1/log(t + 2.7183)
        h = h_scr[...]                # (bt, Hp)  bf16
        c = c_scr[...]                # (bt, Hp)  f32

        # time-aware cell decomposition
        c_st = jnp.tanh(jnp.dot(c.astype(jnp.bfloat16), wd,
                                preferred_element_type=jnp.float32) + bd)
        c = c - c_st + t_t * c_st

        # fused gate pre-activations; input path already hoisted out of the loop
        gates = gx_scr[i] + jnp.dot(h, ug, preferred_element_type=jnp.float32)
        sig = jax.nn.sigmoid(gates[:, 0:3 * hidden])
        i_g = sig[:, 0 * hidden:1 * hidden]
        f_g = sig[:, 1 * hidden:2 * hidden]
        o_g = sig[:, 2 * hidden:3 * hidden]
        c_hat = jnp.tanh(gates[:, 3 * hidden:4 * hidden])

        c_new = f_g * c + i_g * c_hat
        c_scr[...] = c_new
        h_scr[...] = (o_g * jnp.tanh(c_new)).astype(jnp.bfloat16)
        return carry

    lax.fori_loop(0, t_chunk, step, 0,
                  unroll=True if t_chunk <= 16 else 4)

    # classifier epilogue only after the last sequence chunk
    @pl.when(s == last_s)
    def _epilogue():
        h_T = h_scr[...]              # already bf16
        fc = jnp.maximum(
            jnp.dot(h_T, wfc_ref[...], preferred_element_type=jnp.float32)
            + bfc_ref[...], 0.0)
        # dropout == identity (eval mode)
        out_ref[...] = (jnp.dot(fc.astype(jnp.bfloat16), wcls_ref[...],
                                preferred_element_type=jnp.float32)
                        + bcls_ref[...])


# ----------------------------------------------------------------------------
# Wrapper: padding, fused/packed weights, pallas_call
# ----------------------------------------------------------------------------
def _pack_params(params, in_p, Hp, Fp, Op):
    def padw(w, r, c):
        return jnp.pad(w, ((0, r - w.shape[0]), (0, c - w.shape[1])))

    def padv(v, n):
        return jnp.pad(v, (0, n - v.shape[0]))

    gates = ["i", "f", "o", "c"]
    Wg = jnp.concatenate([padw(params[f"W{g}"], in_p, Hp) for g in gates], axis=1)
    Ug = jnp.concatenate([padw(params[f"U{g}"], Hp, Hp) for g in gates], axis=1)
    bg = jnp.concatenate(
        [padv(params[f"bW{g}"] + params[f"bU{g}"] + params[f"b{g}"], Hp) for g in gates]
    )[None, :]
    Wd = padw(params["Wd"], Hp, Hp)
    bd = padv(params["b_decomp"], Hp)[None, :]          # pad lanes stay 0
    Wfc = padw(params["Wfc"], Hp, Fp)
    bfc = padv(params["bfc"], Fp)[None, :]
    Wcls = padw(params["Wcls"], Fp, Op)
    bcls = padv(params["bcls"], Op)[None, :]
    return Wg, Ug, bg, Wd, bd, Wfc, bfc, Wcls, bcls


def tlstm_forward(x, time, params, *, seq_chunk=64):
    """x: (batch, seq, input_dim), time: (batch, seq, 1) -> (batch, output_dim)."""
    batch, seq, input_dim = x.shape
    H = params["Wi"].shape[1]
    fc_dim = params["Wfc"].shape[1]
    out_dim = params["Wcls"].shape[1]

    # lane / sublane aligned padded dims
    Hp = _round_up(H, 128)
    Fp = _round_up(fc_dim, 128)
    Op = _round_up(out_dim, 128)
    Ip = _round_up(input_dim, 128)

    Bp = _round_up(batch, 8)
    if Bp >= 256:
        bt = 128                                   # native MXU M (v5e), 2+ tiles
    elif Bp >= 16:
        bt = _round_up((Bp + 1) // 2, 8)           # >=2 tiles -> both TCs on v7x
    else:
        bt = Bp
    Bp = _round_up(Bp, bt)

    # sequence chunk: large to amortize grid overhead, shrunk so the f32 gate
    # pre-activation scratch stays within a VMEM budget
    Tc = max(1, min(seq_chunk, seq))
    while Tc > 4 and Tc * bt * 4 * Hp * 4 > (12 << 20):
        Tc = max(4, Tc // 2)
    Sp = _round_up(seq, Tc)
    pad_s = Sp - seq

    Wg, Ug, bg, Wd, bd, Wfc, bfc, Wcls, bcls = _pack_params(params, Ip, Hp, Fp, Op)

    # --- streamed inputs ---------------------------------------------------
    xs = jnp.transpose(x, (1, 0, 2))                             # (seq, batch, in)
    xs = jnp.pad(xs, ((pad_s, 0), (0, Bp - batch), (0, Ip - input_dim)))
    xs = xs.astype(jnp.bfloat16)                                 # (Sp, Bp, Ip)

    ts = jnp.transpose(time, (1, 0, 2)).astype(jnp.float32)      # (seq, batch, 1)
    T = 1.0 / jnp.log(ts + 2.7183)                               # map_elapse_time
    T = jnp.pad(T, ((pad_s, 0), (0, Bp - batch), (0, 0)),
                constant_values=1.0)                             # T=1 keeps c=0

    # bf16 MXU operands for in-kernel dots
    Wg_b = Wg.astype(jnp.bfloat16)
    Ug_b = Ug.astype(jnp.bfloat16)
    Wd_b = Wd.astype(jnp.bfloat16)
    Wfc_b = Wfc.astype(jnp.bfloat16)
    Wcls_b = Wcls.astype(jnp.bfloat16)

    grid = (Bp // bt, Sp // Tc)

    # VMEM budget: streamed chunks (double-buffered) + single-buffered weights
    # + gate scratch + state + output
    vmem_need = (
        2 * Tc * bt * Ip * 2
        + 2 * Tc * bt * 4
        + (Ip * 4 * Hp + Hp * 4 * Hp + Hp * Hp + Hp * Fp + Fp * Op) * 2
        + (4 * Hp + Hp + Fp + Op) * 4
        + Tc * bt * 4 * Hp * 4
        + bt * Hp * (2 + 4)
        + 2 * bt * Op * 4
    )
    try:
        phys_vmem = int(pltpu.get_tpu_info().vmem_capacity_bytes)
    except Exception:
        phys_vmem = 64 * 1024 * 1024
    # leave headroom for compiler internal scratch; don't claim all of v7x VMEM
    vmem_cap = min(max(phys_vmem - (12 << 20), 32 << 20), 100 << 20)
    vmem_limit = int(min(max(int(1.5 * vmem_need), 32 << 20), vmem_cap))

    def build(use_buffered):
        def const_spec(shape):
            if use_buffered:
                return pl.BlockSpec(shape, lambda b, s: (0, 0),
                                    pipeline_mode=pl.Buffered(1))
            return pl.BlockSpec(shape, lambda b, s: (0, 0))

        in_specs = [
            pl.BlockSpec((Tc, bt, Ip), lambda b, s: (s, b, 0)),   # x chunk (bf16)
            pl.BlockSpec((Tc, bt, 1),  lambda b, s: (s, b, 0)),   # T chunk
            const_spec((Ip, 4 * Hp)),                             # Wg
            const_spec((1, 4 * Hp)),                              # bg (f32)
            const_spec((Hp, 4 * Hp)),                             # Ug
            const_spec((Hp, Hp)),                                 # Wd
            const_spec((1, Hp)),                                  # b_decomp
            const_spec((Hp, Fp)),                                 # Wfc
            const_spec((1, Fp)),                                  # bfc
            const_spec((Fp, Op)),                                 # Wcls
            const_spec((1, Op)),                                  # bcls
        ]
        return pl.pallas_call(
            functools.partial(tlstm_kernel, pad_s),
            out_shape=jax.ShapeDtypeStruct((Bp, Op), jnp.float32),
            grid=grid,
            in_specs=in_specs,
            out_specs=pl.BlockSpec((bt, Op), lambda b, s: (b, 0)),
            scratch_shapes=[
                pltpu.VMEM((Tc, bt, 4 * Hp), jnp.float32),   # gate pre-acts
                pltpu.VMEM((bt, Hp), jnp.bfloat16),          # h_t
                pltpu.VMEM((bt, Hp), jnp.float32),           # c_t
            ],
            compiler_params=pltpu.CompilerParams(
                dimension_semantics=("parallel", "arbitrary"),
                vmem_limit_bytes=vmem_limit),
        )

    args = (xs, T, Wg_b, bg, Ug_b, Wd_b, bd, Wfc_b, bfc, Wcls_b, bcls)
    try:
        out_full = build(True)(*args)
    except Exception:
        # fallback: identical kernel without Buffered(1) weight hints
        out_full = build(False)(*args)

    return out_full[:batch, :out_dim]


# ----------------------------------------------------------------------------
# Parameters (same shapes/init structure as the PyTorch module, deterministic)
# ----------------------------------------------------------------------------
def make_params(key, input_dim, hidden_dim, output_dim, fc_dim):
    ks = jax.random.split(key, 22)

    def w(k, fan_in, fan_out, scale=0.1):
        return jax.random.normal(k, (fan_in, fan_out), jnp.float32) * scale

    def b(k, n, scale=0.05):
        return jax.random.normal(k, (n,), jnp.float32) * scale

    p = {}
    for idx, g in enumerate(["i", "f", "o", "c"]):
        p[f"W{g}"] = w(ks[idx], input_dim, hidden_dim)          # Wi/Wf/Wo/Wc (transposed)
        p[f"U{g}"] = w(ks[4 + idx], hidden_dim, hidden_dim)     # Ui/Uf/Uo/Uc (transposed)
        p[f"bW{g}"] = b(ks[8 + idx], hidden_dim)                # nn.Linear biases
        p[f"bU{g}"] = b(ks[12 + idx], hidden_dim)
    p["bi"] = jnp.zeros((hidden_dim,), jnp.float32)             # extra gate biases
    p["bf"] = jnp.ones((hidden_dim,), jnp.float32)
    p["bo"] = jnp.zeros((hidden_dim,), jnp.float32)
    p["bc"] = jnp.zeros((hidden_dim,), jnp.float32)
    p["Wd"] = w(ks[16], hidden_dim, hidden_dim)                 # W_decomp (no bias)
    p["b_decomp"] = jnp.ones((hidden_dim,), jnp.float32)
    p["Wfc"] = w(ks[17], hidden_dim, fc_dim)
    p["bfc"] = b(ks[18], fc_dim)
    p["Wcls"] = w(ks[19], fc_dim, output_dim)
    p["bcls"] = b(ks[20], output_dim)
    return p


# ----------------------------------------------------------------------------
# Pure-JAX reference mirroring the PyTorch loop (eval-mode dropout), with the
# same bf16-operand / f32-accumulation matmul numerics as the kernel.
# ----------------------------------------------------------------------------
def tlstm_reference(x, time, p):
    batch, seq, _ = x.shape
    H = p["Wi"].shape[1]

    def bdot(a, bm):
        return jnp.dot(a.astype(jnp.bfloat16), bm.astype(jnp.bfloat16),
                       preferred_element_type=jnp.float32)

    h = jnp.zeros((batch, H), jnp.float32)
    c = jnp.zeros((batch, H), jnp.float32)
    for i in range(seq):
        x_t = x[:, i, :]
        t_t = time[:, i, 0:1]
        T = 1.0 / jnp.log(t_t + 2.7183)
        c_st = jnp.tanh(bdot(c, p["Wd"]) + p["b_decomp"])
        c = c - c_st + T * c_st
        i_t = jax.nn.sigmoid(bdot(x_t, p["Wi"]) + bdot(h, p["Ui"]) + p["bWi"] + p["bUi"] + p["bi"])
        f_t = jax.nn.sigmoid(bdot(x_t, p["Wf"]) + bdot(h, p["Uf"]) + p["bWf"] + p["bUf"] + p["bf"])
        o_t = jax.nn.sigmoid(bdot(x_t, p["Wo"]) + bdot(h, p["Uo"]) + p["bWo"] + p["bUo"] + p["bo"])
        c_hat = jnp.tanh(bdot(x_t, p["Wc"]) + bdot(h, p["Uc"]) + p["bWc"] + p["bUc"] + p["bc"])
        c = f_t * c + i_t * c_hat
        h = o_t * jnp.tanh(c)
    fc = jnp.maximum(bdot(h, p["Wfc"]) + p["bfc"], 0.0)
    return bdot(fc, p["Wcls"]) + p["bcls"]


if __name__ == "__main__":
    batch, seq, input_dim = 2, 8, 4
    hidden_dim, fc_dim, output_dim = 32, 16, 4

    key = jax.random.PRNGKey(0)
    kx, kt, kp = jax.random.split(key, 3)

    x = jax.random.normal(kx, (batch, seq, input_dim), jnp.float32)
    # elapsed times must keep log(t + 2.7183) well-defined -> positive times
    time = jax.random.uniform(kt, (batch, seq, 1), jnp.float32, minval=0.1, maxval=5.0)

    params = make_params(kp, input_dim, hidden_dim, output_dim, fc_dim)

    out = tlstm_forward(x, time, params)
    out = jax.block_until_ready(out)

    ref = tlstm_reference(x, time, params)
    assert out.shape == (batch, output_dim), out.shape
    assert jnp.allclose(out, ref, rtol=2e-3, atol=2e-3), (out, ref)

    print("KERNEL_OK")
</pallas_src>

<mosaic_0001>
module attributes {stable_mosaic.version = 11 : i64} {
  func.func @tlstm_kernel(%arg0: i32, %arg1: i32, %arg2: memref<8x8x128xbf16, #tpu.memory_space<vmem>>, %arg3: memref<8x8x1xf32, #tpu.memory_space<vmem>>, %arg4: memref<128x512xbf16, #tpu.memory_space<vmem>>, %arg5: memref<1x512xf32, #tpu.memory_space<vmem>>, %arg6: memref<128x512xbf16, #tpu.memory_space<vmem>>, %arg7: memref<128x128xbf16, #tpu.memory_space<vmem>>, %arg8: memref<1x128xf32, #tpu.memory_space<vmem>>, %arg9: memref<128x128xbf16, #tpu.memory_space<vmem>>, %arg10: memref<1x128xf32, #tpu.memory_space<vmem>>, %arg11: memref<128x128xbf16, #tpu.memory_space<vmem>>, %arg12: memref<1x128xf32, #tpu.memory_space<vmem>>, %arg13: memref<8x128xf32, #tpu.memory_space<vmem>>, %arg14: memref<8x8x512xf32, #tpu.memory_space<vmem>>, %arg15: memref<8x128xbf16, #tpu.memory_space<vmem>>, %arg16: memref<8x128xf32, #tpu.memory_space<vmem>>) attributes {dimension_semantics = [#tpu.dimension_semantics<parallel>, #tpu.dimension_semantics<arbitrary>], iteration_bounds = array<i64: 1, 1>, scalar_prefetch = 0 : i64, scratch_operands = 3 : i64, tpu.core_type = #tpu.core_type<tc>, window_params = [{transform_indices = @transform_0, window_bounds = array<i64: 8, 8, 128>}, {transform_indices = @transform_1, window_bounds = array<i64: 8, 8, 1>}, {pipeline_mode = #tpu.pipeline_mode<synchronous>, transform_indices = @transform_2, window_bounds = array<i64: 128, 512>}, {pipeline_mode = #tpu.pipeline_mode<synchronous>, transform_indices = @transform_3, window_bounds = array<i64: 1, 512>}, {pipeline_mode = #tpu.pipeline_mode<synchronous>, transform_indices = @transform_4, window_bounds = array<i64: 128, 512>}, {pipeline_mode = #tpu.pipeline_mode<synchronous>, transform_indices = @transform_5, window_bounds = array<i64: 128, 128>}, {pipeline_mode = #tpu.pipeline_mode<synchronous>, transform_indices = @transform_6, window_bounds = array<i64: 1, 128>}, {pipeline_mode = #tpu.pipeline_mode<synchronous>, transform_indices = @transform_7, window_bounds = array<i64: 128, 128>}, {pipeline_mode = #tpu.pipeline_mode<synchronous>, transform_indices = @transform_8, window_bounds = array<i64: 1, 128>}, {pipeline_mode = #tpu.pipeline_mode<synchronous>, transform_indices = @transform_9, window_bounds = array<i64: 128, 128>}, {pipeline_mode = #tpu.pipeline_mode<synchronous>, transform_indices = @transform_10, window_bounds = array<i64: 1, 128>}, {transform_indices = @transform_11, window_bounds = array<i64: 8, 128>}]} {
    %c0_i32 = arith.constant 0 : i32
    %0 = arith.cmpi eq, %arg1, %c0_i32 : i32
    %1 = arith.extui %0 : i1 to i32
    %c0_i32_0 = arith.constant 0 : i32
    %2 = arith.cmpi ne, %1, %c0_i32_0 : i32
    scf.if %2 {
      %cst_139 = arith.constant 0.000000e+00 : bf16
      %317 = vector.broadcast %cst_139 : bf16 to vector<8x128xbf16>
      %c0_140 = arith.constant 0 : index
      %c0_141 = arith.constant 0 : index
      %318 = vector.load %arg15[%c0_140, %c0_141] : memref<8x128xbf16, #tpu.memory_space<vmem>>, vector<8x128xbf16>
      tpu.vector_store %arg15[%c0_140, %c0_141], %317 {strides = array<i32>} : memref<8x128xbf16, #tpu.memory_space<vmem>>, vector<8x128xbf16>,
      %cst_142 = arith.constant 0.000000e+00 : f32
      %319 = vector.broadcast %cst_142 : f32 to vector<8x128xf32>
      %c0_143 = arith.constant 0 : index
      %c0_144 = arith.constant 0 : index
      %320 = vector.load %arg16[%c0_143, %c0_144] : memref<8x128xf32, #tpu.memory_space<vmem>>, vector<8x128xf32>
      tpu.vector_store %arg16[%c0_143, %c0_144], %319 {strides = array<i32>} : memref<8x128xf32, #tpu.memory_space<vmem>>, vector<8x128xf32>,
    } else {
    }
    %c0 = arith.constant 0 : index
    %c0_1 = arith.constant 0 : index
    %c0_2 = arith.constant 0 : index
    %3 = vector.load %arg2[%c0, %c0_1, %c0_2] : memref<8x8x128xbf16, #tpu.memory_space<vmem>>, vector<8x8x128xbf16>
    %4 = vector.shape_cast %3 : vector<8x8x128xbf16> to vector<64x128xbf16>
    %c0_3 = arith.constant 0 : index
    %c0_4 = arith.constant 0 : index
    %5 = vector.load %arg4[%c0_3, %c0_4] : memref<128x512xbf16, #tpu.memory_space<vmem>>, vector<128x512xbf16>
    %cst = arith.constant dense<0.000000e+00> : vector<64x512xf32>
    %6 = tpu.matmul %4, %5, %cst {dimension_numbers = #tpu.dot_dimension_numbers<[1], [0], [0], [1], [0, 0, 1, 1], [], []>} : vector<64x128xbf16>, vector<128x512xbf16>, vector<64x512xf32> -> vector<64x512xf32>
    %7 = vector.shape_cast %6 : vector<64x512xf32> to vector<8x8x512xf32>
    %c0_5 = arith.constant 0 : index
    %c0_6 = arith.constant 0 : index
    %8 = vector.load %arg5[%c0_5, %c0_6] : memref<1x512xf32, #tpu.memory_space<vmem>>, vector<1x512xf32>
    %9 = vector.shape_cast %8 : vector<1x512xf32> to vector<1x1x512xf32>
    %10 = vector.broadcast %9 : vector<1x1x512xf32> to vector<8x8x512xf32>
    %11 = arith.addf %7, %10 : vector<8x8x512xf32>
    %c0_7 = arith.constant 0 : index
    %c0_8 = arith.constant 0 : index
    %c0_9 = arith.constant 0 : index
    %12 = vector.load %arg14[%c0_7, %c0_8, %c0_9] : memref<8x8x512xf32, #tpu.memory_space<vmem>>, vector<8x8x512xf32>
    tpu.vector_store %arg14[%c0_7, %c0_8, %c0_9], %11 {strides = array<i32>} : memref<8x8x512xf32, #tpu.memory_space<vmem>>, vector<8x8x512xf32>,
    %c0_10 = arith.constant 0 : index
    %c0_11 = arith.constant 0 : index
    %13 = vector.load %arg6[%c0_10, %c0_11] : memref<128x512xbf16, #tpu.memory_space<vmem>>, vector<128x512xbf16>
    %c0_12 = arith.constant 0 : index
    %c0_13 = arith.constant 0 : index
    %14 = vector.load %arg7[%c0_12, %c0_13] : memref<128x128xbf16, #tpu.memory_space<vmem>>, vector<128x128xbf16>
    %c0_14 = arith.constant 0 : index
    %c0_15 = arith.constant 0 : index
    %15 = vector.load %arg8[%c0_14, %c0_15] : memref<1x128xf32, #tpu.memory_space<vmem>>, vector<1x128xf32>
    %16 = vector.shape_cast %15 : vector<1x128xf32> to vector<1x128xf32>
    %17 = vector.broadcast %16 : vector<1x128xf32> to vector<8x128xf32>
    %c0_i32_16 = arith.constant 0 : i32
    %18 = arith.index_cast %c0_i32_16 : i32 to index
    %c0_17 = arith.constant 0 : index
    %c0_18 = arith.constant 0 : index
    %19 = vector.load %arg3[%18, %c0_17, %c0_18] : memref<8x8x1xf32, #tpu.memory_space<vmem>>, vector<1x8x1xf32>
    %20 = vector.shape_cast %19 : vector<1x8x1xf32> to vector<8x1xf32>
    %c0_19 = arith.constant 0 : index
    %c0_20 = arith.constant 0 : index
    %21 = vector.load %arg15[%c0_19, %c0_20] : memref<8x128xbf16, #tpu.memory_space<vmem>>, vector<8x128xbf16>
    %c0_21 = arith.constant 0 : index
    %c0_22 = arith.constant 0 : index
    %22 = vector.load %arg16[%c0_21, %c0_22] : memref<8x128xf32, #tpu.memory_space<vmem>>, vector<8x128xf32>
    %23 = arith.truncf %22 : vector<8x128xf32> to vector<8x128xbf16>
    %cst_23 = arith.constant dense<0.000000e+00> : vector<8x128xf32>
    %24 = tpu.matmul %23, %14, %cst_23 {dimension_numbers = #tpu.dot_dimension_numbers<[1], [0], [0], [1], [0, 0, 1, 1], [], []>} : vector<8x128xbf16>, vector<128x128xbf16>, vector<8x128xf32> -> vector<8x128xf32>
    %25 = arith.addf %24, %17 : vector<8x128xf32>
    %26 = math.tanh %25 : vector<8x128xf32>
    %27 = arith.subf %22, %26 : vector<8x128xf32>
    %28 = vector.broadcast %20 : vector<8x1xf32> to vector<8x128xf32>
    %29 = arith.mulf %28, %26 : vector<8x128xf32>
    %30 = arith.addf %27, %29 : vector<8x128xf32>
    %31 = arith.index_cast %c0_i32_16 : i32 to index
    %c0_24 = arith.constant 0 : index
    %c0_25 = arith.constant 0 : index
    %32 = vector.load %arg14[%31, %c0_24, %c0_25] : memref<8x8x512xf32, #tpu.memory_space<vmem>>, vector<1x8x512xf32>
    %33 = vector.shape_cast %32 : vector<1x8x512xf32> to vector<8x512xf32>
    %cst_26 = arith.constant dense<0.000000e+00> : vector<8x512xf32>
    %34 = tpu.matmul %21, %13, %cst_26 {dimension_numbers = #tpu.dot_dimension_numbers<[1], [0], [0], [1], [0, 0, 1, 1], [], []>} : vector<8x128xbf16>, vector<128x512xbf16>, vector<8x512xf32> -> vector<8x512xf32>
    %35 = arith.addf %33, %34 : vector<8x512xf32>
    %36 = vector.extract_strided_slice %35 {offsets = [0, 0], sizes = [8, 384], strides = [1, 1]} : vector<8x512xf32> to vector<8x384xf32>
    %37 = arith.negf %36 : vector<8x384xf32>
    %38 = math.exp %37 : vector<8x384xf32>
    %cst_27 = arith.constant 1.000000e+00 : f32
    %39 = vector.broadcast %cst_27 : f32 to vector<8x384xf32>
    %40 = arith.addf %39, %38 : vector<8x384xf32>
    %41 = arith.divf %39, %40 : vector<8x384xf32>
    %42 = vector.extract_strided_slice %41 {offsets = [0, 0], sizes = [8, 128], strides = [1, 1]} : vector<8x384xf32> to vector<8x128xf32>
    %43 = vector.extract_strided_slice %41 {offsets = [0, 128], sizes = [8, 128], strides = [1, 1]} : vector<8x384xf32> to vector<8x128xf32>
    %44 = vector.extract_strided_slice %41 {offsets = [0, 256], sizes = [8, 128], strides = [1, 1]} : vector<8x384xf32> to vector<8x128xf32>
    %45 = vector.extract_strided_slice %35 {offsets = [0, 384], sizes = [8, 128], strides = [1, 1]} : vector<8x512xf32> to vector<8x128xf32>
    %46 = math.tanh %45 : vector<8x128xf32>
    %47 = arith.mulf %43, %30 : vector<8x128xf32>
    %48 = arith.mulf %42, %46 : vector<8x128xf32>
    %49 = arith.addf %47, %48 : vector<8x128xf32>
    %c0_28 = arith.constant 0 : index
    %c0_29 = arith.constant 0 : index
    %50 = vector.load %arg16[%c0_28, %c0_29] : memref<8x128xf32, #tpu.memory_space<vmem>>, vector<8x128xf32>
    tpu.vector_store %arg16[%c0_28, %c0_29], %49 {strides = array<i32>} : memref<8x128xf32, #tpu.memory_space<vmem>>, vector<8x128xf32>,
    %51 = math.tanh %49 : vector<8x128xf32>
    %52 = arith.mulf %44, %51 : vector<8x128xf32>
    %53 = arith.truncf %52 : vector<8x128xf32> to vector<8x128xbf16>
    %c0_30 = arith.constant 0 : index
    %c0_31 = arith.constant 0 : index
    %54 = vector.load %arg15[%c0_30, %c0_31] : memref<8x128xbf16, #tpu.memory_space<vmem>>, vector<8x128xbf16>
    tpu.vector_store %arg15[%c0_30, %c0_31], %53 {strides = array<i32>} : memref<8x128xbf16, #tpu.memory_space<vmem>>, vector<8x128xbf16>,
    %c1_i32 = arith.constant 1 : i32
    %55 = arith.index_cast %c1_i32 : i32 to index
    %c0_32 = arith.constant 0 : index
    %c0_33 = arith.constant 0 : index
    %56 = vector.load %arg3[%55, %c0_32, %c0_33] : memref<8x8x1xf32, #tpu.memory_space<vmem>>, vector<1x8x1xf32>
    %57 = vector.shape_cast %56 : vector<1x8x1xf32> to vector<8x1xf32>
    %c0_34 = arith.constant 0 : index
    %c0_35 = arith.constant 0 : index
    %58 = vector.load %arg15[%c0_34, %c0_35] : memref<8x128xbf16, #tpu.memory_space<vmem>>, vector<8x128xbf16>
    %c0_36 = arith.constant 0 : index
    %c0_37 = arith.constant 0 : index
    %59 = vector.load %arg16[%c0_36, %c0_37] : memref<8x128xf32, #tpu.memory_space<vmem>>, vector<8x128xf32>
    %60 = arith.truncf %59 : vector<8x128xf32> to vector<8x128xbf16>
    %cst_38 = arith.constant dense<0.000000e+00> : vector<8x128xf32>
    %61 = tpu.matmul %60, %14, %cst_38 {dimension_numbers = #tpu.dot_dimension_numbers<[1], [0], [0], [1], [0, 0, 1, 1], [], []>} : vector<8x128xbf16>, vector<128x128xbf16>, vector<8x128xf32> -> vector<8x128xf32>
    %62 = arith.addf %61, %17 : vector<8x128xf32>
    %63 = math.tanh %62 : vector<8x128xf32>
    %64 = arith.subf %59, %63 : vector<8x128xf32>
    %65 = vector.broadcast %57 : vector<8x1xf32> to vector<8x128xf32>
    %66 = arith.mulf %65, %63 : vector<8x128xf32>
    %67 = arith.addf %64, %66 : vector<8x128xf32>
    %68 = arith.index_cast %c1_i32 : i32 to index
    %c0_39 = arith.constant 0 : index
    %c0_40 = arith.constant 0 : index
    %69 = vector.load %arg14[%68, %c0_39, %c0_40] : memref<8x8x512xf32, #tpu.memory_space<vmem>>, vector<1x8x512xf32>
    %70 = vector.shape_cast %69 : vector<1x8x512xf32> to vector<8x512xf32>
    %cst_41 = arith.constant dense<0.000000e+00> : vector<8x512xf32>
    %71 = tpu.matmul %58, %13, %cst_41 {dimension_numbers = #tpu.dot_dimension_numbers<[1], [0], [0], [1], [0, 0, 1, 1], [], []>} : vector<8x128xbf16>, vector<128x512xbf16>, vector<8x512xf32> -> vector<8x512xf32>
    %72 = arith.addf %70, %71 : vector<8x512xf32>
    %73 = vector.extract_strided_slice %72 {offsets = [0, 0], sizes = [8, 384], strides = [1, 1]} : vector<8x512xf32> to vector<8x384xf32>
    %74 = arith.negf %73 : vector<8x384xf32>
    %75 = math.exp %74 : vector<8x384xf32>
    %cst_42 = arith.constant 1.000000e+00 : f32
    %76 = vector.broadcast %cst_42 : f32 to vector<8x384xf32>
    %77 = arith.addf %76, %75 : vector<8x384xf32>
    %78 = arith.divf %76, %77 : vector<8x384xf32>
    %79 = vector.extract_strided_slice %78 {offsets = [0, 0], sizes = [8, 128], strides = [1, 1]} : vector<8x384xf32> to vector<8x128xf32>
    %80 = vector.extract_strided_slice %78 {offsets = [0, 128], sizes = [8, 128], strides = [1, 1]} : vector<8x384xf32> to vector<8x128xf32>
    %81 = vector.extract_strided_slice %78 {offsets = [0, 256], sizes = [8, 128], strides = [1, 1]} : vector<8x384xf32> to vector<8x128xf32>
    %82 = vector.extract_strided_slice %72 {offsets = [0, 384], sizes = [8, 128], strides = [1, 1]} : vector<8x512xf32> to vector<8x128xf32>
    %83 = math.tanh %82 : vector<8x128xf32>
    %84 = arith.mulf %80, %67 : vector<8x128xf32>
    %85 = arith.mulf %79, %83 : vector<8x128xf32>
    %86 = arith.addf %84, %85 : vector<8x128xf32>
    %c0_43 = arith.constant 0 : index
    %c0_44 = arith.constant 0 : index
    %87 = vector.load %arg16[%c0_43, %c0_44] : memref<8x128xf32, #tpu.memory_space<vmem>>, vector<8x128xf32>
    tpu.vector_store %arg16[%c0_43, %c0_44], %86 {strides = array<i32>} : memref<8x128xf32, #tpu.memory_space<vmem>>, vector<8x128xf32>,
    %88 = math.tanh %86 : vector<8x128xf32>
    %89 = arith.mulf %81, %88 : vector<8x128xf32>
    %90 = arith.truncf %89 : vector<8x128xf32> to vector<8x128xbf16>
    %c0_45 = arith.constant 0 : index
    %c0_46 = arith.constant 0 : index
    %91 = vector.load %arg15[%c0_45, %c0_46] : memref<8x128xbf16, #tpu.memory_space<vmem>>, vector<8x128xbf16>
    tpu.vector_store %arg15[%c0_45, %c0_46], %90 {strides = array<i32>} : memref<8x128xbf16, #tpu.memory_space<vmem>>, vector<8x128xbf16>,
    %c2_i32 = arith.constant 2 : i32
    %92 = arith.index_cast %c2_i32 : i32 to index
    %c0_47 = arith.constant 0 : index
    %c0_48 = arith.constant 0 : index
    %93 = vector.load %arg3[%92, %c0_47, %c0_48] : memref<8x8x1xf32, #tpu.memory_space<vmem>>, vector<1x8x1xf32>
    %94 = vector.shape_cast %93 : vector<1x8x1xf32> to vector<8x1xf32>
    %c0_49 = arith.constant 0 : index
    %c0_50 = arith.constant 0 : index
    %95 = vector.load %arg15[%c0_49, %c0_50] : memref<8x128xbf16, #tpu.memory_space<vmem>>, vector<8x128xbf16>
    %c0_51 = arith.constant 0 : index
    %c0_52 = arith.constant 0 : index
    %96 = vector.load %arg16[%c0_51, %c0_52] : memref<8x128xf32, #tpu.memory_space<vmem>>, vector<8x128xf32>
    %97 = arith.truncf %96 : vector<8x128xf32> to vector<8x128xbf16>
    %cst_53 = arith.constant dense<0.000000e+00> : vector<8x128xf32>
    %98 = tpu.matmul %97, %14, %cst_53 {dimension_numbers = #tpu.dot_dimension_numbers<[1], [0], [0], [1], [0, 0, 1, 1], [], []>} : vector<8x128xbf16>, vector<128x128xbf16>, vector<8x128xf32> -> vector<8x128xf32>
    %99 = arith.addf %98, %17 : vector<8x128xf32>
    %100 = math.tanh %99 : vector<8x128xf32>
    %101 = arith.subf %96, %100 : vector<8x128xf32>
    %102 = vector.broadcast %94 : vector<8x1xf32> to vector<8x128xf32>
    %103 = arith.mulf %102, %100 : vector<8x128xf32>
    %104 = arith.addf %101, %103 : vector<8x128xf32>
    %105 = arith.index_cast %c2_i32 : i32 to index
    %c0_54 = arith.constant 0 : index
    %c0_55 = arith.constant 0 : index
    %106 = vector.load %arg14[%105, %c0_54, %c0_55] : memref<8x8x512xf32, #tpu.memory_space<vmem>>, vector<1x8x512xf32>
    %107 = vector.shape_cast %106 : vector<1x8x512xf32> to vector<8x512xf32>
    %cst_56 = arith.constant dense<0.000000e+00> : vector<8x512xf32>
    %108 = tpu.matmul %95, %13, %cst_56 {dimension_numbers = #tpu.dot_dimension_numbers<[1], [0], [0], [1], [0, 0, 1, 1], [], []>} : vector<8x128xbf16>, vector<128x512xbf16>, vector<8x512xf32> -> vector<8x512xf32>
    %109 = arith.addf %107, %108 : vector<8x512xf32>
    %110 = vector.extract_strided_slice %109 {offsets = [0, 0], sizes = [8, 384], strides = [1, 1]} : vector<8x512xf32> to vector<8x384xf32>
    %111 = arith.negf %110 : vector<8x384xf32>
    %112 = math.exp %111 : vector<8x384xf32>
    %cst_57 = arith.constant 1.000000e+00 : f32
    %113 = vector.broadcast %cst_57 : f32 to vector<8x384xf32>
    %114 = arith.addf %113, %112 : vector<8x384xf32>
    %115 = arith.divf %113, %114 : vector<8x384xf32>
    %116 = vector.extract_strided_slice %115 {offsets = [0, 0], sizes = [8, 128], strides = [1, 1]} : vector<8x384xf32> to vector<8x128xf32>
    %117 = vector.extract_strided_slice %115 {offsets = [0, 128], sizes = [8, 128], strides = [1, 1]} : vector<8x384xf32> to vector<8x128xf32>
    %118 = vector.extract_strided_slice %115 {offsets = [0, 256], sizes = [8, 128], strides = [1, 1]} : vector<8x384xf32> to vector<8x128xf32>
    %119 = vector.extract_strided_slice %109 {offsets = [0, 384], sizes = [8, 128], strides = [1, 1]} : vector<8x512xf32> to vector<8x128xf32>
    %120 = math.tanh %119 : vector<8x128xf32>
    %121 = arith.mulf %117, %104 : vector<8x128xf32>
    %122 = arith.mulf %116, %120 : vector<8x128xf32>
    %123 = arith.addf %121, %122 : vector<8x128xf32>
    %c0_58 = arith.constant 0 : index
    %c0_59 = arith.constant 0 : index
    %124 = vector.load %arg16[%c0_58, %c0_59] : memref<8x128xf32, #tpu.memory_space<vmem>>, vector<8x128xf32>
    tpu.vector_store %arg16[%c0_58, %c0_59], %123 {strides = array<i32>} : memref<8x128xf32, #tpu.memory_space<vmem>>, vector<8x128xf32>,
    %125 = math.tanh %123 : vector<8x128xf32>
    %126 = arith.mulf %118, %125 : vector<8x128xf32>
    %127 = arith.truncf %126 : vector<8x128xf32> to vector<8x128xbf16>
    %c0_60 = arith.constant 0 : index
    %c0_61 = arith.constant 0 : index
    %128 = vector.load %arg15[%c0_60, %c0_61] : memref<8x128xbf16, #tpu.memory_space<vmem>>, vector<8x128xbf16>
    tpu.vector_store %arg15[%c0_60, %c0_61], %127 {strides = array<i32>} : memref<8x128xbf16, #tpu.memory_space<vmem>>, vector<8x128xbf16>,
    %c3_i32 = arith.constant 3 : i32
    %129 = arith.index_cast %c3_i32 : i32 to index
    %c0_62 = arith.constant 0 : index
    %c0_63 = arith.constant 0 : index
    %130 = vector.load %arg3[%129, %c0_62, %c0_63] : memref<8x8x1xf32, #tpu.memory_space<vmem>>, vector<1x8x1xf32>
    %131 = vector.shape_cast %130 : vector<1x8x1xf32> to vector<8x1xf32>
    %c0_64 = arith.constant 0 : index
    %c0_65 = arith.constant 0 : index
    %132 = vector.load %arg15[%c0_64, %c0_65] : memref<8x128xbf16, #tpu.memory_space<vmem>>, vector<8x128xbf16>
    %c0_66 = arith.constant 0 : index
    %c0_67 = arith.constant 0 : index
    %133 = vector.load %arg16[%c0_66, %c0_67] : memref<8x128xf32, #tpu.memory_space<vmem>>, vector<8x128xf32>
    %134 = arith.truncf %133 : vector<8x128xf32> to vector<8x128xbf16>
    %cst_68 = arith.constant dense<0.000000e+00> : vector<8x128xf32>
    %135 = tpu.matmul %134, %14, %cst_68 {dimension_numbers = #tpu.dot_dimension_numbers<[1], [0], [0], [1], [0, 0, 1, 1], [], []>} : vector<8x128xbf16>, vector<128x128xbf16>, vector<8x128xf32> -> vector<8x128xf32>
    %136 = arith.addf %135, %17 : vector<8x128xf32>
    %137 = math.tanh %136 : vector<8x128xf32>
    %138 = arith.subf %133, %137 : vector<8x128xf32>
    %139 = vector.broadcast %131 : vector<8x1xf32> to vector<8x128xf32>
    %140 = arith.mulf %139, %137 : vector<8x128xf32>
    %141 = arith.addf %138, %140 : vector<8x128xf32>
    %142 = arith.index_cast %c3_i32 : i32 to index
    %c0_69 = arith.constant 0 : index
    %c0_70 = arith.constant 0 : index
    %143 = vector.load %arg14[%142, %c0_69, %c0_70] : memref<8x8x512xf32, #tpu.memory_space<vmem>>, vector<1x8x512xf32>
    %144 = vector.shape_cast %143 : vector<1x8x512xf32> to vector<8x512xf32>
    %cst_71 = arith.constant dense<0.000000e+00> : vector<8x512xf32>
    %145 = tpu.matmul %132, %13, %cst_71 {dimension_numbers = #tpu.dot_dimension_numbers<[1], [0], [0], [1], [0, 0, 1, 1], [], []>} : vector<8x128xbf16>, vector<128x512xbf16>, vector<8x512xf32> -> vector<8x512xf32>
    %146 = arith.addf %144, %145 : vector<8x512xf32>
    %147 = vector.extract_strided_slice %146 {offsets = [0, 0], sizes = [8, 384], strides = [1, 1]} : vector<8x512xf32> to vector<8x384xf32>
    %148 = arith.negf %147 : vector<8x384xf32>
    %149 = math.exp %148 : vector<8x384xf32>
    %cst_72 = arith.constant 1.000000e+00 : f32
    %150 = vector.broadcast %cst_72 : f32 to vector<8x384xf32>
    %151 = arith.addf %150, %149 : vector<8x384xf32>
    %152 = arith.divf %150, %151 : vector<8x384xf32>
    %153 = vector.extract_strided_slice %152 {offsets = [0, 0], sizes = [8, 128], strides = [1, 1]} : vector<8x384xf32> to vector<8x128xf32>
    %154 = vector.extract_strided_slice %152 {offsets = [0, 128], sizes = [8, 128], strides = [1, 1]} : vector<8x384xf32> to vector<8x128xf32>
    %155 = vector.extract_strided_slice %152 {offsets = [0, 256], sizes = [8, 128], strides = [1, 1]} : vector<8x384xf32> to vector<8x128xf32>
    %156 = vector.extract_strided_slice %146 {offsets = [0, 384], sizes = [8, 128], strides = [1, 1]} : vector<8x512xf32> to vector<8x128xf32>
    %157 = math.tanh %156 : vector<8x128xf32>
    %158 = arith.mulf %154, %141 : vector<8x128xf32>
    %159 = arith.mulf %153, %157 : vector<8x128xf32>
    %160 = arith.addf %158, %159 : vector<8x128xf32>
    %c0_73 = arith.constant 0 : index
    %c0_74 = arith.constant 0 : index
    %161 = vector.load %arg16[%c0_73, %c0_74] : memref<8x128xf32, #tpu.memory_space<vmem>>, vector<8x128xf32>
    tpu.vector_store %arg16[%c0_73, %c0_74], %160 {strides = array<i32>} : memref<8x128xf32, #tpu.memory_space<vmem>>, vector<8x128xf32>,
    %162 = math.tanh %160 : vector<8x128xf32>
    %163 = arith.mulf %155, %162 : vector<8x128xf32>
    %164 = arith.truncf %163 : vector<8x128xf32> to vector<8x128xbf16>
    %c0_75 = arith.constant 0 : index
    %c0_76 = arith.constant 0 : index
    %165 = vector.load %arg15[%c0_75, %c0_76] : memref<8x128xbf16, #tpu.memory_space<vmem>>, vector<8x128xbf16>
    tpu.vector_store %arg15[%c0_75, %c0_76], %164 {strides = array<i32>} : memref<8x128xbf16, #tpu.memory_space<vmem>>, vector<8x128xbf16>,
    %c4_i32 = arith.constant 4 : i32
    %166 = arith.index_cast %c4_i32 : i32 to index
    %c0_77 = arith.constant 0 : index
    %c0_78 = arith.constant 0 : index
    %167 = vector.load %arg3[%166, %c0_77, %c0_78] : memref<8x8x1xf32, #tpu.memory_space<vmem>>, vector<1x8x1xf32>
    %168 = vector.shape_cast %167 : vector<1x8x1xf32> to vector<8x1xf32>
    %c0_79 = arith.constant 0 : index
    %c0_80 = arith.constant 0 : index
    %169 = vector.load %arg15[%c0_79, %c0_80] : memref<8x128xbf16, #tpu.memory_space<vmem>>, vector<8x128xbf16>
    %c0_81 = arith.constant 0 : index
    %c0_82 = arith.constant 0 : index
    %170 = vector.load %arg16[%c0_81, %c0_82] : memref<8x128xf32, #tpu.memory_space<vmem>>, vector<8x128xf32>
    %171 = arith.truncf %170 : vector<8x128xf32> to vector<8x128xbf16>
    %cst_83 = arith.constant dense<0.000000e+00> : vector<8x128xf32>
    %172 = tpu.matmul %171, %14, %cst_83 {dimension_numbers = #tpu.dot_dimension_numbers<[1], [0], [0], [1], [0, 0, 1, 1], [], []>} : vector<8x128xbf16>, vector<128x128xbf16>, vector<8x128xf32> -> vector<8x128xf32>
    %173 = arith.addf %172, %17 : vector<8x128xf32>
    %174 = math.tanh %173 : vector<8x128xf32>
    %175 = arith.subf %170, %174 : vector<8x128xf32>
    %176 = vector.broadcast %168 : vector<8x1xf32> to vector<8x128xf32>
    %177 = arith.mulf %176, %174 : vector<8x128xf32>
    %178 = arith.addf %175, %177 : vector<8x128xf32>
    %179 = arith.index_cast %c4_i32 : i32 to index
    %c0_84 = arith.constant 0 : index
    %c0_85 = arith.constant 0 : index
    %180 = vector.load %arg14[%179, %c0_84, %c0_85] : memref<8x8x512xf32, #tpu.memory_space<vmem>>, vector<1x8x512xf32>
    %181 = vector.shape_cast %180 : vector<1x8x512xf32> to vector<8x512xf32>
    %cst_86 = arith.constant dense<0.000000e+00> : vector<8x512xf32>
    %182 = tpu.matmul %169, %13, %cst_86 {dimension_numbers = #tpu.dot_dimension_numbers<[1], [0], [0], [1], [0, 0, 1, 1], [], []>} : vector<8x128xbf16>, vector<128x512xbf16>, vector<8x512xf32> -> vector<8x512xf32>
    %183 = arith.addf %181, %182 : vector<8x512xf32>
    %184 = vector.extract_strided_slice %183 {offsets = [0, 0], sizes = [8, 384], strides = [1, 1]} : vector<8x512xf32> to vector<8x384xf32>
    %185 = arith.negf %184 : vector<8x384xf32>
    %186 = math.exp %185 : vector<8x384xf32>
    %cst_87 = arith.constant 1.000000e+00 : f32
    %187 = vector.broadcast %cst_87 : f32 to vector<8x384xf32>
    %188 = arith.addf %187, %186 : vector<8x384xf32>
    %189 = arith.divf %187, %188 : vector<8x384xf32>
    %190 = vector.extract_strided_slice %189 {offsets = [0, 0], sizes = [8, 128], strides = [1, 1]} : vector<8x384xf32> to vector<8x128xf32>
    %191 = vector.extract_strided_slice %189 {offsets = [0, 128], sizes = [8, 128], strides = [1, 1]} : vector<8x384xf32> to vector<8x128xf32>
    %192 = vector.extract_strided_slice %189 {offsets = [0, 256], sizes = [8, 128], strides = [1, 1]} : vector<8x384xf32> to vector<8x128xf32>
    %193 = vector.extract_strided_slice %183 {offsets = [0, 384], sizes = [8, 128], strides = [1, 1]} : vector<8x512xf32> to vector<8x128xf32>
    %194 = math.tanh %193 : vector<8x128xf32>
    %195 = arith.mulf %191, %178 : vector<8x128xf32>
    %196 = arith.mulf %190, %194 : vector<8x128xf32>
    %197 = arith.addf %195, %196 : vector<8x128xf32>
    %c0_88 = arith.constant 0 : index
    %c0_89 = arith.constant 0 : index
    %198 = vector.load %arg16[%c0_88, %c0_89] : memref<8x128xf32, #tpu.memory_space<vmem>>, vector<8x128xf32>
    tpu.vector_store %arg16[%c0_88, %c0_89], %197 {strides = array<i32>} : memref<8x128xf32, #tpu.memory_space<vmem>>, vector<8x128xf32>,
    %199 = math.tanh %197 : vector<8x128xf32>
    %200 = arith.mulf %192, %199 : vector<8x128xf32>
    %201 = arith.truncf %200 : vector<8x128xf32> to vector<8x128xbf16>
    %c0_90 = arith.constant 0 : index
    %c0_91 = arith.constant 0 : index
    %202 = vector.load %arg15[%c0_90, %c0_91] : memref<8x128xbf16, #tpu.memory_space<vmem>>, vector<8x128xbf16>
    tpu.vector_store %arg15[%c0_90, %c0_91], %201 {strides = array<i32>} : memref<8x128xbf16, #tpu.memory_space<vmem>>, vector<8x128xbf16>,
    %c5_i32 = arith.constant 5 : i32
    %203 = arith.index_cast %c5_i32 : i32 to index
    %c0_92 = arith.constant 0 : index
    %c0_93 = arith.constant 0 : index
    %204 = vector.load %arg3[%203, %c0_92, %c0_93] : memref<8x8x1xf32, #tpu.memory_space<vmem>>, vector<1x8x1xf32>
    %205 = vector.shape_cast %204 : vector<1x8x1xf32> to vector<8x1xf32>
    %c0_94 = arith.constant 0 : index
    %c0_95 = arith.constant 0 : index
    %206 = vector.load %arg15[%c0_94, %c0_95] : memref<8x128xbf16, #tpu.memory_space<vmem>>, vector<8x128xbf16>
    %c0_96 = arith.constant 0 : index
    %c0_97 = arith.constant 0 : index
    %207 = vector.load %arg16[%c0_96, %c0_97] : memref<8x128xf32, #tpu.memory_space<vmem>>, vector<8x128xf32>
    %208 = arith.truncf %207 : vector<8x128xf32> to vector<8x128xbf16>
    %cst_98 = arith.constant dense<0.000000e+00> : vector<8x128xf32>
    %209 = tpu.matmul %208, %14, %cst_98 {dimension_numbers = #tpu.dot_dimension_numbers<[1], [0], [0], [1], [0, 0, 1, 1], [], []>} : vector<8x128xbf16>, vector<128x128xbf16>, vector<8x128xf32> -> vector<8x128xf32>
    %210 = arith.addf %209, %17 : vector<8x128xf32>
    %211 = math.tanh %210 : vector<8x128xf32>
    %212 = arith.subf %207, %211 : vector<8x128xf32>
    %213 = vector.broadcast %205 : vector<8x1xf32> to vector<8x128xf32>
    %214 = arith.mulf %213, %211 : vector<8x128xf32>
    %215 = arith.addf %212, %214 : vector<8x128xf32>
    %216 = arith.index_cast %c5_i32 : i32 to index
    %c0_99 = arith.constant 0 : index
    %c0_100 = arith.constant 0 : index
    %217 = vector.load %arg14[%216, %c0_99, %c0_100] : memref<8x8x512xf32, #tpu.memory_space<vmem>>, vector<1x8x512xf32>
    %218 = vector.shape_cast %217 : vector<1x8x512xf32> to vector<8x512xf32>
    %cst_101 = arith.constant dense<0.000000e+00> : vector<8x512xf32>
    %219 = tpu.matmul %206, %13, %cst_101 {dimension_numbers = #tpu.dot_dimension_numbers<[1], [0], [0], [1], [0, 0, 1, 1], [], []>} : vector<8x128xbf16>, vector<128x512xbf16>, vector<8x512xf32> -> vector<8x512xf32>
    %220 = arith.addf %218, %219 : vector<8x512xf32>
    %221 = vector.extract_strided_slice %220 {offsets = [0, 0], sizes = [8, 384], strides = [1, 1]} : vector<8x512xf32> to vector<8x384xf32>
    %222 = arith.negf %221 : vector<8x384xf32>
    %223 = math.exp %222 : vector<8x384xf32>
    %cst_102 = arith.constant 1.000000e+00 : f32
    %224 = vector.broadcast %cst_102 : f32 to vector<8x384xf32>
    %225 = arith.addf %224, %223 : vector<8x384xf32>
    %226 = arith.divf %224, %225 : vector<8x384xf32>
    %227 = vector.extract_strided_slice %226 {offsets = [0, 0], sizes = [8, 128], strides = [1, 1]} : vector<8x384xf32> to vector<8x128xf32>
    %228 = vector.extract_strided_slice %226 {offsets = [0, 128], sizes = [8, 128], strides = [1, 1]} : vector<8x384xf32> to vector<8x128xf32>
    %229 = vector.extract_strided_slice %226 {offsets = [0, 256], sizes = [8, 128], strides = [1, 1]} : vector<8x384xf32> to vector<8x128xf32>
    %230 = vector.extract_strided_slice %220 {offsets = [0, 384], sizes = [8, 128], strides = [1, 1]} : vector<8x512xf32> to vector<8x128xf32>
    %231 = math.tanh %230 : vector<8x128xf32>
    %232 = arith.mulf %228, %215 : vector<8x128xf32>
    %233 = arith.mulf %227, %231 : vector<8x128xf32>
    %234 = arith.addf %232, %233 : vector<8x128xf32>
    %c0_103 = arith.constant 0 : index
    %c0_104 = arith.constant 0 : index
    %235 = vector.load %arg16[%c0_103, %c0_104] : memref<8x128xf32, #tpu.memory_space<vmem>>, vector<8x128xf32>
    tpu.vector_store %arg16[%c0_103, %c0_104], %234 {strides = array<i32>} : memref<8x128xf32, #tpu.memory_space<vmem>>, vector<8x128xf32>,
    %236 = math.tanh %234 : vector<8x128xf32>
    %237 = arith.mulf %229, %236 : vector<8x128xf32>
    %238 = arith.truncf %237 : vector<8x128xf32> to vector<8x128xbf16>
    %c0_105 = arith.constant 0 : index
    %c0_106 = arith.constant 0 : index
    %239 = vector.load %arg15[%c0_105, %c0_106] : memref<8x128xbf16, #tpu.memory_space<vmem>>, vector<8x128xbf16>
    tpu.vector_store %arg15[%c0_105, %c0_106], %238 {strides = array<i32>} : memref<8x128xbf16, #tpu.memory_space<vmem>>, vector<8x128xbf16>,
    %c6_i32 = arith.constant 6 : i32
    %240 = arith.index_cast %c6_i32 : i32 to index
    %c0_107 = arith.constant 0 : index
    %c0_108 = arith.constant 0 : index
    %241 = vector.load %arg3[%240, %c0_107, %c0_108] : memref<8x8x1xf32, #tpu.memory_space<vmem>>, vector<1x8x1xf32>
    %242 = vector.shape_cast %241 : vector<1x8x1xf32> to vector<8x1xf32>
    %c0_109 = arith.constant 0 : index
    %c0_110 = arith.constant 0 : index
    %243 = vector.load %arg15[%c0_109, %c0_110] : memref<8x128xbf16, #tpu.memory_space<vmem>>, vector<8x128xbf16>
    %c0_111 = arith.constant 0 : index
    %c0_112 = arith.constant 0 : index
    %244 = vector.load %arg16[%c0_111, %c0_112] : memref<8x128xf32, #tpu.memory_space<vmem>>, vector<8x128xf32>
    %245 = arith.truncf %244 : vector<8x128xf32> to vector<8x128xbf16>
    %cst_113 = arith.constant dense<0.000000e+00> : vector<8x128xf32>
    %246 = tpu.matmul %245, %14, %cst_113 {dimension_numbers = #tpu.dot_dimension_numbers<[1], [0], [0], [1], [0, 0, 1, 1], [], []>} : vector<8x128xbf16>, vector<128x128xbf16>, vector<8x128xf32> -> vector<8x128xf32>
    %247 = arith.addf %246, %17 : vector<8x128xf32>
    %248 = math.tanh %247 : vector<8x128xf32>
    %249 = arith.subf %244, %248 : vector<8x128xf32>
    %250 = vector.broadcast %242 : vector<8x1xf32> to vector<8x128xf32>
    %251 = arith.mulf %250, %248 : vector<8x128xf32>
    %252 = arith.addf %249, %251 : vector<8x128xf32>
    %253 = arith.index_cast %c6_i32 : i32 to index
    %c0_114 = arith.constant 0 : index
    %c0_115 = arith.constant 0 : index
    %254 = vector.load %arg14[%253, %c0_114, %c0_115] : memref<8x8x512xf32, #tpu.memory_space<vmem>>, vector<1x8x512xf32>
    %255 = vector.shape_cast %254 : vector<1x8x512xf32> to vector<8x512xf32>
    %cst_116 = arith.constant dense<0.000000e+00> : vector<8x512xf32>
    %256 = tpu.matmul %243, %13, %cst_116 {dimension_numbers = #tpu.dot_dimension_numbers<[1], [0], [0], [1], [0, 0, 1, 1], [], []>} : vector<8x128xbf16>, vector<128x512xbf16>, vector<8x512xf32> -> vector<8x512xf32>
    %257 = arith.addf %255, %256 : vector<8x512xf32>
    %258 = vector.extract_strided_slice %257 {offsets = [0, 0], sizes = [8, 384], strides = [1, 1]} : vector<8x512xf32> to vector<8x384xf32>
    %259 = arith.negf %258 : vector<8x384xf32>
    %260 = math.exp %259 : vector<8x384xf32>
    %cst_117 = arith.constant 1.000000e+00 : f32
    %261 = vector.broadcast %cst_117 : f32 to vector<8x384xf32>
    %262 = arith.addf %261, %260 : vector<8x384xf32>
    %263 = arith.divf %261, %262 : vector<8x384xf32>
    %264 = vector.extract_strided_slice %263 {offsets = [0, 0], sizes = [8, 128], strides = [1, 1]} : vector<8x384xf32> to vector<8x128xf32>
    %265 = vector.extract_strided_slice %263 {offsets = [0, 128], sizes = [8, 128], strides = [1, 1]} : vector<8x384xf32> to vector<8x128xf32>
    %266 = vector.extract_strided_slice %263 {offsets = [0, 256], sizes = [8, 128], strides = [1, 1]} : vector<8x384xf32> to vector<8x128xf32>
    %267 = vector.extract_strided_slice %257 {offsets = [0, 384], sizes = [8, 128], strides = [1, 1]} : vector<8x512xf32> to vector<8x128xf32>
    %268 = math.tanh %267 : vector<8x128xf32>
    %269 = arith.mulf %265, %252 : vector<8x128xf32>
    %270 = arith.mulf %264, %268 : vector<8x128xf32>
    %271 = arith.addf %269, %270 : vector<8x128xf32>
    %c0_118 = arith.constant 0 : index
    %c0_119 = arith.constant 0 : index
    %272 = vector.load %arg16[%c0_118, %c0_119] : memref<8x128xf32, #tpu.memory_space<vmem>>, vector<8x128xf32>
    tpu.vector_store %arg16[%c0_118, %c0_119], %271 {strides = array<i32>} : memref<8x128xf32, #tpu.memory_space<vmem>>, vector<8x128xf32>,
    %273 = math.tanh %271 : vector<8x128xf32>
    %274 = arith.mulf %266, %273 : vector<8x128xf32>
    %275 = arith.truncf %274 : vector<8x128xf32> to vector<8x128xbf16>
    %c0_120 = arith.constant 0 : index
    %c0_121 = arith.constant 0 : index
    %276 = vector.load %arg15[%c0_120, %c0_121] : memref<8x128xbf16, #tpu.memory_space<vmem>>, vector<8x128xbf16>
    tpu.vector_store %arg15[%c0_120, %c0_121], %275 {strides = array<i32>} : memref<8x128xbf16, #tpu.memory_space<vmem>>, vector<8x128xbf16>,
    %c7_i32 = arith.constant 7 : i32
    %277 = arith.index_cast %c7_i32 : i32 to index
    %c0_122 = arith.constant 0 : index
    %c0_123 = arith.constant 0 : index
    %278 = vector.load %arg3[%277, %c0_122, %c0_123] : memref<8x8x1xf32, #tpu.memory_space<vmem>>, vector<1x8x1xf32>
    %279 = vector.shape_cast %278 : vector<1x8x1xf32> to vector<8x1xf32>
    %c0_124 = arith.constant 0 : index
    %c0_125 = arith.constant 0 : index
    %280 = vector.load %arg15[%c0_124, %c0_125] : memref<8x128xbf16, #tpu.memory_space<vmem>>, vector<8x128xbf16>
    %c0_126 = arith.constant 0 : index
    %c0_127 = arith.constant 0 : index
    %281 = vector.load %arg16[%c0_126, %c0_127] : memref<8x128xf32, #tpu.memory_space<vmem>>, vector<8x128xf32>
    %282 = arith.truncf %281 : vector<8x128xf32> to vector<8x128xbf16>
    %cst_128 = arith.constant dense<0.000000e+00> : vector<8x128xf32>
    %283 = tpu.matmul %282, %14, %cst_128 {dimension_numbers = #tpu.dot_dimension_numbers<[1], [0], [0], [1], [0, 0, 1, 1], [], []>} : vector<8x128xbf16>, vector<128x128xbf16>, vector<8x128xf32> -> vector<8x128xf32>
    %284 = arith.addf %283, %17 : vector<8x128xf32>
    %285 = math.tanh %284 : vector<8x128xf32>
    %286 = arith.subf %281, %285 : vector<8x128xf32>
    %287 = vector.broadcast %279 : vector<8x1xf32> to vector<8x128xf32>
    %288 = arith.mulf %287, %285 : vector<8x128xf32>
    %289 = arith.addf %286, %288 : vector<8x128xf32>
    %290 = arith.index_cast %c7_i32 : i32 to index
    %c0_129 = arith.constant 0 : index
    %c0_130 = arith.constant 0 : index
    %291 = vector.load %arg14[%290, %c0_129, %c0_130] : memref<8x8x512xf32, #tpu.memory_space<vmem>>, vector<1x8x512xf32>
    %292 = vector.shape_cast %291 : vector<1x8x512xf32> to vector<8x512xf32>
    %cst_131 = arith.constant dense<0.000000e+00> : vector<8x512xf32>
    %293 = tpu.matmul %280, %13, %cst_131 {dimension_numbers = #tpu.dot_dimension_numbers<[1], [0], [0], [1], [0, 0, 1, 1], [], []>} : vector<8x128xbf16>, vector<128x512xbf16>, vector<8x512xf32> -> vector<8x512xf32>
    %294 = arith.addf %292, %293 : vector<8x512xf32>
    %295 = vector.extract_strided_slice %294 {offsets = [0, 0], sizes = [8, 384], strides = [1, 1]} : vector<8x512xf32> to vector<8x384xf32>
    %296 = arith.negf %295 : vector<8x384xf32>
    %297 = math.exp %296 : vector<8x384xf32>
    %cst_132 = arith.constant 1.000000e+00 : f32
    %298 = vector.broadcast %cst_132 : f32 to vector<8x384xf32>
    %299 = arith.addf %298, %297 : vector<8x384xf32>
    %300 = arith.divf %298, %299 : vector<8x384xf32>
    %301 = vector.extract_strided_slice %300 {offsets = [0, 0], sizes = [8, 128], strides = [1, 1]} : vector<8x384xf32> to vector<8x128xf32>
    %302 = vector.extract_strided_slice %300 {offsets = [0, 128], sizes = [8, 128], strides = [1, 1]} : vector<8x384xf32> to vector<8x128xf32>
    %303 = vector.extract_strided_slice %300 {offsets = [0, 256], sizes = [8, 128], strides = [1, 1]} : vector<8x384xf32> to vector<8x128xf32>
    %304 = vector.extract_strided_slice %294 {offsets = [0, 384], sizes = [8, 128], strides = [1, 1]} : vector<8x512xf32> to vector<8x128xf32>
    %305 = math.tanh %304 : vector<8x128xf32>
    %306 = arith.mulf %302, %289 : vector<8x128xf32>
    %307 = arith.mulf %301, %305 : vector<8x128xf32>
    %308 = arith.addf %306, %307 : vector<8x128xf32>
    %c0_133 = arith.constant 0 : index
    %c0_134 = arith.constant 0 : index
    %309 = vector.load %arg16[%c0_133, %c0_134] : memref<8x128xf32, #tpu.memory_space<vmem>>, vector<8x128xf32>
    tpu.vector_store %arg16[%c0_133, %c0_134], %308 {strides = array<i32>} : memref<8x128xf32, #tpu.memory_space<vmem>>, vector<8x128xf32>,
    %310 = math.tanh %308 : vector<8x128xf32>
    %311 = arith.mulf %303, %310 : vector<8x128xf32>
    %312 = arith.truncf %311 : vector<8x128xf32> to vector<8x128xbf16>
    %c0_135 = arith.constant 0 : index
    %c0_136 = arith.constant 0 : index
    %313 = vector.load %arg15[%c0_135, %c0_136] : memref<8x128xbf16, #tpu.memory_space<vmem>>, vector<8x128xbf16>
    tpu.vector_store %arg15[%c0_135, %c0_136], %312 {strides = array<i32>} : memref<8x128xbf16, #tpu.memory_space<vmem>>, vector<8x128xbf16>,
    %c8_i32 = arith.constant 8 : i32
    %c0_i32_137 = arith.constant 0 : i32
    %314 = arith.cmpi eq, %arg1, %c0_i32_137 : i32
    %315 = arith.extui %314 : i1 to i32
    %c0_i32_138 = arith.constant 0 : i32
    %316 = arith.cmpi ne, %315, %c0_i32_138 : i32
    scf.if %316 {
      %c0_139 = arith.constant 0 : index
      %c0_140 = arith.constant 0 : index
      %317 = vector.load %arg15[%c0_139, %c0_140] : memref<8x128xbf16, #tpu.memory_space<vmem>>, vector<8x128xbf16>
      %c0_141 = arith.constant 0 : index
      %c0_142 = arith.constant 0 : index
      %318 = vector.load %arg9[%c0_141, %c0_142] : memref<128x128xbf16, #tpu.memory_space<vmem>>, vector<128x128xbf16>
      %cst_143 = arith.constant dense<0.000000e+00> : vector<8x128xf32>
      %319 = tpu.matmul %317, %318, %cst_143 {dimension_numbers = #tpu.dot_dimension_numbers<[1], [0], [0], [1], [0, 0, 1, 1], [], []>} : vector<8x128xbf16>, vector<128x128xbf16>, vector<8x128xf32> -> vector<8x128xf32>
      %c0_144 = arith.constant 0 : index
      %c0_145 = arith.constant 0 : index
      %320 = vector.load %arg10[%c0_144, %c0_145] : memref<1x128xf32, #tpu.memory_space<vmem>>, vector<1x128xf32>
      %321 = vector.broadcast %320 : vector<1x128xf32> to vector<8x128xf32>
      %322 = arith.addf %319, %321 : vector<8x128xf32>
      %cst_146 = arith.constant 0.000000e+00 : f32
      %323 = vector.broadcast %cst_146 : f32 to vector<8x128xf32>
      %324 = arith.maximumf %322, %323 : vector<8x128xf32>
      %325 = arith.truncf %324 : vector<8x128xf32> to vector<8x128xbf16>
      %c0_147 = arith.constant 0 : index
      %c0_148 = arith.constant 0 : index
      %326 = vector.load %arg11[%c0_147, %c0_148] : memref<128x128xbf16, #tpu.memory_space<vmem>>, vector<128x128xbf16>
      %cst_149 = arith.constant dense<0.000000e+00> : vector<8x128xf32>
      %327 = tpu.matmul %325, %326, %cst_149 {dimension_numbers = #tpu.dot_dimension_numbers<[1], [0], [0], [1], [0, 0, 1, 1], [], []>} : vector<8x128xbf16>, vector<128x128xbf16>, vector<8x128xf32> -> vector<8x128xf32>
      %c0_150 = arith.constant 0 : index
      %c0_151 = arith.constant 0 : index
      %328 = vector.load %arg12[%c0_150, %c0_151] : memref<1x128xf32, #tpu.memory_space<vmem>>, vector<1x128xf32>
      %329 = vector.broadcast %328 : vector<1x128xf32> to vector<8x128xf32>
      %330 = arith.addf %327, %329 : vector<8x128xf32>
      %c0_152 = arith.constant 0 : index
      %c0_153 = arith.constant 0 : index
      %331 = vector.load %arg13[%c0_152, %c0_153] : memref<8x128xf32, #tpu.memory_space<vmem>>, vector<8x128xf32>
      tpu.vector_store %arg13[%c0_152, %c0_153], %330 {strides = array<i32>} : memref<8x128xf32, #tpu.memory_space<vmem>>, vector<8x128xf32>,
    } else {
    }
    return
  }
  func.func @transform_0(%arg0: i32, %arg1: i32) -> (i32, i32, i32) {
    %c0_i32 = arith.constant 0 : i32
    %c0_i32_0 = arith.constant 0 : i32
    return %arg1, %arg0, %c0_i32 : i32, i32, i32
  }
  func.func @transform_1(%arg0: i32, %arg1: i32) -> (i32, i32, i32) {
    %c0_i32 = arith.constant 0 : i32
    %c0_i32_0 = arith.constant 0 : i32
    return %arg1, %arg0, %c0_i32 : i32, i32, i32
  }
  func.func @transform_2(%arg0: i32, %arg1: i32) -> (i32, i32) {
    %c0_i32 = arith.constant 0 : i32
    %c0_i32_0 = arith.constant 0 : i32
    %c0_i32_1 = arith.constant 0 : i32
    return %c0_i32, %c0_i32_0 : i32, i32
  }
  func.func @transform_3(%arg0: i32, %arg1: i32) -> (i32, i32) {
    %c0_i32 = arith.constant 0 : i32
    %c0_i32_0 = arith.constant 0 : i32
    %c0_i32_1 = arith.constant 0 : i32
    return %c0_i32, %c0_i32_0 : i32, i32
  }
  func.func @transform_4(%arg0: i32, %arg1: i32) -> (i32, i32) {
    %c0_i32 = arith.constant 0 : i32
    %c0_i32_0 = arith.constant 0 : i32
    %c0_i32_1 = arith.constant 0 : i32
    return %c0_i32, %c0_i32_0 : i32, i32
  }
  func.func @transform_5(%arg0: i32, %arg1: i32) -> (i32, i32) {
    %c0_i32 = arith.constant 0 : i32
    %c0_i32_0 = arith.constant 0 : i32
    %c0_i32_1 = arith.constant 0 : i32
    return %c0_i32, %c0_i32_0 : i32, i32
  }
  func.func @transform_6(%arg0: i32, %arg1: i32) -> (i32, i32) {
    %c0_i32 = arith.constant 0 : i32
    %c0_i32_0 = arith.constant 0 : i32
    %c0_i32_1 = arith.constant 0 : i32
    return %c0_i32, %c0_i32_0 : i32, i32
  }
  func.func @transform_7(%arg0: i32, %arg1: i32) -> (i32, i32) {
    %c0_i32 = arith.constant 0 : i32
    %c0_i32_0 = arith.constant 0 : i32
    %c0_i32_1 = arith.constant 0 : i32
    return %c0_i32, %c0_i32_0 : i32, i32
  }
  func.func @transform_8(%arg0: i32, %arg1: i32) -> (i32, i32) {
    %c0_i32 = arith.constant 0 : i32
    %c0_i32_0 = arith.constant 0 : i32
    %c0_i32_1 = arith.constant 0 : i32
    return %c0_i32, %c0_i32_0 : i32, i32
  }
  func.func @transform_9(%arg0: i32, %arg1: i32) -> (i32, i32) {
    %c0_i32 = arith.constant 0 : i32
    %c0_i32_0 = arith.constant 0 : i32
    %c0_i32_1 = arith.constant 0 : i32
    return %c0_i32, %c0_i32_0 : i32, i32
  }
  func.func @transform_10(%arg0: i32, %arg1: i32) -> (i32, i32) {
    %c0_i32 = arith.constant 0 : i32
    %c0_i32_0 = arith.constant 0 : i32
    %c0_i32_1 = arith.constant 0 : i32
    return %c0_i32, %c0_i32_0 : i32, i32
  }
  func.func @transform_11(%arg0: i32, %arg1: i32) -> (i32, i32) {
    %c0_i32 = arith.constant 0 : i32
    %c0_i32_0 = arith.constant 0 : i32
    return %arg0, %c0_i32 : i32, i32
  }
}

module attributes {stable_mosaic.version = 11 : i64} {
  func.func @tlstm_kernel(%arg0: i32, %arg1: i32, %arg2: memref<8x8x128xbf16, #tpu.memory_space<vmem>>, %arg3: memref<8x8x1xf32, #tpu.memory_space<vmem>>, %arg4: memref<128x512xbf16, #tpu.memory_space<vmem>>, %arg5: memref<1x512xf32, #tpu.memory_space<vmem>>, %arg6: memref<128x512xbf16, #tpu.memory_space<vmem>>, %arg7: memref<128x128xbf16, #tpu.memory_space<vmem>>, %arg8: memref<1x128xf32, #tpu.memory_space<vmem>>, %arg9: memref<128x128xbf16, #tpu.memory_space<vmem>>, %arg10: memref<1x128xf32, #tpu.memory_space<vmem>>, %arg11: memref<128x128xbf16, #tpu.memory_space<vmem>>, %arg12: memref<1x128xf32, #tpu.memory_space<vmem>>, %arg13: memref<8x128xf32, #tpu.memory_space<vmem>>, %arg14: memref<8x8x512xf32, #tpu.memory_space<vmem>>, %arg15: memref<8x128xbf16, #tpu.memory_space<vmem>>, %arg16: memref<8x128xf32, #tpu.memory_space<vmem>>) attributes {dimension_semantics = [#tpu.dimension_semantics<parallel>, #tpu.dimension_semantics<arbitrary>], iteration_bounds = array<i64: 1, 1>, scalar_prefetch = 0 : i64, scratch_operands = 3 : i64, tpu.core_type = #tpu.core_type<tc>, window_params = [{transform_indices = @transform_0, window_bounds = array<i64: 8, 8, 128>}, {transform_indices = @transform_1, window_bounds = array<i64: 8, 8, 1>}, {pipeline_mode = #tpu.pipeline_mode<synchronous>, transform_indices = @transform_2, window_bounds = array<i64: 128, 512>}, {pipeline_mode = #tpu.pipeline_mode<synchronous>, transform_indices = @transform_3, window_bounds = array<i64: 1, 512>}, {pipeline_mode = #tpu.pipeline_mode<synchronous>, transform_indices = @transform_4, window_bounds = array<i64: 128, 512>}, {pipeline_mode = #tpu.pipeline_mode<synchronous>, transform_indices = @transform_5, window_bounds = array<i64: 128, 128>}, {pipeline_mode = #tpu.pipeline_mode<synchronous>, transform_indices = @transform_6, window_bounds = array<i64: 1, 128>}, {pipeline_mode = #tpu.pipeline_mode<synchronous>, transform_indices = @transform_7, window_bounds = array<i64: 128, 128>}, {pipeline_mode = #tpu.pipeline_mode<synchronous>, transform_indices = @transform_8, window_bounds = array<i64: 1, 128>}, {pipeline_mode = #tpu.pipeline_mode<synchronous>, transform_indices = @transform_9, window_bounds = array<i64: 128, 128>}, {pipeline_mode = #tpu.pipeline_mode<synchronous>, transform_indices = @transform_10, window_bounds = array<i64: 1, 128>}, {transform_indices = @transform_11, window_bounds = array<i64: 8, 128>}]} {
    %c0_i32 = arith.constant 0 : i32
    %0 = arith.cmpi eq, %arg1, %c0_i32 : i32
    %1 = arith.extui %0 : i1 to i32
    %c0_i32_0 = arith.constant 0 : i32
    %2 = arith.cmpi ne, %1, %c0_i32_0 : i32
    scf.if %2 {
      %cst_139 = arith.constant 0.000000e+00 : bf16
      %317 = vector.broadcast %cst_139 : bf16 to vector<8x128xbf16>
      %c0_140 = arith.constant 0 : index
      %c0_141 = arith.constant 0 : index
      %318 = vector.load %arg15[%c0_140, %c0_141] : memref<8x128xbf16, #tpu.memory_space<vmem>>, vector<8x128xbf16>
      tpu.vector_store %arg15[%c0_140, %c0_141], %317 {strides = array<i32>} : memref<8x128xbf16, #tpu.memory_space<vmem>>, vector<8x128xbf16>,
      %cst_142 = arith.constant 0.000000e+00 : f32
      %319 = vector.broadcast %cst_142 : f32 to vector<8x128xf32>
      %c0_143 = arith.constant 0 : index
      %c0_144 = arith.constant 0 : index
      %320 = vector.load %arg16[%c0_143, %c0_144] : memref<8x128xf32, #tpu.memory_space<vmem>>, vector<8x128xf32>
      tpu.vector_store %arg16[%c0_143, %c0_144], %319 {strides = array<i32>} : memref<8x128xf32, #tpu.memory_space<vmem>>, vector<8x128xf32>,
    } else {
    }
    %c0 = arith.constant 0 : index
    %c0_1 = arith.constant 0 : index
    %c0_2 = arith.constant 0 : index
    %3 = vector.load %arg2[%c0, %c0_1, %c0_2] : memref<8x8x128xbf16, #tpu.memory_space<vmem>>, vector<8x8x128xbf16>
    %4 = vector.shape_cast %3 : vector<8x8x128xbf16> to vector<64x128xbf16>
    %c0_3 = arith.constant 0 : index
    %c0_4 = arith.constant 0 : index
    %5 = vector.load %arg4[%c0_3, %c0_4] : memref<128x512xbf16, #tpu.memory_space<vmem>>, vector<128x512xbf16>
    %cst = arith.constant dense<0.000000e+00> : vector<64x512xf32>
    %6 = tpu.matmul %4, %5, %cst {dimension_numbers = #tpu.dot_dimension_numbers<[1], [0], [0], [1], [0, 0, 1, 1], [], []>} : vector<64x128xbf16>, vector<128x512xbf16>, vector<64x512xf32> -> vector<64x512xf32>
    %7 = vector.shape_cast %6 : vector<64x512xf32> to vector<8x8x512xf32>
    %c0_5 = arith.constant 0 : index
    %c0_6 = arith.constant 0 : index
    %8 = vector.load %arg5[%c0_5, %c0_6] : memref<1x512xf32, #tpu.memory_space<vmem>>, vector<1x512xf32>
    %9 = vector.shape_cast %8 : vector<1x512xf32> to vector<1x1x512xf32>
    %10 = vector.broadcast %9 : vector<1x1x512xf32> to vector<8x8x512xf32>
    %11 = arith.addf %7, %10 : vector<8x8x512xf32>
    %c0_7 = arith.constant 0 : index
    %c0_8 = arith.constant 0 : index
    %c0_9 = arith.constant 0 : index
    %12 = vector.load %arg14[%c0_7, %c0_8, %c0_9] : memref<8x8x512xf32, #tpu.memory_space<vmem>>, vector<8x8x512xf32>
    tpu.vector_store %arg14[%c0_7, %c0_8, %c0_9], %11 {strides = array<i32>} : memref<8x8x512xf32, #tpu.memory_space<vmem>>, vector<8x8x512xf32>,
    %c0_10 = arith.constant 0 : index
    %c0_11 = arith.constant 0 : index
    %13 = vector.load %arg6[%c0_10, %c0_11] : memref<128x512xbf16, #tpu.memory_space<vmem>>, vector<128x512xbf16>
    %c0_12 = arith.constant 0 : index
    %c0_13 = arith.constant 0 : index
    %14 = vector.load %arg7[%c0_12, %c0_13] : memref<128x128xbf16, #tpu.memory_space<vmem>>, vector<128x128xbf16>
    %c0_14 = arith.constant 0 : index
    %c0_15 = arith.constant 0 : index
    %15 = vector.load %arg8[%c0_14, %c0_15] : memref<1x128xf32, #tpu.memory_space<vmem>>, vector<1x128xf32>
    %16 = vector.shape_cast %15 : vector<1x128xf32> to vector<1x128xf32>
    %17 = vector.broadcast %16 : vector<1x128xf32> to vector<8x128xf32>
    %c0_i32_16 = arith.constant 0 : i32
    %18 = arith.index_cast %c0_i32_16 : i32 to index
    %c0_17 = arith.constant 0 : index
    %c0_18 = arith.constant 0 : index
    %19 = vector.load %arg3[%18, %c0_17, %c0_18] : memref<8x8x1xf32, #tpu.memory_space<vmem>>, vector<1x8x1xf32>
    %20 = vector.shape_cast %19 : vector<1x8x1xf32> to vector<8x1xf32>
    %c0_19 = arith.constant 0 : index
    %c0_20 = arith.constant 0 : index
    %21 = vector.load %arg15[%c0_19, %c0_20] : memref<8x128xbf16, #tpu.memory_space<vmem>>, vector<8x128xbf16>
    %c0_21 = arith.constant 0 : index
    %c0_22 = arith.constant 0 : index
    %22 = vector.load %arg16[%c0_21, %c0_22] : memref<8x128xf32, #tpu.memory_space<vmem>>, vector<8x128xf32>
    %23 = arith.truncf %22 : vector<8x128xf32> to vector<8x128xbf16>
    %cst_23 = arith.constant dense<0.000000e+00> : vector<8x128xf32>
    %24 = tpu.matmul %23, %14, %cst_23 {dimension_numbers = #tpu.dot_dimension_numbers<[1], [0], [0], [1], [0, 0, 1, 1], [], []>} : vector<8x128xbf16>, vector<128x128xbf16>, vector<8x128xf32> -> vector<8x128xf32>
    %25 = arith.addf %24, %17 : vector<8x128xf32>
    %26 = math.tanh %25 : vector<8x128xf32>
    %27 = arith.subf %22, %26 : vector<8x128xf32>
    %28 = vector.broadcast %20 : vector<8x1xf32> to vector<8x128xf32>
    %29 = arith.mulf %28, %26 : vector<8x128xf32>
    %30 = arith.addf %27, %29 : vector<8x128xf32>
    %31 = arith.index_cast %c0_i32_16 : i32 to index
    %c0_24 = arith.constant 0 : index
    %c0_25 = arith.constant 0 : index
    %32 = vector.load %arg14[%31, %c0_24, %c0_25] : memref<8x8x512xf32, #tpu.memory_space<vmem>>, vector<1x8x512xf32>
    %33 = vector.shape_cast %32 : vector<1x8x512xf32> to vector<8x512xf32>
    %cst_26 = arith.constant dense<0.000000e+00> : vector<8x512xf32>
    %34 = tpu.matmul %21, %13, %cst_26 {dimension_numbers = #tpu.dot_dimension_numbers<[1], [0], [0], [1], [0, 0, 1, 1], [], []>} : vector<8x128xbf16>, vector<128x512xbf16>, vector<8x512xf32> -> vector<8x512xf32>
    %35 = arith.addf %33, %34 : vector<8x512xf32>
    %36 = vector.extract_strided_slice %35 {offsets = [0, 0], sizes = [8, 384], strides = [1, 1]} : vector<8x512xf32> to vector<8x384xf32>
    %37 = arith.negf %36 : vector<8x384xf32>
    %38 = math.exp %37 : vector<8x384xf32>
    %cst_27 = arith.constant 1.000000e+00 : f32
    %39 = vector.broadcast %cst_27 : f32 to vector<8x384xf32>
    %40 = arith.addf %39, %38 : vector<8x384xf32>
    %41 = arith.divf %39, %40 : vector<8x384xf32>
    %42 = vector.extract_strided_slice %41 {offsets = [0, 0], sizes = [8, 128], strides = [1, 1]} : vector<8x384xf32> to vector<8x128xf32>
    %43 = vector.extract_strided_slice %41 {offsets = [0, 128], sizes = [8, 128], strides = [1, 1]} : vector<8x384xf32> to vector<8x128xf32>
    %44 = vector.extract_strided_slice %41 {offsets = [0, 256], sizes = [8, 128], strides = [1, 1]} : vector<8x384xf32> to vector<8x128xf32>
    %45 = vector.extract_strided_slice %35 {offsets = [0, 384], sizes = [8, 128], strides = [1, 1]} : vector<8x512xf32> to vector<8x128xf32>
    %46 = math.tanh %45 : vector<8x128xf32>
    %47 = arith.mulf %43, %30 : vector<8x128xf32>
    %48 = arith.mulf %42, %46 : vector<8x128xf32>
    %49 = arith.addf %47, %48 : vector<8x128xf32>
    %c0_28 = arith.constant 0 : index
    %c0_29 = arith.constant 0 : index
    %50 = vector.load %arg16[%c0_28, %c0_29] : memref<8x128xf32, #tpu.memory_space<vmem>>, vector<8x128xf32>
    tpu.vector_store %arg16[%c0_28, %c0_29], %49 {strides = array<i32>} : memref<8x128xf32, #tpu.memory_space<vmem>>, vector<8x128xf32>,
    %51 = math.tanh %49 : vector<8x128xf32>
    %52 = arith.mulf %44, %51 : vector<8x128xf32>
    %53 = arith.truncf %52 : vector<8x128xf32> to vector<8x128xbf16>
    %c0_30 = arith.constant 0 : index
    %c0_31 = arith.constant 0 : index
    %54 = vector.load %arg15[%c0_30, %c0_31] : memref<8x128xbf16, #tpu.memory_space<vmem>>, vector<8x128xbf16>
    tpu.vector_store %arg15[%c0_30, %c0_31], %53 {strides = array<i32>} : memref<8x128xbf16, #tpu.memory_space<vmem>>, vector<8x128xbf16>,
    %c1_i32 = arith.constant 1 : i32
    %55 = arith.index_cast %c1_i32 : i32 to index
    %c0_32 = arith.constant 0 : index
    %c0_33 = arith.constant 0 : index
    %56 = vector.load %arg3[%55, %c0_32, %c0_33] : memref<8x8x1xf32, #tpu.memory_space<vmem>>, vector<1x8x1xf32>
    %57 = vector.shape_cast %56 : vector<1x8x1xf32> to vector<8x1xf32>
    %c0_34 = arith.constant 0 : index
    %c0_35 = arith.constant 0 : index
    %58 = vector.load %arg15[%c0_34, %c0_35] : memref<8x128xbf16, #tpu.memory_space<vmem>>, vector<8x128xbf16>
    %c0_36 = arith.constant 0 : index
    %c0_37 = arith.constant 0 : index
    %59 = vector.load %arg16[%c0_36, %c0_37] : memref<8x128xf32, #tpu.memory_space<vmem>>, vector<8x128xf32>
    %60 = arith.truncf %59 : vector<8x128xf32> to vector<8x128xbf16>
    %cst_38 = arith.constant dense<0.000000e+00> : vector<8x128xf32>
    %61 = tpu.matmul %60, %14, %cst_38 {dimension_numbers = #tpu.dot_dimension_numbers<[1], [0], [0], [1], [0, 0, 1, 1], [], []>} : vector<8x128xbf16>, vector<128x128xbf16>, vector<8x128xf32> -> vector<8x128xf32>
    %62 = arith.addf %61, %17 : vector<8x128xf32>
    %63 = math.tanh %62 : vector<8x128xf32>
    %64 = arith.subf %59, %63 : vector<8x128xf32>
    %65 = vector.broadcast %57 : vector<8x1xf32> to vector<8x128xf32>
    %66 = arith.mulf %65, %63 : vector<8x128xf32>
    %67 = arith.addf %64, %66 : vector<8x128xf32>
    %68 = arith.index_cast %c1_i32 : i32 to index
    %c0_39 = arith.constant 0 : index
    %c0_40 = arith.constant 0 : index
    %69 = vector.load %arg14[%68, %c0_39, %c0_40] : memref<8x8x512xf32, #tpu.memory_space<vmem>>, vector<1x8x512xf32>
    %70 = vector.shape_cast %69 : vector<1x8x512xf32> to vector<8x512xf32>
    %cst_41 = arith.constant dense<0.000000e+00> : vector<8x512xf32>
    %71 = tpu.matmul %58, %13, %cst_41 {dimension_numbers = #tpu.dot_dimension_numbers<[1], [0], [0], [1], [0, 0, 1, 1], [], []>} : vector<8x128xbf16>, vector<128x512xbf16>, vector<8x512xf32> -> vector<8x512xf32>
    %72 = arith.addf %70, %71 : vector<8x512xf32>
    %73 = vector.extract_strided_slice %72 {offsets = [0, 0], sizes = [8, 384], strides = [1, 1]} : vector<8x512xf32> to vector<8x384xf32>
    %74 = arith.negf %73 : vector<8x384xf32>
    %75 = math.exp %74 : vector<8x384xf32>
    %cst_42 = arith.constant 1.000000e+00 : f32
    %76 = vector.broadcast %cst_42 : f32 to vector<8x384xf32>
    %77 = arith.addf %76, %75 : vector<8x384xf32>
    %78 = arith.divf %76, %77 : vector<8x384xf32>
    %79 = vector.extract_strided_slice %78 {offsets = [0, 0], sizes = [8, 128], strides = [1, 1]} : vector<8x384xf32> to vector<8x128xf32>
    %80 = vector.extract_strided_slice %78 {offsets = [0, 128], sizes = [8, 128], strides = [1, 1]} : vector<8x384xf32> to vector<8x128xf32>
    %81 = vector.extract_strided_slice %78 {offsets = [0, 256], sizes = [8, 128], strides = [1, 1]} : vector<8x384xf32> to vector<8x128xf32>
    %82 = vector.extract_strided_slice %72 {offsets = [0, 384], sizes = [8, 128], strides = [1, 1]} : vector<8x512xf32> to vector<8x128xf32>
    %83 = math.tanh %82 : vector<8x128xf32>
    %84 = arith.mulf %80, %67 : vector<8x128xf32>
    %85 = arith.mulf %79, %83 : vector<8x128xf32>
    %86 = arith.addf %84, %85 : vector<8x128xf32>
    %c0_43 = arith.constant 0 : index
    %c0_44 = arith.constant 0 : index
    %87 = vector.load %arg16[%c0_43, %c0_44] : memref<8x128xf32, #tpu.memory_space<vmem>>, vector<8x128xf32>
    tpu.vector_store %arg16[%c0_43, %c0_44], %86 {strides = array<i32>} : memref<8x128xf32, #tpu.memory_space<vmem>>, vector<8x128xf32>,
    %88 = math.tanh %86 : vector<8x128xf32>
    %89 = arith.mulf %81, %88 : vector<8x128xf32>
    %90 = arith.truncf %89 : vector<8x128xf32> to vector<8x128xbf16>
    %c0_45 = arith.constant 0 : index
    %c0_46 = arith.constant 0 : index
    %91 = vector.load %arg15[%c0_45, %c0_46] : memref<8x128xbf16, #tpu.memory_space<vmem>>, vector<8x128xbf16>
    tpu.vector_store %arg15[%c0_45, %c0_46], %90 {strides = array<i32>} : memref<8x128xbf16, #tpu.memory_space<vmem>>, vector<8x128xbf16>,
    %c2_i32 = arith.constant 2 : i32
    %92 = arith.index_cast %c2_i32 : i32 to index
    %c0_47 = arith.constant 0 : index
    %c0_48 = arith.constant 0 : index
    %93 = vector.load %arg3[%92, %c0_47, %c0_48] : memref<8x8x1xf32, #tpu.memory_space<vmem>>, vector<1x8x1xf32>
    %94 = vector.shape_cast %93 : vector<1x8x1xf32> to vector<8x1xf32>
    %c0_49 = arith.constant 0 : index
    %c0_50 = arith.constant 0 : index
    %95 = vector.load %arg15[%c0_49, %c0_50] : memref<8x128xbf16, #tpu.memory_space<vmem>>, vector<8x128xbf16>
    %c0_51 = arith.constant 0 : index
    %c0_52 = arith.constant 0 : index
    %96 = vector.load %arg16[%c0_51, %c0_52] : memref<8x128xf32, #tpu.memory_space<vmem>>, vector<8x128xf32>
    %97 = arith.truncf %96 : vector<8x128xf32> to vector<8x128xbf16>
    %cst_53 = arith.constant dense<0.000000e+00> : vector<8x128xf32>
    %98 = tpu.matmul %97, %14, %cst_53 {dimension_numbers = #tpu.dot_dimension_numbers<[1], [0], [0], [1], [0, 0, 1, 1], [], []>} : vector<8x128xbf16>, vector<128x128xbf16>, vector<8x128xf32> -> vector<8x128xf32>
    %99 = arith.addf %98, %17 : vector<8x128xf32>
    %100 = math.tanh %99 : vector<8x128xf32>
    %101 = arith.subf %96, %100 : vector<8x128xf32>
    %102 = vector.broadcast %94 : vector<8x1xf32> to vector<8x128xf32>
    %103 = arith.mulf %102, %100 : vector<8x128xf32>
    %104 = arith.addf %101, %103 : vector<8x128xf32>
    %105 = arith.index_cast %c2_i32 : i32 to index
    %c0_54 = arith.constant 0 : index
    %c0_55 = arith.constant 0 : index
    %106 = vector.load %arg14[%105, %c0_54, %c0_55] : memref<8x8x512xf32, #tpu.memory_space<vmem>>, vector<1x8x512xf32>
    %107 = vector.shape_cast %106 : vector<1x8x512xf32> to vector<8x512xf32>
    %cst_56 = arith.constant dense<0.000000e+00> : vector<8x512xf32>
    %108 = tpu.matmul %95, %13, %cst_56 {dimension_numbers = #tpu.dot_dimension_numbers<[1], [0], [0], [1], [0, 0, 1, 1], [], []>} : vector<8x128xbf16>, vector<128x512xbf16>, vector<8x512xf32> -> vector<8x512xf32>
    %109 = arith.addf %107, %108 : vector<8x512xf32>
    %110 = vector.extract_strided_slice %109 {offsets = [0, 0], sizes = [8, 384], strides = [1, 1]} : vector<8x512xf32> to vector<8x384xf32>
    %111 = arith.negf %110 : vector<8x384xf32>
    %112 = math.exp %111 : vector<8x384xf32>
    %cst_57 = arith.constant 1.000000e+00 : f32
    %113 = vector.broadcast %cst_57 : f32 to vector<8x384xf32>
    %114 = arith.addf %113, %112 : vector<8x384xf32>
    %115 = arith.divf %113, %114 : vector<8x384xf32>
    %116 = vector.extract_strided_slice %115 {offsets = [0, 0], sizes = [8, 128], strides = [1, 1]} : vector<8x384xf32> to vector<8x128xf32>
    %117 = vector.extract_strided_slice %115 {offsets = [0, 128], sizes = [8, 128], strides = [1, 1]} : vector<8x384xf32> to vector<8x128xf32>
    %118 = vector.extract_strided_slice %115 {offsets = [0, 256], sizes = [8, 128], strides = [1, 1]} : vector<8x384xf32> to vector<8x128xf32>
    %119 = vector.extract_strided_slice %109 {offsets = [0, 384], sizes = [8, 128], strides = [1, 1]} : vector<8x512xf32> to vector<8x128xf32>
    %120 = math.tanh %119 : vector<8x128xf32>
    %121 = arith.mulf %117, %104 : vector<8x128xf32>
    %122 = arith.mulf %116, %120 : vector<8x128xf32>
    %123 = arith.addf %121, %122 : vector<8x128xf32>
    %c0_58 = arith.constant 0 : index
    %c0_59 = arith.constant 0 : index
    %124 = vector.load %arg16[%c0_58, %c0_59] : memref<8x128xf32, #tpu.memory_space<vmem>>, vector<8x128xf32>
    tpu.vector_store %arg16[%c0_58, %c0_59], %123 {strides = array<i32>} : memref<8x128xf32, #tpu.memory_space<vmem>>, vector<8x128xf32>,
    %125 = math.tanh %123 : vector<8x128xf32>
    %126 = arith.mulf %118, %125 : vector<8x128xf32>
    %127 = arith.truncf %126 : vector<8x128xf32> to vector<8x128xbf16>
    %c0_60 = arith.constant 0 : index
    %c0_61 = arith.constant 0 : index
    %128 = vector.load %arg15[%c0_60, %c0_61] : memref<8x128xbf16, #tpu.memory_space<vmem>>, vector<8x128xbf16>
    tpu.vector_store %arg15[%c0_60, %c0_61], %127 {strides = array<i32>} : memref<8x128xbf16, #tpu.memory_space<vmem>>, vector<8x128xbf16>,
    %c3_i32 = arith.constant 3 : i32
    %129 = arith.index_cast %c3_i32 : i32 to index
    %c0_62 = arith.constant 0 : index
    %c0_63 = arith.constant 0 : index
    %130 = vector.load %arg3[%129, %c0_62, %c0_63] : memref<8x8x1xf32, #tpu.memory_space<vmem>>, vector<1x8x1xf32>
    %131 = vector.shape_cast %130 : vector<1x8x1xf32> to vector<8x1xf32>
    %c0_64 = arith.constant 0 : index
    %c0_65 = arith.constant 0 : index
    %132 = vector.load %arg15[%c0_64, %c0_65] : memref<8x128xbf16, #tpu.memory_space<vmem>>, vector<8x128xbf16>
    %c0_66 = arith.constant 0 : index
    %c0_67 = arith.constant 0 : index
    %133 = vector.load %arg16[%c0_66, %c0_67] : memref<8x128xf32, #tpu.memory_space<vmem>>, vector<8x128xf32>
    %134 = arith.truncf %133 : vector<8x128xf32> to vector<8x128xbf16>
    %cst_68 = arith.constant dense<0.000000e+00> : vector<8x128xf32>
    %135 = tpu.matmul %134, %14, %cst_68 {dimension_numbers = #tpu.dot_dimension_numbers<[1], [0], [0], [1], [0, 0, 1, 1], [], []>} : vector<8x128xbf16>, vector<128x128xbf16>, vector<8x128xf32> -> vector<8x128xf32>
    %136 = arith.addf %135, %17 : vector<8x128xf32>
    %137 = math.tanh %136 : vector<8x128xf32>
    %138 = arith.subf %133, %137 : vector<8x128xf32>
    %139 = vector.broadcast %131 : vector<8x1xf32> to vector<8x128xf32>
    %140 = arith.mulf %139, %137 : vector<8x128xf32>
    %141 = arith.addf %138, %140 : vector<8x128xf32>
    %142 = arith.index_cast %c3_i32 : i32 to index
    %c0_69 = arith.constant 0 : index
    %c0_70 = arith.constant 0 : index
    %143 = vector.load %arg14[%142, %c0_69, %c0_70] : memref<8x8x512xf32, #tpu.memory_space<vmem>>, vector<1x8x512xf32>
    %144 = vector.shape_cast %143 : vector<1x8x512xf32> to vector<8x512xf32>
    %cst_71 = arith.constant dense<0.000000e+00> : vector<8x512xf32>
    %145 = tpu.matmul %132, %13, %cst_71 {dimension_numbers = #tpu.dot_dimension_numbers<[1], [0], [0], [1], [0, 0, 1, 1], [], []>} : vector<8x128xbf16>, vector<128x512xbf16>, vector<8x512xf32> -> vector<8x512xf32>
    %146 = arith.addf %144, %145 : vector<8x512xf32>
    %147 = vector.extract_strided_slice %146 {offsets = [0, 0], sizes = [8, 384], strides = [1, 1]} : vector<8x512xf32> to vector<8x384xf32>
    %148 = arith.negf %147 : vector<8x384xf32>
    %149 = math.exp %148 : vector<8x384xf32>
    %cst_72 = arith.constant 1.000000e+00 : f32
    %150 = vector.broadcast %cst_72 : f32 to vector<8x384xf32>
    %151 = arith.addf %150, %149 : vector<8x384xf32>
    %152 = arith.divf %150, %151 : vector<8x384xf32>
    %153 = vector.extract_strided_slice %152 {offsets = [0, 0], sizes = [8, 128], strides = [1, 1]} : vector<8x384xf32> to vector<8x128xf32>
    %154 = vector.extract_strided_slice %152 {offsets = [0, 128], sizes = [8, 128], strides = [1, 1]} : vector<8x384xf32> to vector<8x128xf32>
    %155 = vector.extract_strided_slice %152 {offsets = [0, 256], sizes = [8, 128], strides = [1, 1]} : vector<8x384xf32> to vector<8x128xf32>
    %156 = vector.extract_strided_slice %146 {offsets = [0, 384], sizes = [8, 128], strides = [1, 1]} : vector<8x512xf32> to vector<8x128xf32>
    %157 = math.tanh %156 : vector<8x128xf32>
    %158 = arith.mulf %154, %141 : vector<8x128xf32>
    %159 = arith.mulf %153, %157 : vector<8x128xf32>
    %160 = arith.addf %158, %159 : vector<8x128xf32>
    %c0_73 = arith.constant 0 : index
    %c0_74 = arith.constant 0 : index
    %161 = vector.load %arg16[%c0_73, %c0_74] : memref<8x128xf32, #tpu.memory_space<vmem>>, vector<8x128xf32>
    tpu.vector_store %arg16[%c0_73, %c0_74], %160 {strides = array<i32>} : memref<8x128xf32, #tpu.memory_space<vmem>>, vector<8x128xf32>,
    %162 = math.tanh %160 : vector<8x128xf32>
    %163 = arith.mulf %155, %162 : vector<8x128xf32>
    %164 = arith.truncf %163 : vector<8x128xf32> to vector<8x128xbf16>
    %c0_75 = arith.constant 0 : index
    %c0_76 = arith.constant 0 : index
    %165 = vector.load %arg15[%c0_75, %c0_76] : memref<8x128xbf16, #tpu.memory_space<vmem>>, vector<8x128xbf16>
    tpu.vector_store %arg15[%c0_75, %c0_76], %164 {strides = array<i32>} : memref<8x128xbf16, #tpu.memory_space<vmem>>, vector<8x128xbf16>,
    %c4_i32 = arith.constant 4 : i32
    %166 = arith.index_cast %c4_i32 : i32 to index
    %c0_77 = arith.constant 0 : index
    %c0_78 = arith.constant 0 : index
    %167 = vector.load %arg3[%166, %c0_77, %c0_78] : memref<8x8x1xf32, #tpu.memory_space<vmem>>, vector<1x8x1xf32>
    %168 = vector.shape_cast %167 : vector<1x8x1xf32> to vector<8x1xf32>
    %c0_79 = arith.constant 0 : index
    %c0_80 = arith.constant 0 : index
    %169 = vector.load %arg15[%c0_79, %c0_80] : memref<8x128xbf16, #tpu.memory_space<vmem>>, vector<8x128xbf16>
    %c0_81 = arith.constant 0 : index
    %c0_82 = arith.constant 0 : index
    %170 = vector.load %arg16[%c0_81, %c0_82] : memref<8x128xf32, #tpu.memory_space<vmem>>, vector<8x128xf32>
    %171 = arith.truncf %170 : vector<8x128xf32> to vector<8x128xbf16>
    %cst_83 = arith.constant dense<0.000000e+00> : vector<8x128xf32>
    %172 = tpu.matmul %171, %14, %cst_83 {dimension_numbers = #tpu.dot_dimension_numbers<[1], [0], [0], [1], [0, 0, 1, 1], [], []>} : vector<8x128xbf16>, vector<128x128xbf16>, vector<8x128xf32> -> vector<8x128xf32>
    %173 = arith.addf %172, %17 : vector<8x128xf32>
    %174 = math.tanh %173 : vector<8x128xf32>
    %175 = arith.subf %170, %174 : vector<8x128xf32>
    %176 = vector.broadcast %168 : vector<8x1xf32> to vector<8x128xf32>
    %177 = arith.mulf %176, %174 : vector<8x128xf32>
    %178 = arith.addf %175, %177 : vector<8x128xf32>
    %179 = arith.index_cast %c4_i32 : i32 to index
    %c0_84 = arith.constant 0 : index
    %c0_85 = arith.constant 0 : index
    %180 = vector.load %arg14[%179, %c0_84, %c0_85] : memref<8x8x512xf32, #tpu.memory_space<vmem>>, vector<1x8x512xf32>
    %181 = vector.shape_cast %180 : vector<1x8x512xf32> to vector<8x512xf32>
    %cst_86 = arith.constant dense<0.000000e+00> : vector<8x512xf32>
    %182 = tpu.matmul %169, %13, %cst_86 {dimension_numbers = #tpu.dot_dimension_numbers<[1], [0], [0], [1], [0, 0, 1, 1], [], []>} : vector<8x128xbf16>, vector<128x512xbf16>, vector<8x512xf32> -> vector<8x512xf32>
    %183 = arith.addf %181, %182 : vector<8x512xf32>
    %184 = vector.extract_strided_slice %183 {offsets = [0, 0], sizes = [8, 384], strides = [1, 1]} : vector<8x512xf32> to vector<8x384xf32>
    %185 = arith.negf %184 : vector<8x384xf32>
    %186 = math.exp %185 : vector<8x384xf32>
    %cst_87 = arith.constant 1.000000e+00 : f32
    %187 = vector.broadcast %cst_87 : f32 to vector<8x384xf32>
    %188 = arith.addf %187, %186 : vector<8x384xf32>
    %189 = arith.divf %187, %188 : vector<8x384xf32>
    %190 = vector.extract_strided_slice %189 {offsets = [0, 0], sizes = [8, 128], strides = [1, 1]} : vector<8x384xf32> to vector<8x128xf32>
    %191 = vector.extract_strided_slice %189 {offsets = [0, 128], sizes = [8, 128], strides = [1, 1]} : vector<8x384xf32> to vector<8x128xf32>
    %192 = vector.extract_strided_slice %189 {offsets = [0, 256], sizes = [8, 128], strides = [1, 1]} : vector<8x384xf32> to vector<8x128xf32>
    %193 = vector.extract_strided_slice %183 {offsets = [0, 384], sizes = [8, 128], strides = [1, 1]} : vector<8x512xf32> to vector<8x128xf32>
    %194 = math.tanh %193 : vector<8x128xf32>
    %195 = arith.mulf %191, %178 : vector<8x128xf32>
    %196 = arith.mulf %190, %194 : vector<8x128xf32>
    %197 = arith.addf %195, %196 : vector<8x128xf32>
    %c0_88 = arith.constant 0 : index
    %c0_89 = arith.constant 0 : index
    %198 = vector.load %arg16[%c0_88, %c0_89] : memref<8x128xf32, #tpu.memory_space<vmem>>, vector<8x128xf32>
    tpu.vector_store %arg16[%c0_88, %c0_89], %197 {strides = array<i32>} : memref<8x128xf32, #tpu.memory_space<vmem>>, vector<8x128xf32>,
    %199 = math.tanh %197 : vector<8x128xf32>
    %200 = arith.mulf %192, %199 : vector<8x128xf32>
    %201 = arith.truncf %200 : vector<8x128xf32> to vector<8x128xbf16>
    %c0_90 = arith.constant 0 : index
    %c0_91 = arith.constant 0 : index
    %202 = vector.load %arg15[%c0_90, %c0_91] : memref<8x128xbf16, #tpu.memory_space<vmem>>, vector<8x128xbf16>
    tpu.vector_store %arg15[%c0_90, %c0_91], %201 {strides = array<i32>} : memref<8x128xbf16, #tpu.memory_space<vmem>>, vector<8x128xbf16>,
    %c5_i32 = arith.constant 5 : i32
    %203 = arith.index_cast %c5_i32 : i32 to index
    %c0_92 = arith.constant 0 : index
    %c0_93 = arith.constant 0 : index
    %204 = vector.load %arg3[%203, %c0_92, %c0_93] : memref<8x8x1xf32, #tpu.memory_space<vmem>>, vector<1x8x1xf32>
    %205 = vector.shape_cast %204 : vector<1x8x1xf32> to vector<8x1xf32>
    %c0_94 = arith.constant 0 : index
    %c0_95 = arith.constant 0 : index
    %206 = vector.load %arg15[%c0_94, %c0_95] : memref<8x128xbf16, #tpu.memory_space<vmem>>, vector<8x128xbf16>
    %c0_96 = arith.constant 0 : index
    %c0_97 = arith.constant 0 : index
    %207 = vector.load %arg16[%c0_96, %c0_97] : memref<8x128xf32, #tpu.memory_space<vmem>>, vector<8x128xf32>
    %208 = arith.truncf %207 : vector<8x128xf32> to vector<8x128xbf16>
    %cst_98 = arith.constant dense<0.000000e+00> : vector<8x128xf32>
    %209 = tpu.matmul %208, %14, %cst_98 {dimension_numbers = #tpu.dot_dimension_numbers<[1], [0], [0], [1], [0, 0, 1, 1], [], []>} : vector<8x128xbf16>, vector<128x128xbf16>, vector<8x128xf32> -> vector<8x128xf32>
    %210 = arith.addf %209, %17 : vector<8x128xf32>
    %211 = math.tanh %210 : vector<8x128xf32>
    %212 = arith.subf %207, %211 : vector<8x128xf32>
    %213 = vector.broadcast %205 : vector<8x1xf32> to vector<8x128xf32>
    %214 = arith.mulf %213, %211 : vector<8x128xf32>
    %215 = arith.addf %212, %214 : vector<8x128xf32>
    %216 = arith.index_cast %c5_i32 : i32 to index
    %c0_99 = arith.constant 0 : index
    %c0_100 = arith.constant 0 : index
    %217 = vector.load %arg14[%216, %c0_99, %c0_100] : memref<8x8x512xf32, #tpu.memory_space<vmem>>, vector<1x8x512xf32>
    %218 = vector.shape_cast %217 : vector<1x8x512xf32> to vector<8x512xf32>
    %cst_101 = arith.constant dense<0.000000e+00> : vector<8x512xf32>
    %219 = tpu.matmul %206, %13, %cst_101 {dimension_numbers = #tpu.dot_dimension_numbers<[1], [0], [0], [1], [0, 0, 1, 1], [], []>} : vector<8x128xbf16>, vector<128x512xbf16>, vector<8x512xf32> -> vector<8x512xf32>
    %220 = arith.addf %218, %219 : vector<8x512xf32>
    %221 = vector.extract_strided_slice %220 {offsets = [0, 0], sizes = [8, 384], strides = [1, 1]} : vector<8x512xf32> to vector<8x384xf32>
    %222 = arith.negf %221 : vector<8x384xf32>
    %223 = math.exp %222 : vector<8x384xf32>
    %cst_102 = arith.constant 1.000000e+00 : f32
    %224 = vector.broadcast %cst_102 : f32 to vector<8x384xf32>
    %225 = arith.addf %224, %223 : vector<8x384xf32>
    %226 = arith.divf %224, %225 : vector<8x384xf32>
    %227 = vector.extract_strided_slice %226 {offsets = [0, 0], sizes = [8, 128], strides = [1, 1]} : vector<8x384xf32> to vector<8x128xf32>
    %228 = vector.extract_strided_slice %226 {offsets = [0, 128], sizes = [8, 128], strides = [1, 1]} : vector<8x384xf32> to vector<8x128xf32>
    %229 = vector.extract_strided_slice %226 {offsets = [0, 256], sizes = [8, 128], strides = [1, 1]} : vector<8x384xf32> to vector<8x128xf32>
    %230 = vector.extract_strided_slice %220 {offsets = [0, 384], sizes = [8, 128], strides = [1, 1]} : vector<8x512xf32> to vector<8x128xf32>
    %231 = math.tanh %230 : vector<8x128xf32>
    %232 = arith.mulf %228, %215 : vector<8x128xf32>
    %233 = arith.mulf %227, %231 : vector<8x128xf32>
    %234 = arith.addf %232, %233 : vector<8x128xf32>
    %c0_103 = arith.constant 0 : index
    %c0_104 = arith.constant 0 : index
    %235 = vector.load %arg16[%c0_103, %c0_104] : memref<8x128xf32, #tpu.memory_space<vmem>>, vector<8x128xf32>
    tpu.vector_store %arg16[%c0_103, %c0_104], %234 {strides = array<i32>} : memref<8x128xf32, #tpu.memory_space<vmem>>, vector<8x128xf32>,
    %236 = math.tanh %234 : vector<8x128xf32>
    %237 = arith.mulf %229, %236 : vector<8x128xf32>
    %238 = arith.truncf %237 : vector<8x128xf32> to vector<8x128xbf16>
    %c0_105 = arith.constant 0 : index
    %c0_106 = arith.constant 0 : index
    %239 = vector.load %arg15[%c0_105, %c0_106] : memref<8x128xbf16, #tpu.memory_space<vmem>>, vector<8x128xbf16>
    tpu.vector_store %arg15[%c0_105, %c0_106], %238 {strides = array<i32>} : memref<8x128xbf16, #tpu.memory_space<vmem>>, vector<8x128xbf16>,
    %c6_i32 = arith.constant 6 : i32
    %240 = arith.index_cast %c6_i32 : i32 to index
    %c0_107 = arith.constant 0 : index
    %c0_108 = arith.constant 0 : index
    %241 = vector.load %arg3[%240, %c0_107, %c0_108] : memref<8x8x1xf32, #tpu.memory_space<vmem>>, vector<1x8x1xf32>
    %242 = vector.shape_cast %241 : vector<1x8x1xf32> to vector<8x1xf32>
    %c0_109 = arith.constant 0 : index
    %c0_110 = arith.constant 0 : index
    %243 = vector.load %arg15[%c0_109, %c0_110] : memref<8x128xbf16, #tpu.memory_space<vmem>>, vector<8x128xbf16>
    %c0_111 = arith.constant 0 : index
    %c0_112 = arith.constant 0 : index
    %244 = vector.load %arg16[%c0_111, %c0_112] : memref<8x128xf32, #tpu.memory_space<vmem>>, vector<8x128xf32>
    %245 = arith.truncf %244 : vector<8x128xf32> to vector<8x128xbf16>
    %cst_113 = arith.constant dense<0.000000e+00> : vector<8x128xf32>
    %246 = tpu.matmul %245, %14, %cst_113 {dimension_numbers = #tpu.dot_dimension_numbers<[1], [0], [0], [1], [0, 0, 1, 1], [], []>} : vector<8x128xbf16>, vector<128x128xbf16>, vector<8x128xf32> -> vector<8x128xf32>
    %247 = arith.addf %246, %17 : vector<8x128xf32>
    %248 = math.tanh %247 : vector<8x128xf32>
    %249 = arith.subf %244, %248 : vector<8x128xf32>
    %250 = vector.broadcast %242 : vector<8x1xf32> to vector<8x128xf32>
    %251 = arith.mulf %250, %248 : vector<8x128xf32>
    %252 = arith.addf %249, %251 : vector<8x128xf32>
    %253 = arith.index_cast %c6_i32 : i32 to index
    %c0_114 = arith.constant 0 : index
    %c0_115 = arith.constant 0 : index
    %254 = vector.load %arg14[%253, %c0_114, %c0_115] : memref<8x8x512xf32, #tpu.memory_space<vmem>>, vector<1x8x512xf32>
    %255 = vector.shape_cast %254 : vector<1x8x512xf32> to vector<8x512xf32>
    %cst_116 = arith.constant dense<0.000000e+00> : vector<8x512xf32>
    %256 = tpu.matmul %243, %13, %cst_116 {dimension_numbers = #tpu.dot_dimension_numbers<[1], [0], [0], [1], [0, 0, 1, 1], [], []>} : vector<8x128xbf16>, vector<128x512xbf16>, vector<8x512xf32> -> vector<8x512xf32>
    %257 = arith.addf %255, %256 : vector<8x512xf32>
    %258 = vector.extract_strided_slice %257 {offsets = [0, 0], sizes = [8, 384], strides = [1, 1]} : vector<8x512xf32> to vector<8x384xf32>
    %259 = arith.negf %258 : vector<8x384xf32>
    %260 = math.exp %259 : vector<8x384xf32>
    %cst_117 = arith.constant 1.000000e+00 : f32
    %261 = vector.broadcast %cst_117 : f32 to vector<8x384xf32>
    %262 = arith.addf %261, %260 : vector<8x384xf32>
    %263 = arith.divf %261, %262 : vector<8x384xf32>
    %264 = vector.extract_strided_slice %263 {offsets = [0, 0], sizes = [8, 128], strides = [1, 1]} : vector<8x384xf32> to vector<8x128xf32>
    %265 = vector.extract_strided_slice %263 {offsets = [0, 128], sizes = [8, 128], strides = [1, 1]} : vector<8x384xf32> to vector<8x128xf32>
    %266 = vector.extract_strided_slice %263 {offsets = [0, 256], sizes = [8, 128], strides = [1, 1]} : vector<8x384xf32> to vector<8x128xf32>
    %267 = vector.extract_strided_slice %257 {offsets = [0, 384], sizes = [8, 128], strides = [1, 1]} : vector<8x512xf32> to vector<8x128xf32>
    %268 = math.tanh %267 : vector<8x128xf32>
    %269 = arith.mulf %265, %252 : vector<8x128xf32>
    %270 = arith.mulf %264, %268 : vector<8x128xf32>
    %271 = arith.addf %269, %270 : vector<8x128xf32>
    %c0_118 = arith.constant 0 : index
    %c0_119 = arith.constant 0 : index
    %272 = vector.load %arg16[%c0_118, %c0_119] : memref<8x128xf32, #tpu.memory_space<vmem>>, vector<8x128xf32>
    tpu.vector_store %arg16[%c0_118, %c0_119], %271 {strides = array<i32>} : memref<8x128xf32, #tpu.memory_space<vmem>>, vector<8x128xf32>,
    %273 = math.tanh %271 : vector<8x128xf32>
    %274 = arith.mulf %266, %273 : vector<8x128xf32>
    %275 = arith.truncf %274 : vector<8x128xf32> to vector<8x128xbf16>
    %c0_120 = arith.constant 0 : index
    %c0_121 = arith.constant 0 : index
    %276 = vector.load %arg15[%c0_120, %c0_121] : memref<8x128xbf16, #tpu.memory_space<vmem>>, vector<8x128xbf16>
    tpu.vector_store %arg15[%c0_120, %c0_121], %275 {strides = array<i32>} : memref<8x128xbf16, #tpu.memory_space<vmem>>, vector<8x128xbf16>,
    %c7_i32 = arith.constant 7 : i32
    %277 = arith.index_cast %c7_i32 : i32 to index
    %c0_122 = arith.constant 0 : index
    %c0_123 = arith.constant 0 : index
    %278 = vector.load %arg3[%277, %c0_122, %c0_123] : memref<8x8x1xf32, #tpu.memory_space<vmem>>, vector<1x8x1xf32>
    %279 = vector.shape_cast %278 : vector<1x8x1xf32> to vector<8x1xf32>
    %c0_124 = arith.constant 0 : index
    %c0_125 = arith.constant 0 : index
    %280 = vector.load %arg15[%c0_124, %c0_125] : memref<8x128xbf16, #tpu.memory_space<vmem>>, vector<8x128xbf16>
    %c0_126 = arith.constant 0 : index
    %c0_127 = arith.constant 0 : index
    %281 = vector.load %arg16[%c0_126, %c0_127] : memref<8x128xf32, #tpu.memory_space<vmem>>, vector<8x128xf32>
    %282 = arith.truncf %281 : vector<8x128xf32> to vector<8x128xbf16>
    %cst_128 = arith.constant dense<0.000000e+00> : vector<8x128xf32>
    %283 = tpu.matmul %282, %14, %cst_128 {dimension_numbers = #tpu.dot_dimension_numbers<[1], [0], [0], [1], [0, 0, 1, 1], [], []>} : vector<8x128xbf16>, vector<128x128xbf16>, vector<8x128xf32> -> vector<8x128xf32>
    %284 = arith.addf %283, %17 : vector<8x128xf32>
    %285 = math.tanh %284 : vector<8x128xf32>
    %286 = arith.subf %281, %285 : vector<8x128xf32>
    %287 = vector.broadcast %279 : vector<8x1xf32> to vector<8x128xf32>
    %288 = arith.mulf %287, %285 : vector<8x128xf32>
    %289 = arith.addf %286, %288 : vector<8x128xf32>
    %290 = arith.index_cast %c7_i32 : i32 to index
    %c0_129 = arith.constant 0 : index
    %c0_130 = arith.constant 0 : index
    %291 = vector.load %arg14[%290, %c0_129, %c0_130] : memref<8x8x512xf32, #tpu.memory_space<vmem>>, vector<1x8x512xf32>
    %292 = vector.shape_cast %291 : vector<1x8x512xf32> to vector<8x512xf32>
    %cst_131 = arith.constant dense<0.000000e+00> : vector<8x512xf32>
    %293 = tpu.matmul %280, %13, %cst_131 {dimension_numbers = #tpu.dot_dimension_numbers<[1], [0], [0], [1], [0, 0, 1, 1], [], []>} : vector<8x128xbf16>, vector<128x512xbf16>, vector<8x512xf32> -> vector<8x512xf32>
    %294 = arith.addf %292, %293 : vector<8x512xf32>
    %295 = vector.extract_strided_slice %294 {offsets = [0, 0], sizes = [8, 384], strides = [1, 1]} : vector<8x512xf32> to vector<8x384xf32>
    %296 = arith.negf %295 : vector<8x384xf32>
    %297 = math.exp %296 : vector<8x384xf32>
    %cst_132 = arith.constant 1.000000e+00 : f32
    %298 = vector.broadcast %cst_132 : f32 to vector<8x384xf32>
    %299 = arith.addf %298, %297 : vector<8x384xf32>
    %300 = arith.divf %298, %299 : vector<8x384xf32>
    %301 = vector.extract_strided_slice %300 {offsets = [0, 0], sizes = [8, 128], strides = [1, 1]} : vector<8x384xf32> to vector<8x128xf32>
    %302 = vector.extract_strided_slice %300 {offsets = [0, 128], sizes = [8, 128], strides = [1, 1]} : vector<8x384xf32> to vector<8x128xf32>
    %303 = vector.extract_strided_slice %300 {offsets = [0, 256], sizes = [8, 128], strides = [1, 1]} : vector<8x384xf32> to vector<8x128xf32>
    %304 = vector.extract_strided_slice %294 {offsets = [0, 384], sizes = [8, 128], strides = [1, 1]} : vector<8x512xf32> to vector<8x128xf32>
    %305 = math.tanh %304 : vector<8x128xf32>
    %306 = arith.mulf %302, %289 : vector<8x128xf32>
    %307 = arith.mulf %301, %305 : vector<8x128xf32>
    %308 = arith.addf %306, %307 : vector<8x128xf32>
    %c0_133 = arith.constant 0 : index
    %c0_134 = arith.constant 0 : index
    %309 = vector.load %arg16[%c0_133, %c0_134] : memref<8x128xf32, #tpu.memory_space<vmem>>, vector<8x128xf32>
    tpu.vector_store %arg16[%c0_133, %c0_134], %308 {strides = array<i32>} : memref<8x128xf32, #tpu.memory_space<vmem>>, vector<8x128xf32>,
    %310 = math.tanh %308 : vector<8x128xf32>
    %311 = arith.mulf %303, %310 : vector<8x128xf32>
    %312 = arith.truncf %311 : vector<8x128xf32> to vector<8x128xbf16>
    %c0_135 = arith.constant 0 : index
    %c0_136 = arith.constant 0 : index
    %313 = vector.load %arg15[%c0_135, %c0_136] : memref<8x128xbf16, #tpu.memory_space<vmem>>, vector<8x128xbf16>
    tpu.vector_store %arg15[%c0_135, %c0_136], %312 {strides = array<i32>} : memref<8x128xbf16, #tpu.memory_space<vmem>>, vector<8x128xbf16>,
    %c8_i32 = arith.constant 8 : i32
    %c0_i32_137 = arith.constant 0 : i32
    %314 = arith.cmpi eq, %arg1, %c0_i32_137 : i32
    %315 = arith.extui %314 : i1 to i32
    %c0_i32_138 = arith.constant 0 : i32
    %316 = arith.cmpi ne, %315, %c0_i32_138 : i32
    scf.if %316 {
      %c0_139 = arith.constant 0 : index
      %c0_140 = arith.constant 0 : index
      %317 = vector.load %arg15[%c0_139, %c0_140] : memref<8x128xbf16, #tpu.memory_space<vmem>>, vector<8x128xbf16>
      %c0_141 = arith.constant 0 : index
      %c0_142 = arith.constant 0 : index
      %318 = vector.load %arg9[%c0_141, %c0_142] : memref<128x128xbf16, #tpu.memory_space<vmem>>, vector<128x128xbf16>
      %cst_143 = arith.constant dense<0.000000e+00> : vector<8x128xf32>
      %319 = tpu.matmul %317, %318, %cst_143 {dimension_numbers = #tpu.dot_dimension_numbers<[1], [0], [0], [1], [0, 0, 1, 1], [], []>} : vector<8x128xbf16>, vector<128x128xbf16>, vector<8x128xf32> -> vector<8x128xf32>
      %c0_144 = arith.constant 0 : index
      %c0_145 = arith.constant 0 : index
      %320 = vector.load %arg10[%c0_144, %c0_145] : memref<1x128xf32, #tpu.memory_space<vmem>>, vector<1x128xf32>
      %321 = vector.broadcast %320 : vector<1x128xf32> to vector<8x128xf32>
      %322 = arith.addf %319, %321 : vector<8x128xf32>
      %cst_146 = arith.constant 0.000000e+00 : f32
      %323 = vector.broadcast %cst_146 : f32 to vector<8x128xf32>
      %324 = arith.maximumf %322, %323 : vector<8x128xf32>
      %325 = arith.truncf %324 : vector<8x128xf32> to vector<8x128xbf16>
      %c0_147 = arith.constant 0 : index
      %c0_148 = arith.constant 0 : index
      %326 = vector.load %arg11[%c0_147, %c0_148] : memref<128x128xbf16, #tpu.memory_space<vmem>>, vector<128x128xbf16>
      %cst_149 = arith.constant dense<0.000000e+00> : vector<8x128xf32>
      %327 = tpu.matmul %325, %326, %cst_149 {dimension_numbers = #tpu.dot_dimension_numbers<[1], [0], [0], [1], [0, 0, 1, 1], [], []>} : vector<8x128xbf16>, vector<128x128xbf16>, vector<8x128xf32> -> vector<8x128xf32>
      %c0_150 = arith.constant 0 : index
      %c0_151 = arith.constant 0 : index
      %328 = vector.load %arg12[%c0_150, %c0_151] : memref<1x128xf32, #tpu.memory_space<vmem>>, vector<1x128xf32>
      %329 = vector.broadcast %328 : vector<1x128xf32> to vector<8x128xf32>
      %330 = arith.addf %327, %329 : vector<8x128xf32>
      %c0_152 = arith.constant 0 : index
      %c0_153 = arith.constant 0 : index
      %331 = vector.load %arg13[%c0_152, %c0_153] : memref<8x128xf32, #tpu.memory_space<vmem>>, vector<8x128xf32>
      tpu.vector_store %arg13[%c0_152, %c0_153], %330 {strides = array<i32>} : memref<8x128xf32, #tpu.memory_space<vmem>>, vector<8x128xf32>,
    } else {
    }
    return
  }
  func.func @transform_0(%arg0: i32, %arg1: i32) -> (i32, i32, i32) {
    %c0_i32 = arith.constant 0 : i32
    %c0_i32_0 = arith.constant 0 : i32
    return %arg1, %arg0, %c0_i32 : i32, i32, i32
  }
  func.func @transform_1(%arg0: i32, %arg1: i32) -> (i32, i32, i32) {
    %c0_i32 = arith.constant 0 : i32
    %c0_i32_0 = arith.constant 0 : i32
    return %arg1, %arg0, %c0_i32 : i32, i32, i32
  }
  func.func @transform_2(%arg0: i32, %arg1: i32) -> (i32, i32) {
    %c0_i32 = arith.constant 0 : i32
    %c0_i32_0 = arith.constant 0 : i32
    %c0_i32_1 = arith.constant 0 : i32
    return %c0_i32, %c0_i32_0 : i32, i32
  }
  func.func @transform_3(%arg0: i32, %arg1: i32) -> (i32, i32) {
    %c0_i32 = arith.constant 0 : i32
    %c0_i32_0 = arith.constant 0 : i32
    %c0_i32_1 = arith.constant 0 : i32
    return %c0_i32, %c0_i32_0 : i32, i32
  }
  func.func @transform_4(%arg0: i32, %arg1: i32) -> (i32, i32) {
    %c0_i32 = arith.constant 0 : i32
    %c0_i32_0 = arith.constant 0 : i32
    %c0_i32_1 = arith.constant 0 : i32
    return %c0_i32, %c0_i32_0 : i32, i32
  }
  func.func @transform_5(%arg0: i32, %arg1: i32) -> (i32, i32) {
    %c0_i32 = arith.constant 0 : i32
    %c0_i32_0 = arith.constant 0 : i32
    %c0_i32_1 = arith.constant 0 : i32
    return %c0_i32, %c0_i32_0 : i32, i32
  }
  func.func @transform_6(%arg0: i32, %arg1: i32) -> (i32, i32) {
    %c0_i32 = arith.constant 0 : i32
    %c0_i32_0 = arith.constant 0 : i32
    %c0_i32_1 = arith.constant 0 : i32
    return %c0_i32, %c0_i32_0 : i32, i32
  }
  func.func @transform_7(%arg0: i32, %arg1: i32) -> (i32, i32) {
    %c0_i32 = arith.constant 0 : i32
    %c0_i32_0 = arith.constant 0 : i32
    %c0_i32_1 = arith.constant 0 : i32
    return %c0_i32, %c0_i32_0 : i32, i32
  }
  func.func @transform_8(%arg0: i32, %arg1: i32) -> (i32, i32) {
    %c0_i32 = arith.constant 0 : i32
    %c0_i32_0 = arith.constant 0 : i32
    %c0_i32_1 = arith.constant 0 : i32
    return %c0_i32, %c0_i32_0 : i32, i32
  }
  func.func @transform_9(%arg0: i32, %arg1: i32) -> (i32, i32) {
    %c0_i32 = arith.constant 0 : i32
    %c0_i32_0 = arith.constant 0 : i32
    %c0_i32_1 = arith.constant 0 : i32
    return %c0_i32, %c0_i32_0 : i32, i32
  }
  func.func @transform_10(%arg0: i32, %arg1: i32) -> (i32, i32) {
    %c0_i32 = arith.constant 0 : i32
    %c0_i32_0 = arith.constant 0 : i32
    %c0_i32_1 = arith.constant 0 : i32
    return %c0_i32, %c0_i32_0 : i32, i32
  }
  func.func @transform_11(%arg0: i32, %arg1: i32) -> (i32, i32) {
    %c0_i32 = arith.constant 0 : i32
    %c0_i32_0 = arith.constant 0 : i32
    return %arg0, %c0_i32 : i32, i32
  }
}

</mosaic_0001>

<llo_original>
// kernel: tpu_custom_call.1
$region0: #{tpu_custom_call.1}
  #allocation0 [shape = 'u32[]', space=smem, size = 0x4, offset = 0x4, fixed_abs, tag = 'smem constant byte address 0x4 - core index']
  #allocation1 [shape = 'u32[72,128]{1,0:T(1,128)}', space=vmem, size = 0x9000, scoped, tag = 'internal scratch']
  #allocation2 [shape = 'f32[8,8,512]{2,1,0:T(8,128)}', space=vmem, size = 0x20000, scoped, tag = 'scratch operand']
  #allocation3 [shape = 'bf16[8,128]{1,0:T(8,128)(2,1)}', space=vmem, size = 0x800, scoped, tag = 'scratch operand']
  #allocation4 [shape = 'f32[8,128]{1,0:T(8,128)}', space=vmem, size = 0x1000, scoped, tag = 'scratch operand']
  %s0 = inlined_call_operand.hbm [shape: bf16[8,8,128], index: 0, kind: input, shape index: {}]
  %s1 = inlined_call_operand.vmem [shape: f32[8,8,1], index: 1, kind: input, shape index: {}]
  %s2 = inlined_call_operand.hbm [shape: bf16[128,512], index: 2, kind: input, shape index: {}]
  %s3 = inlined_call_operand.vmem [shape: f32[1,512], index: 3, kind: input, shape index: {}]
  %s4 = inlined_call_operand.hbm [shape: bf16[128,512], index: 4, kind: input, shape index: {}]
  %s5 = inlined_call_operand.vmem [shape: bf16[128,128], index: 5, kind: input, shape index: {}]
  %s6 = inlined_call_operand.vmem [shape: f32[1,128], index: 6, kind: input, shape index: {}]
  %s7 = inlined_call_operand.hbm [shape: bf16[128,128], index: 7, kind: input, shape index: {}]
  %s8 = inlined_call_operand.vmem [shape: f32[1,128], index: 8, kind: input, shape index: {}]
  %s9 = inlined_call_operand.hbm [shape: bf16[128,128], index: 9, kind: input, shape index: {}]
  %s10 = inlined_call_operand.vmem [shape: f32[1,128], index: 10, kind: input, shape index: {}]
  %s11 = inlined_call_operand.hbm [shape: f32[8,128], index: 11, kind: output, shape index: {}]
  %s12 = sld [smem:[#allocation0]]
  $region82: #{tpu_custom_call.1} parent=0
    _
  %s14 = ssub.s32 1, %s12
  %s15 = scalar_select 0, %s14, %s12
  $region1: #{tpu_custom_call.1} parent=0
    #allocation5 [shape = 'u8[16384]{0}', space=vmem, size = 0x4000, scoped, tag = 'input window, operand 0, single buffered']
    #allocation6 [shape = 's32[1]{0}', space=sflag, size = 0x4, scoped, tag = 'scoped memory for tpu_custom_call.1']
    #allocation7 [shape = 's32[1]{0}', space=sflag, size = 0x4, scoped, tag = 'scoped memory for tpu_custom_call.1']
    #allocation8 [shape = 'u8[131072]{0}', space=vmem, size = 0x20000, scoped, tag = 'input window, operand 2, single buffered']
    #allocation9 [shape = 's32[1]{0}', space=sflag, size = 0x4, scoped, tag = 'scoped memory for tpu_custom_call.1']
    #allocation10 [shape = 'u8[131072]{0}', space=vmem, size = 0x20000, scoped, tag = 'input window, operand 4, single buffered']
    #allocation11 [shape = 'u8[32768]{0}', space=vmem, size = 0x8000, scoped, tag = 'input window, operand 7, single buffered']
    #allocation12 [shape = 's32[1]{0}', space=sflag, size = 0x4, scoped, tag = 'scoped memory for tpu_custom_call.1']
    #allocation13 [shape = 'u8[32768]{0}', space=vmem, size = 0x8000, scoped, tag = 'input window, operand 9, single buffered']
    #allocation14 [shape = 'u8[4096]{0}', space=vmem, size = 0x1000, scoped, tag = 'output window, operand 0, single buffered']
    %16 = vsyncpa [#allocation6], 0
    %17 = vsyncpa [#allocation9], 0
    %18 = vsyncpa [#allocation12], 0
    %19 = vsyncpa [#allocation7], 0
    // Predicated region
    $region2: #{tpu_custom_call.1} parent=1 // pred_check
      _
    $region3: #{tpu_custom_call.1} parent=1 // pred_check_branch
      %21 = sbr.rel (0) target = $region5
    $region4: #{tpu_custom_call.1} parent=1 // pred_region
      %23 = vsyncadd [#allocation6], 0
      %s24 = sshll.u32 %s0, 4
      %s25 = int_to_ptr.hbm [resolvable:$true] %s24
      %s26 = sshll.u32 [#allocation5], 4
      %s27 = int_to_ptr.vmem [resolvable:$true] %s26
      %32 = dma.hbm_to_vmem [thread:$0]  %s25, 512, %s27, [#allocation6], 64, 64, 4
    $region5: #{tpu_custom_call.1} parent=1 // pred_fallthru
      _
    // Predicated region
    $region6: #{tpu_custom_call.1} parent=1 // pred_check
      _
    $region7: #{tpu_custom_call.1} parent=1 // pred_check_branch
      %34 = sbr.rel (0) target = $region9
    $region8: #{tpu_custom_call.1} parent=1 // pred_region
      _
    $region9: #{tpu_custom_call.1} parent=1 // pred_fallthru
      _
    // Predicated region
    $region10: #{tpu_custom_call.1} parent=1 // pred_check
      _
    $region11: #{tpu_custom_call.1} parent=1 // pred_check_branch
      %36 = sbr.rel (0) target = $region13
    $region12: #{tpu_custom_call.1} parent=1 // pred_region
      %38 = vsyncadd [#allocation9], 0
      %s39 = sshll.u32 %s2, 4
      %s40 = int_to_ptr.hbm [resolvable:$true] %s39
      %s41 = sshll.u32 [#allocation8], 4
      %s42 = int_to_ptr.vmem [resolvable:$true] %s41
      %47 = dma.hbm_to_vmem [thread:$0]  %s40, 4096, %s42, [#allocation9], 256, 256, 16
    $region13: #{tpu_custom_call.1} parent=1 // pred_fallthru
      _
    // Predicated region
    $region14: #{tpu_custom_call.1} parent=1 // pred_check
      _
    $region15: #{tpu_custom_call.1} parent=1 // pred_check_branch
      %49 = sbr.rel (0) target = $region17
    $region16: #{tpu_custom_call.1} parent=1 // pred_region
      _
    $region17: #{tpu_custom_call.1} parent=1 // pred_fallthru
      _
    // Predicated region
    $region18: #{tpu_custom_call.1} parent=1 // pred_check
      _
    $region19: #{tpu_custom_call.1} parent=1 // pred_check_branch
      %51 = sbr.rel (0) target = $region21
    $region20: #{tpu_custom_call.1} parent=1 // pred_region
      %53 = vsyncadd [#allocation9], 0
      %s54 = sshll.u32 %s4, 4
      %s55 = int_to_ptr.hbm [resolvable:$true] %s54
      %s56 = sshll.u32 [#allocation10], 4
      %s57 = int_to_ptr.vmem [resolvable:$true] %s56
      %62 = dma.hbm_to_vmem [thread:$0]  %s55, 4096, %s57, [#allocation9], 256, 256, 16
    $region21: #{tpu_custom_call.1} parent=1 // pred_fallthru
      _
    // Predicated region
    $region22: #{tpu_custom_call.1} parent=1 // pred_check
      _
    $region23: #{tpu_custom_call.1} parent=1 // pred_check_branch
      %64 = sbr.rel (0) target = $region25
    $region24: #{tpu_custom_call.1} parent=1 // pred_region
      _
    $region25: #{tpu_custom_call.1} parent=1 // pred_fallthru
      _
    // Predicated region
    $region26: #{tpu_custom_call.1} parent=1 // pred_check
      _
    $region27: #{tpu_custom_call.1} parent=1 // pred_check_branch
      %66 = sbr.rel (0) target = $region29
    $region28: #{tpu_custom_call.1} parent=1 // pred_region
      _
    $region29: #{tpu_custom_call.1} parent=1 // pred_fallthru
      _
    // Predicated region
    $region30: #{tpu_custom_call.1} parent=1 // pred_check
      _
    $region31: #{tpu_custom_call.1} parent=1 // pred_check_branch
      %68 = sbr.rel (0) target = $region33
    $region32: #{tpu_custom_call.1} parent=1 // pred_region
      %70 = vsyncadd [#allocation12], 0
      %s71 = sshll.u32 %s7, 4
      %s72 = int_to_ptr.hbm [resolvable:$true] %s71
      %s73 = sshll.u32 [#allocation11], 4
      %s74 = int_to_ptr.vmem [resolvable:$true] %s73
      %79 = dma.hbm_to_vmem [thread:$0]  %s72, 1024, %s74, [#allocation12], 64, 64, 4
    $region33: #{tpu_custom_call.1} parent=1 // pred_fallthru
      _
    // Predicated region
    $region34: #{tpu_custom_call.1} parent=1 // pred_check
      _
    $region35: #{tpu_custom_call.1} parent=1 // pred_check_branch
      %81 = sbr.rel (0) target = $region37
    $region36: #{tpu_custom_call.1} parent=1 // pred_region
      _
    $region37: #{tpu_custom_call.1} parent=1 // pred_fallthru
      _
    // Predicated region
    $region38: #{tpu_custom_call.1} parent=1 // pred_check
      _
    $region39: #{tpu_custom_call.1} parent=1 // pred_check_branch
      %83 = sbr.rel (0) target = $region41
    $region40: #{tpu_custom_call.1} parent=1 // pred_region
      %85 = vsyncadd [#allocation12], 0
      %s86 = sshll.u32 %s9, 4
      %s87 = int_to_ptr.hbm [resolvable:$true] %s86
      %s88 = sshll.u32 [#allocation13], 4
      %s89 = int_to_ptr.vmem [resolvable:$true] %s88
      %94 = dma.hbm_to_vmem [thread:$0]  %s87, 1024, %s89, [#allocation12], 64, 64, 4
    $region41: #{tpu_custom_call.1} parent=1 // pred_fallthru
      _
    // Predicated region
    $region42: #{tpu_custom_call.1} parent=1 // pred_check
      _
    $region43: #{tpu_custom_call.1} parent=1 // pred_check_branch
      %96 = sbr.rel (0) target = $region45
    $region44: #{tpu_custom_call.1} parent=1 // pred_region
      _
    $region45: #{tpu_custom_call.1} parent=1 // pred_fallthru
      _
    // Predicated region
    $region46: #{tpu_custom_call.1} parent=1 // pred_check
      _
    $region47: #{tpu_custom_call.1} parent=1 // pred_check_branch
      %98 = sbr.rel (0) target = $region49
    $region48: #{tpu_custom_call.1} parent=1 // pred_region
      %100 = dma.done [#allocation6], 512
    $region49: #{tpu_custom_call.1} parent=1 // pred_fallthru
      _
    // Predicated region
    $region50: #{tpu_custom_call.1} parent=1 // pred_check
      _
    $region51: #{tpu_custom_call.1} parent=1 // pred_check_branch
      %102 = sbr.rel (0) target = $region53
    $region52: #{tpu_custom_call.1} parent=1 // pred_region
      %104 = dma.done [#allocation9], 4096
    $region53: #{tpu_custom_call.1} parent=1 // pred_fallthru
      _
    // Predicated region
    $region54: #{tpu_custom_call.1} parent=1 // pred_check
      _
    $region55: #{tpu_custom_call.1} parent=1 // pred_check_branch
      %106 = sbr.rel (0) target = $region57
    $region56: #{tpu_custom_call.1} parent=1 // pred_region
      %108 = dma.done [#allocation9], 4096
    $region57: #{tpu_custom_call.1} parent=1 // pred_fallthru
      _
    // Predicated region
    $region58: #{tpu_custom_call.1} parent=1 // pred_check
      _
    $region59: #{tpu_custom_call.1} parent=1 // pred_check_branch
      %110 = sbr.rel (0) target = $region61
    $region60: #{tpu_custom_call.1} parent=1 // pred_region
      %112 = dma.done [#allocation12], 1024
    $region61: #{tpu_custom_call.1} parent=1 // pred_fallthru
      _
    // Predicated region
    $region62: #{tpu_custom_call.1} parent=1 // pred_check
      _
    $region63: #{tpu_custom_call.1} parent=1 // pred_check_branch
      %114 = sbr.rel (0) target = $region65
    $region64: #{tpu_custom_call.1} parent=1 // pred_region
      %116 = dma.done [#allocation12], 1024
    $region65: #{tpu_custom_call.1} parent=1 // pred_fallthru
      _
    %p118 = scmp.eq.s32.totalorder 0, 0
    // Predicated region
    $region66: #{tpu_custom_call.1} parent=1 // pred_check
      %p119 = pneg %p118
    $region67: #{tpu_custom_call.1} parent=1 // pred_check_branch
      %121 = sbr.rel (%p119) target = $region69
    $region68: #{tpu_custom_call.1} parent=1 // pred_region
      %122 = vst [vmem:[#allocation3] sm:$0xf] 0
      %123 = vst [vmem:[#allocation4] sm:$0xff] 0.0
    $region69: #{tpu_custom_call.1} parent=1 // pred_fallthru
      _
    %v124 = vld [vmem:[#allocation5] sm:$0xf]
    %v125 = vld [vmem:[#allocation5 + $0x4] sm:$0xf]
    %v126 = vld [vmem:[#allocation5 + $0x8] sm:$0xf]
    %v127 = vld [vmem:[#allocation5 + $0xc] sm:$0xf]
    %v128 = vld [vmem:[#allocation5 + $0x10] sm:$0xf]
    %v129 = vld [vmem:[#allocation5 + $0x14] sm:$0xf]
    %v130 = vld [vmem:[#allocation5 + $0x18] sm:$0xf]
    %v131 = vld [vmem:[#allocation5 + $0x1c] sm:$0xf]
    %v132 = vld [vmem:[#allocation8] sm:$0xff]
    %v133 = vld [vmem:[#allocation8 + $0x8] sm:$0xff]
    %v134 = vld [vmem:[#allocation8 + $0x10] sm:$0xff]
    %v135 = vld [vmem:[#allocation8 + $0x18] sm:$0xff]
    %v136 = vld [vmem:[#allocation8 + $0x20] sm:$0xff]
    %v137 = vld [vmem:[#allocation8 + $0x28] sm:$0xff]
    %v138 = vld [vmem:[#allocation8 + $0x30] sm:$0xff]
    %v139 = vld [vmem:[#allocation8 + $0x38] sm:$0xff]
    %v140 = vld [vmem:[#allocation8 + $0x40] sm:$0xff]
    %v141 = vld [vmem:[#allocation8 + $0x48] sm:$0xff]
    %v142 = vld [vmem:[#allocation8 + $0x50] sm:$0xff]
    %v143 = vld [vmem:[#allocation8 + $0x58] sm:$0xff]
    %v144 = vld [vmem:[#allocation8 + $0x60] sm:$0xff]
    %v145 = vld [vmem:[#allocation8 + $0x68] sm:$0xff]
    %v146 = vld [vmem:[#allocation8 + $0x70] sm:$0xff]
    %v147 = vld [vmem:[#allocation8 + $0x78] sm:$0xff]
    %v148 = vld [vmem:[#allocation8 + $0x80] sm:$0xff]
    %v149 = vld [vmem:[#allocation8 + $0x88] sm:$0xff]
    %v150 = vld [vmem:[#allocation8 + $0x90] sm:$0xff]
    %v151 = vld [vmem:[#allocation8 + $0x98] sm:$0xff]
    %v152 = vld [vmem:[#allocation8 + $0xa0] sm:$0xff]
    %v153 = vld [vmem:[#allocation8 + $0xa8] sm:$0xff]
    %v154 = vld [vmem:[#allocation8 + $0xb0] sm:$0xff]
    %v155 = vld [vmem:[#allocation8 + $0xb8] sm:$0xff]
    %v156 = vld [vmem:[#allocation8 + $0xc0] sm:$0xff]
    %v157 = vld [vmem:[#allocation8 + $0xc8] sm:$0xff]
    %v158 = vld [vmem:[#allocation8 + $0xd0] sm:$0xff]
    %v159 = vld [vmem:[#allocation8 + $0xd8] sm:$0xff]
    %v160 = vld [vmem:[#allocation8 + $0xe0] sm:$0xff]
    %v161 = vld [vmem:[#allocation8 + $0xe8] sm:$0xff]
    %v162 = vld [vmem:[#allocation8 + $0xf0] sm:$0xff]
    %v163 = vld [vmem:[#allocation8 + $0xf8] sm:$0xff]
    %v172 = vunpack.c.l.b16 %v124
    %v173 = vunpack.c.l.b16 %v125
    %v174 = vunpack.c.l.b16 %v126
    %v175 = vunpack.c.l.b16 %v127
    %v176 = vunpack.c.l.b16 %v128
    %v177 = vunpack.c.l.b16 %v129
    %v178 = vunpack.c.l.b16 %v130
    %v179 = vunpack.c.l.b16 %v131
    %v180 = vpack.c.b16 %v173, %v172
    %v181 = vpack.c.b16 %v175, %v174
    %v182 = vpack.c.b16 %v177, %v176
    %v183 = vpack.c.b16 %v179, %v178
    %v220 = vunpack.c.l.b16 %v132
    %v221 = vunpack.c.h.b16 %v132
    %v222 = vunpack.c.l.b16 %v133
    %v223 = vunpack.c.h.b16 %v133
    %v224 = vunpack.c.l.b16 %v134
    %v225 = vunpack.c.h.b16 %v134
    %v226 = vunpack.c.l.b16 %v135
    %v227 = vunpack.c.h.b16 %v135
    %v228 = vunpack.c.l.b16 %v136
    %v229 = vunpack.c.h.b16 %v136
    %v230 = vunpack.c.l.b16 %v137
    %v231 = vunpack.c.h.b16 %v137
    %v232 = vunpack.c.l.b16 %v138
    %v233 = vunpack.c.h.b16 %v138
    %v234 = vunpack.c.l.b16 %v139
    %v235 = vunpack.c.h.b16 %v139
    %v236 = vunpack.c.l.b16 %v140
    %v237 = vunpack.c.h.b16 %v140
    %v238 = vunpack.c.l.b16 %v141
    %v239 = vunpack.c.h.b16 %v141
    %v240 = vunpack.c.l.b16 %v142
    %v241 = vunpack.c.h.b16 %v142
    %v242 = vunpack.c.l.b16 %v143
    %v243 = vunpack.c.h.b16 %v143
    %v244 = vunpack.c.l.b16 %v144
    %v245 = vunpack.c.h.b16 %v144
    %v246 = vunpack.c.l.b16 %v145
    %v247 = vunpack.c.h.b16 %v145
    %v248 = vunpack.c.l.b16 %v146
    %v249 = vunpack.c.h.b16 %v146
    %v250 = vunpack.c.l.b16 %v147
    %v251 = vunpack.c.h.b16 %v147
    %v252 = vunpack.c.l.b16 %v148
    %v253 = vunpack.c.h.b16 %v148
    %v254 = vunpack.c.l.b16 %v149
    %v255 = vunpack.c.h.b16 %v149
    %v256 = vunpack.c.l.b16 %v150
    %v257 = vunpack.c.h.b16 %v150
    %v258 = vunpack.c.l.b16 %v151
    %v259 = vunpack.c.h.b16 %v151
    %v260 = vunpack.c.l.b16 %v152
    %v261 = vunpack.c.h.b16 %v152
    %v262 = vunpack.c.l.b16 %v153
    %v263 = vunpack.c.h.b16 %v153
    %v264 = vunpack.c.l.b16 %v154
    %v265 = vunpack.c.h.b16 %v154
    %v266 = vunpack.c.l.b16 %v155
    %v267 = vunpack.c.h.b16 %v155
    %v268 = vunpack.c.l.b16 %v156
    %v269 = vunpack.c.h.b16 %v156
    %v270 = vunpack.c.l.b16 %v157
    %v271 = vunpack.c.h.b16 %v157
    %v272 = vunpack.c.l.b16 %v158
    %v273 = vunpack.c.h.b16 %v158
    %v274 = vunpack.c.l.b16 %v159
    %v275 = vunpack.c.h.b16 %v159
    %v276 = vunpack.c.l.b16 %v160
    %v277 = vunpack.c.h.b16 %v160
    %v278 = vunpack.c.l.b16 %v161
    %v279 = vunpack.c.h.b16 %v161
    %v280 = vunpack.c.l.b16 %v162
    %v281 = vunpack.c.h.b16 %v162
    %v282 = vunpack.c.l.b16 %v163
    %v283 = vunpack.c.h.b16 %v163
    %v284 = vpack.c.b16 %v224, %v220
    %v285 = vpack.c.b16 %v225, %v221
    %v286 = vpack.c.b16 %v226, %v222
    %v287 = vpack.c.b16 %v227, %v223
    %v288 = vpack.c.b16 %v232, %v228
    %v289 = vpack.c.b16 %v233, %v229
    %v290 = vpack.c.b16 %v234, %v230
    %v291 = vpack.c.b16 %v235, %v231
    %v292 = vpack.c.b16 %v240, %v236
    %v293 = vpack.c.b16 %v241, %v237
    %v294 = vpack.c.b16 %v242, %v238
    %v295 = vpack.c.b16 %v243, %v239
    %v296 = vpack.c.b16 %v248, %v244
    %v297 = vpack.c.b16 %v249, %v245
    %v298 = vpack.c.b16 %v250, %v246
    %v299 = vpack.c.b16 %v251, %v247
    %v300 = vpack.c.b16 %v256, %v252
    %v301 = vpack.c.b16 %v257, %v253
    %v302 = vpack.c.b16 %v258, %v254
    %v303 = vpack.c.b16 %v259, %v255
    %v304 = vpack.c.b16 %v264, %v260
    %v305 = vpack.c.b16 %v265, %v261
    %v306 = vpack.c.b16 %v266, %v262
    %v307 = vpack.c.b16 %v267, %v263
    %v308 = vpack.c.b16 %v272, %v268
    %v309 = vpack.c.b16 %v273, %v269
    %v310 = vpack.c.b16 %v274, %v270
    %v311 = vpack.c.b16 %v275, %v271
    %v312 = vpack.c.b16 %v280, %v276
    %v313 = vpack.c.b16 %v281, %v277
    %v314 = vpack.c.b16 %v282, %v278
    %v315 = vpack.c.b16 %v283, %v279
    %348 = vmatpush.bf16.msra.mxu0 %v312
    %349 = vmatpush.bf16.msra.mxu0 %v308
    %350 = vmatpush.bf16.msra.mxu0 %v304
    %351 = vmatpush.bf16.msra.mxu0 %v300
    %352 = vmatpush.bf16.msra.mxu0 %v296
    %353 = vmatpush.bf16.msra.mxu0 %v292
    %354 = vmatpush.bf16.msra.mxu0 %v288
    %355 = vmatpush.bf16.msra.mxu0 %v284
    %356 = vmatmul.bf16.gmra.mxu0 %v180
    %v357 = vpop.f32.mrf.mxu0
    %v358 = vadd.f32 0.0, %v357
    %v359 = vpop.f32.mrf.mxu0
    %v360 = vadd.f32 0.0, %v359
    %361 = vmatmul.bf16.gmra.mxu0 %v181
    %v362 = vpop.f32.mrf.mxu0
    %v363 = vadd.f32 0.0, %v362
    %v364 = vpop.f32.mrf.mxu0
    %v365 = vadd.f32 0.0, %v364
    %366 = vmatmul.bf16.gmra.mxu0 %v182
    %v367 = vpop.f32.mrf.mxu0
    %v368 = vadd.f32 0.0, %v367
    %v369 = vpop.f32.mrf.mxu0
    %v370 = vadd.f32 0.0, %v369
    %371 = vmatmul.bf16.gmra.mxu0 %v183
    %v372 = vpop.f32.mrf.mxu0
    %v373 = vadd.f32 0.0, %v372
    %v374 = vpop.f32.mrf.mxu0
    %v375 = vadd.f32 0.0, %v374
    %376 = vdwg.mxu0
    %377 = vmatpush.bf16.msra.mxu0 %v313
    %378 = vmatpush.bf16.msra.mxu0 %v309
    %379 = vmatpush.bf16.msra.mxu0 %v305
    %380 = vmatpush.bf16.msra.mxu0 %v301
    %381 = vmatpush.bf16.msra.mxu0 %v297
    %382 = vmatpush.bf16.msra.mxu0 %v293
    %383 = vmatpush.bf16.msra.mxu0 %v289
    %384 = vmatpush.bf16.msra.mxu0 %v285
    %385 = vmatmul.bf16.gmra.mxu0 %v180
    %v386 = vpop.f32.mrf.mxu0
    %v387 = vadd.f32 0.0, %v386
    %v388 = vpop.f32.mrf.mxu0
    %v389 = vadd.f32 0.0, %v388
    %390 = vmatmul.bf16.gmra.mxu0 %v181
    %v391 = vpop.f32.mrf.mxu0
    %v392 = vadd.f32 0.0, %v391
    %v393 = vpop.f32.mrf.mxu0
    %v394 = vadd.f32 0.0, %v393
    %395 = vmatmul.bf16.gmra.mxu0 %v182
    %v396 = vpop.f32.mrf.mxu0
    %v397 = vadd.f32 0.0, %v396
    %v398 = vpop.f32.mrf.mxu0
    %v399 = vadd.f32 0.0, %v398
    %400 = vmatmul.bf16.gmra.mxu0 %v183
    %v401 = vpop.f32.mrf.mxu0
    %v402 = vadd.f32 0.0, %v401
    %v403 = vpop.f32.mrf.mxu0
    %v404 = vadd.f32 0.0, %v403
    %405 = vdwg.mxu0
    %406 = vmatpush.bf16.msra.mxu0 %v314
    %407 = vmatpush.bf16.msra.mxu0 %v310
    %408 = vmatpush.bf16.msra.mxu0 %v306
    %409 = vmatpush.bf16.msra.mxu0 %v302
    %410 = vmatpush.bf16.msra.mxu0 %v298
    %411 = vmatpush.bf16.msra.mxu0 %v294
    %412 = vmatpush.bf16.msra.mxu0 %v290
    %413 = vmatpush.bf16.msra.mxu0 %v286
    %414 = vmatmul.bf16.gmra.mxu0 %v180
    %v415 = vpop.f32.mrf.mxu0
    %v416 = vadd.f32 0.0, %v415
    %v417 = vpop.f32.mrf.mxu0
    %v418 = vadd.f32 0.0, %v417
    %419 = vmatmul.bf16.gmra.mxu0 %v181
    %v420 = vpop.f32.mrf.mxu0
    %v421 = vadd.f32 0.0, %v420
    %v422 = vpop.f32.mrf.mxu0
    %v423 = vadd.f32 0.0, %v422
    %424 = vmatmul.bf16.gmra.mxu0 %v182
    %v425 = vpop.f32.mrf.mxu0
    %v426 = vadd.f32 0.0, %v425
    %v427 = vpop.f32.mrf.mxu0
    %v428 = vadd.f32 0.0, %v427
    %429 = vmatmul.bf16.gmra.mxu0 %v183
    %v430 = vpop.f32.mrf.mxu0
    %v431 = vadd.f32 0.0, %v430
    %v432 = vpop.f32.mrf.mxu0
    %v433 = vadd.f32 0.0, %v432
    %434 = vdwg.mxu0
    %435 = vmatpush.bf16.msra.mxu0 %v315
    %436 = vmatpush.bf16.msra.mxu0 %v311
    %437 = vmatpush.bf16.msra.mxu0 %v307
    %438 = vmatpush.bf16.msra.mxu0 %v303
    %439 = vmatpush.bf16.msra.mxu0 %v299
    %440 = vmatpush.bf16.msra.mxu0 %v295
    %441 = vmatpush.bf16.msra.mxu0 %v291
    %442 = vmatpush.bf16.msra.mxu0 %v287
    %443 = vmatmul.bf16.gmra.mxu0 %v180
    %v444 = vpop.f32.mrf.mxu0
    %v445 = vadd.f32 0.0, %v444
    %v446 = vpop.f32.mrf.mxu0
    %v447 = vadd.f32 0.0, %v446
    %448 = vmatmul.bf16.gmra.mxu0 %v181
    %v449 = vpop.f32.mrf.mxu0
    %v450 = vadd.f32 0.0, %v449
    %v451 = vpop.f32.mrf.mxu0
    %v452 = vadd.f32 0.0, %v451
    %453 = vmatmul.bf16.gmra.mxu0 %v182
    %v454 = vpop.f32.mrf.mxu0
    %v455 = vadd.f32 0.0, %v454
    %v456 = vpop.f32.mrf.mxu0
    %v457 = vadd.f32 0.0, %v456
    %458 = vmatmul.bf16.gmra.mxu0 %v183
    %v459 = vpop.f32.mrf.mxu0
    %v460 = vadd.f32 0.0, %v459
    %v461 = vpop.f32.mrf.mxu0
    %v462 = vadd.f32 0.0, %v461
    %463 = vdwg.mxu0
    %v464 = vld [vmem:[%s3] sm:$0xf]
    %v466 = vperm.slane %v464, 0
    %v467 = vperm.slane %v464, 1
    %v468 = vperm.slane %v464, 2
    %v469 = vperm.slane %v464, 3
    %v474 = vadd.f32 %v358, %v466
    %v475 = vadd.f32 %v387, %v467
    %v476 = vadd.f32 %v416, %v468
    %v477 = vadd.f32 %v445, %v469
    %v478 = vadd.f32 %v360, %v466
    %v479 = vadd.f32 %v389, %v467
    %v480 = vadd.f32 %v418, %v468
    %v481 = vadd.f32 %v447, %v469
    %v482 = vadd.f32 %v363, %v466
    %v483 = vadd.f32 %v392, %v467
    %v484 = vadd.f32 %v421, %v468
    %v485 = vadd.f32 %v450, %v469
    %v486 = vadd.f32 %v365, %v466
    %v487 = vadd.f32 %v394, %v467
    %v488 = vadd.f32 %v423, %v468
    %v489 = vadd.f32 %v452, %v469
    %v490 = vadd.f32 %v368, %v466
    %v491 = vadd.f32 %v397, %v467
    %v492 = vadd.f32 %v426, %v468
    %v493 = vadd.f32 %v455, %v469
    %v494 = vadd.f32 %v370, %v466
    %v495 = vadd.f32 %v399, %v467
    %v496 = vadd.f32 %v428, %v468
    %v497 = vadd.f32 %v457, %v469
    %v498 = vadd.f32 %v373, %v466
    %v499 = vadd.f32 %v402, %v467
    %v500 = vadd.f32 %v431, %v468
    %v501 = vadd.f32 %v460, %v469
    %v502 = vadd.f32 %v375, %v466
    %v503 = vadd.f32 %v404, %v467
    %v504 = vadd.f32 %v433, %v468
    %v505 = vadd.f32 %v462, %v469
    %506 = vst [vmem:[#allocation2] sm:$0xff] %v474
    %507 = vst [vmem:[#allocation2 + $0x8] sm:$0xff] %v475
    %508 = vst [vmem:[#allocation2 + $0x10] sm:$0xff] %v476
    %509 = vst [vmem:[#allocation2 + $0x18] sm:$0xff] %v477
    %510 = vst [vmem:[#allocation2 + $0x20] sm:$0xff] %v478
    %511 = vst [vmem:[#allocation2 + $0x28] sm:$0xff] %v479
    %512 = vst [vmem:[#allocation2 + $0x30] sm:$0xff] %v480
    %513 = vst [vmem:[#allocation2 + $0x38] sm:$0xff] %v481
    %514 = vst [vmem:[#allocation2 + $0x40] sm:$0xff] %v482
    %515 = vst [vmem:[#allocation2 + $0x48] sm:$0xff] %v483
    %516 = vst [vmem:[#allocation2 + $0x50] sm:$0xff] %v484
    %517 = vst [vmem:[#allocation2 + $0x58] sm:$0xff] %v485
    %518 = vst [vmem:[#allocation2 + $0x60] sm:$0xff] %v486
    %519 = vst [vmem:[#allocation2 + $0x68] sm:$0xff] %v487
    %520 = vst [vmem:[#allocation2 + $0x70] sm:$0xff] %v488
    %521 = vst [vmem:[#allocation2 + $0x78] sm:$0xff] %v489
    %522 = vst [vmem:[#allocation2 + $0x80] sm:$0xff] %v490
    %523 = vst [vmem:[#allocation2 + $0x88] sm:$0xff] %v491
    %524 = vst [vmem:[#allocation2 + $0x90] sm:$0xff] %v492
    %525 = vst [vmem:[#allocation2 + $0x98] sm:$0xff] %v493
    %526 = vst [vmem:[#allocation2 + $0xa0] sm:$0xff] %v494
    %527 = vst [vmem:[#allocation2 + $0xa8] sm:$0xff] %v495
    %528 = vst [vmem:[#allocation2 + $0xb0] sm:$0xff] %v496
    %529 = vst [vmem:[#allocation2 + $0xb8] sm:$0xff] %v497
    %530 = vst [vmem:[#allocation2 + $0xc0] sm:$0xff] %v498
    %531 = vst [vmem:[#allocation2 + $0xc8] sm:$0xff] %v499
    %532 = vst [vmem:[#allocation2 + $0xd0] sm:$0xff] %v500
    %533 = vst [vmem:[#allocation2 + $0xd8] sm:$0xff] %v501
    %534 = vst [vmem:[#allocation2 + $0xe0] sm:$0xff] %v502
    %535 = vst [vmem:[#allocation2 + $0xe8] sm:$0xff] %v503
    %536 = vst [vmem:[#allocation2 + $0xf0] sm:$0xff] %v504
    %537 = vst [vmem:[#allocation2 + $0xf8] sm:$0xff] %v505
    %v538 = vld [vmem:[#allocation10] sm:$0xff]
    %v539 = vld [vmem:[#allocation10 + $0x8] sm:$0xff]
    %v540 = vld [vmem:[#allocation10 + $0x10] sm:$0xff]
    %v541 = vld [vmem:[#allocation10 + $0x18] sm:$0xff]
    %v542 = vld [vmem:[#allocation10 + $0x20] sm:$0xff]
    %v543 = vld [vmem:[#allocation10 + $0x28] sm:$0xff]
    %v544 = vld [vmem:[#allocation10 + $0x30] sm:$0xff]
    %v545 = vld [vmem:[#allocation10 + $0x38] sm:$0xff]
    %v546 = vld [vmem:[#allocation10 + $0x40] sm:$0xff]
    %v547 = vld [vmem:[#allocation10 + $0x48] sm:$0xff]
    %v548 = vld [vmem:[#allocation10 + $0x50] sm:$0xff]
    %v549 = vld [vmem:[#allocation10 + $0x58] sm:$0xff]
    %v550 = vld [vmem:[#allocation10 + $0x60] sm:$0xff]
    %v551 = vld [vmem:[#allocation10 + $0x68] sm:$0xff]
    %v552 = vld [vmem:[#allocation10 + $0x70] sm:$0xff]
    %v553 = vld [vmem:[#allocation10 + $0x78] sm:$0xff]
    %v554 = vld [vmem:[#allocation10 + $0x80] sm:$0xff]
    %v555 = vld [vmem:[#allocation10 + $0x88] sm:$0xff]
    %v556 = vld [vmem:[#allocation10 + $0x90] sm:$0xff]
    %v557 = vld [vmem:[#allocation10 + $0x98] sm:$0xff]
    %v558 = vld [vmem:[#allocation10 + $0xa0] sm:$0xff]
    %v559 = vld [vmem:[#allocation10 + $0xa8] sm:$0xff]
    %v560 = vld [vmem:[#allocation10 + $0xb0] sm:$0xff]
    %v561 = vld [vmem:[#allocation10 + $0xb8] sm:$0xff]
    %v562 = vld [vmem:[#allocation10 + $0xc0] sm:$0xff]
    %v563 = vld [vmem:[#allocation10 + $0xc8] sm:$0xff]
    %v564 = vld [vmem:[#allocation10 + $0xd0] sm:$0xff]
    %v565 = vld [vmem:[#allocation10 + $0xd8] sm:$0xff]
    %v566 = vld [vmem:[#allocation10 + $0xe0] sm:$0xff]
    %v567 = vld [vmem:[#allocation10 + $0xe8] sm:$0xff]
    %v568 = vld [vmem:[#allocation10 + $0xf0] sm:$0xff]
    %v569 = vld [vmem:[#allocation10 + $0xf8] sm:$0xff]
    %v570 = vld [vmem:[%s5] sm:$0xf]
    %v571 = vld [vmem:[%s5 + $0x4] sm:$0xf]
    %v572 = vld [vmem:[%s5 + $0x8] sm:$0xf]
    %v573 = vld [vmem:[%s5 + $0xc] sm:$0xf]
    %v574 = vld [vmem:[%s5 + $0x10] sm:$0xf]
    %v575 = vld [vmem:[%s5 + $0x14] sm:$0xf]
    %v576 = vld [vmem:[%s5 + $0x18] sm:$0xf]
    %v577 = vld [vmem:[%s5 + $0x1c] sm:$0xf]
    %v578 = vld [vmem:[%s5 + $0x20] sm:$0xf]
    %v579 = vld [vmem:[%s5 + $0x24] sm:$0xf]
    %v580 = vld [vmem:[%s5 + $0x28] sm:$0xf]
    %v581 = vld [vmem:[%s5 + $0x2c] sm:$0xf]
    %v582 = vld [vmem:[%s5 + $0x30] sm:$0xf]
    %v583 = vld [vmem:[%s5 + $0x34] sm:$0xf]
    %v584 = vld [vmem:[%s5 + $0x38] sm:$0xf]
    %v585 = vld [vmem:[%s5 + $0x3c] sm:$0xf]
    %v586 = vld [vmem:[%s6] sm:$0x1]
    %v588 = vperm.slane %v586, 0
    %v590 = vld [vmem:[%s1] sm:$0xff]
    %v591 = vld [vmem:[#allocation3] sm:$0xf]
    %v592 = vld [vmem:[#allocation4] sm:$0xff]
    %v593 = vpack.c.bf16 %v592, %v592
    %v610 = vunpack.c.l.b16 %v570
    %v611 = vunpack.c.l.b16 %v571
    %v612 = vunpack.c.l.b16 %v572
    %v613 = vunpack.c.l.b16 %v573
    %v614 = vunpack.c.l.b16 %v574
    %v615 = vunpack.c.l.b16 %v575
    %v616 = vunpack.c.l.b16 %v576
    %v617 = vunpack.c.l.b16 %v577
    %v618 = vunpack.c.l.b16 %v578
    %v619 = vunpack.c.l.b16 %v579
    %v620 = vunpack.c.l.b16 %v580
    %v621 = vunpack.c.l.b16 %v581
    %v622 = vunpack.c.l.b16 %v582
    %v623 = vunpack.c.l.b16 %v583
    %v624 = vunpack.c.l.b16 %v584
    %v625 = vunpack.c.l.b16 %v585
    %v626 = vpack.c.b16 %v611, %v610
    %v627 = vpack.c.b16 %v613, %v612
    %v628 = vpack.c.b16 %v615, %v614
    %v629 = vpack.c.b16 %v617, %v616
    %v630 = vpack.c.b16 %v619, %v618
    %v631 = vpack.c.b16 %v621, %v620
    %v632 = vpack.c.b16 %v623, %v622
    %v633 = vpack.c.b16 %v625, %v624
    %642 = vmatpush.bf16.msra.mxu0 %v633
    %643 = vmatpush.bf16.msra.mxu0 %v632
    %644 = vmatpush.bf16.msra.mxu0 %v631
    %645 = vmatpush.bf16.msra.mxu0 %v630
    %646 = vmatpush.bf16.msra.mxu0 %v629
    %647 = vmatpush.bf16.msra.mxu0 %v628
    %648 = vmatpush.bf16.msra.mxu0 %v627
    %649 = vmatpush.bf16.msra.mxu0 %v626
    %650 = vmatmul.bf16.gmra.mxu0 %v593
    %v651 = vpop.f32.mrf.mxu0
    %v652 = vadd.f32 %v588, %v651
    %v653 = vpop.f32.mrf.mxu0
    %654 = vdwg.mxu0
    %v655 = vtanh.pop %v652
    %v656 = vsub.f32 %v592, %v655
    %658 = vset.pattern.permute.xlu0 0
    %659 = vperm.xlu0 %658, %v590
    %v660 = vpop.permute.xlu0 %659
    %v662 = vmul.f32 %v660, %v655
    %v663 = vadd.f32 %v656, %v662
    %v664 = vld [vmem:[#allocation2] sm:$0xff]
    %v665 = vld [vmem:[#allocation2 + $0x8] sm:$0xff]
    %v666 = vld [vmem:[#allocation2 + $0x10] sm:$0xff]
    %v667 = vld [vmem:[#allocation2 + $0x18] sm:$0xff]
    %v700 = vunpack.c.l.b16 %v538
    %v701 = vunpack.c.h.b16 %v538
    %v702 = vunpack.c.l.b16 %v539
    %v703 = vunpack.c.h.b16 %v539
    %v704 = vunpack.c.l.b16 %v540
    %v705 = vunpack.c.h.b16 %v540
    %v706 = vunpack.c.l.b16 %v541
    %v707 = vunpack.c.h.b16 %v541
    %v708 = vunpack.c.l.b16 %v542
    %v709 = vunpack.c.h.b16 %v542
    %v710 = vunpack.c.l.b16 %v543
    %v711 = vunpack.c.h.b16 %v543
    %v712 = vunpack.c.l.b16 %v544
    %v713 = vunpack.c.h.b16 %v544
    %v714 = vunpack.c.l.b16 %v545
    %v715 = vunpack.c.h.b16 %v545
    %v716 = vunpack.c.l.b16 %v546
    %v717 = vunpack.c.h.b16 %v546
    %v718 = vunpack.c.l.b16 %v547
    %v719 = vunpack.c.h.b16 %v547
    %v720 = vunpack.c.l.b16 %v548
    %v721 = vunpack.c.h.b16 %v548
    %v722 = vunpack.c.l.b16 %v549
    %v723 = vunpack.c.h.b16 %v549
    %v724 = vunpack.c.l.b16 %v550
    %v725 = vunpack.c.h.b16 %v550
    %v726 = vunpack.c.l.b16 %v551
    %v727 = vunpack.c.h.b16 %v551
    %v728 = vunpack.c.l.b16 %v552
    %v729 = vunpack.c.h.b16 %v552
    %v730 = vunpack.c.l.b16 %v553
    %v731 = vunpack.c.h.b16 %v553
    %v732 = vunpack.c.l.b16 %v554
    %v733 = vunpack.c.h.b16 %v554
    %v734 = vunpack.c.l.b16 %v555
    %v735 = vunpack.c.h.b16 %v555
    %v736 = vunpack.c.l.b16 %v556
    %v737 = vunpack.c.h.b16 %v556
    %v738 = vunpack.c.l.b16 %v557
    %v739 = vunpack.c.h.b16 %v557
    %v740 = vunpack.c.l.b16 %v558
    %v741 = vunpack.c.h.b16 %v558
    %v742 = vunpack.c.l.b16 %v559
    %v743 = vunpack.c.h.b16 %v559
    %v744 = vunpack.c.l.b16 %v560
    %v745 = vunpack.c.h.b16 %v560
    %v746 = vunpack.c.l.b16 %v561
    %v747 = vunpack.c.h.b16 %v561
    %v748 = vunpack.c.l.b16 %v562
    %v749 = vunpack.c.h.b16 %v562
    %v750 = vunpack.c.l.b16 %v563
    %v751 = vunpack.c.h.b16 %v563
    %v752 = vunpack.c.l.b16 %v564
    %v753 = vunpack.c.h.b16 %v564
    %v754 = vunpack.c.l.b16 %v565
    %v755 = vunpack.c.h.b16 %v565
    %v756 = vunpack.c.l.b16 %v566
    %v757 = vunpack.c.h.b16 %v566
    %v758 = vunpack.c.l.b16 %v567
    %v759 = vunpack.c.h.b16 %v567
    %v760 = vunpack.c.l.b16 %v568
    %v761 = vunpack.c.h.b16 %v568
    %v762 = vunpack.c.l.b16 %v569
    %v763 = vunpack.c.h.b16 %v569
    %v764 = vpack.c.b16 %v704, %v700
    %v765 = vpack.c.b16 %v705, %v701
    %v766 = vpack.c.b16 %v706, %v702
    %v767 = vpack.c.b16 %v707, %v703
    %v768 = vpack.c.b16 %v712, %v708
    %v769 = vpack.c.b16 %v713, %v709
    %v770 = vpack.c.b16 %v714, %v710
    %v771 = vpack.c.b16 %v715, %v711
    %v772 = vpack.c.b16 %v720, %v716
    %v773 = vpack.c.b16 %v721, %v717
    %v774 = vpack.c.b16 %v722, %v718
    %v775 = vpack.c.b16 %v723, %v719
    %v776 = vpack.c.b16 %v728, %v724
    %v777 = vpack.c.b16 %v729, %v725
    %v778 = vpack.c.b16 %v730, %v726
    %v779 = vpack.c.b16 %v731, %v727
    %v780 = vpack.c.b16 %v736, %v732
    %v781 = vpack.c.b16 %v737, %v733
    %v782 = vpack.c.b16 %v738, %v734
    %v783 = vpack.c.b16 %v739, %v735
    %v784 = vpack.c.b16 %v744, %v740
    %v785 = vpack.c.b16 %v745, %v741
    %v786 = vpack.c.b16 %v746, %v742
    %v787 = vpack.c.b16 %v747, %v743
    %v788 = vpack.c.b16 %v752, %v748
    %v789 = vpack.c.b16 %v753, %v749
    %v790 = vpack.c.b16 %v754, %v750
    %v791 = vpack.c.b16 %v755, %v751
    %v792 = vpack.c.b16 %v760, %v756
    %v793 = vpack.c.b16 %v761, %v757
    %v794 = vpack.c.b16 %v762, %v758
    %v795 = vpack.c.b16 %v763, %v759
    %828 = vmatpush.bf16.msra.mxu0 %v792
    %829 = vmatpush.bf16.msra.mxu0 %v788
    %830 = vmatpush.bf16.msra.mxu0 %v784
    %831 = vmatpush.bf16.msra.mxu0 %v780
    %832 = vmatpush.bf16.msra.mxu0 %v776
    %833 = vmatpush.bf16.msra.mxu0 %v772
    %834 = vmatpush.bf16.msra.mxu0 %v768
    %835 = vmatpush.bf16.msra.mxu0 %v764
    %836 = vmatmul.bf16.gmra.mxu0 %v591
    %v837 = vpop.f32.mrf.mxu0
    %v838 = vadd.f32 0.0, %v837
    %v839 = vpop.f32.mrf.mxu0
    %840 = vdwg.mxu0
    %841 = vmatpush.bf16.msra.mxu0 %v793
    %842 = vmatpush.bf16.msra.mxu0 %v789
    %843 = vmatpush.bf16.msra.mxu0 %v785
    %844 = vmatpush.bf16.msra.mxu0 %v781
    %845 = vmatpush.bf16.msra.mxu0 %v777
    %846 = vmatpush.bf16.msra.mxu0 %v773
    %847 = vmatpush.bf16.msra.mxu0 %v769
    %848 = vmatpush.bf16.msra.mxu0 %v765
    %849 = vmatmul.bf16.gmra.mxu0 %v591
    %v850 = vpop.f32.mrf.mxu0
    %v851 = vadd.f32 0.0, %v850
    %v852 = vpop.f32.mrf.mxu0
    %853 = vdwg.mxu0
    %854 = vmatpush.bf16.msra.mxu0 %v794
    %855 = vmatpush.bf16.msra.mxu0 %v790
    %856 = vmatpush.bf16.msra.mxu0 %v786
    %857 = vmatpush.bf16.msra.mxu0 %v782
    %858 = vmatpush.bf16.msra.mxu0 %v778
    %859 = vmatpush.bf16.msra.mxu0 %v774
    %860 = vmatpush.bf16.msra.mxu0 %v770
    %861 = vmatpush.bf16.msra.mxu0 %v766
    %862 = vmatmul.bf16.gmra.mxu0 %v591
    %v863 = vpop.f32.mrf.mxu0
    %v864 = vadd.f32 0.0, %v863
    %v865 = vpop.f32.mrf.mxu0
    %866 = vdwg.mxu0
    %867 = vmatpush.bf16.msra.mxu0 %v795
    %868 = vmatpush.bf16.msra.mxu0 %v791
    %869 = vmatpush.bf16.msra.mxu0 %v787
    %870 = vmatpush.bf16.msra.mxu0 %v783
    %871 = vmatpush.bf16.msra.mxu0 %v779
    %872 = vmatpush.bf16.msra.mxu0 %v775
    %873 = vmatpush.bf16.msra.mxu0 %v771
    %874 = vmatpush.bf16.msra.mxu0 %v767
    %875 = vmatmul.bf16.gmra.mxu0 %v591
    %v876 = vpop.f32.mrf.mxu0
    %v877 = vadd.f32 0.0, %v876
    %v878 = vpop.f32.mrf.mxu0
    %879 = vdwg.mxu0
    %v880 = vadd.f32 %v664, %v838
    %v881 = vadd.f32 %v665, %v851
    %v882 = vadd.f32 %v666, %v864
    %v883 = vadd.f32 %v667, %v877
    %v884 = vxor.u32 %v880, 2147483648
    %v885 = vxor.u32 %v881, 2147483648
    %v886 = vxor.u32 %v882, 2147483648
    %v887 = vmul.f32 %v884, 1.442695
    %v888 = vpow.pop %v887
    %v889 = vmul.f32 %v885, 1.442695
    %v890 = vpow.pop %v889
    %v891 = vmul.f32 %v886, 1.442695
    %v892 = vpow.pop %v891
    %v893 = vadd.f32 %v888, 1.0
    %v894 = vadd.f32 %v890, 1.0
    %v895 = vadd.f32 %v892, 1.0
    %v896 = vrcp.pop %v893
    %v897 = vmul.f32 %v893, %v896
    %v898 = vsub.f32 1.0, %v897
    %v899 = vmul.f32 %v896, %v898
    %v900 = vadd.f32 %v896, %v899
    %vm901 = vweird.f32 %v893
    %vm902 = vweird.f32 %v896
    %vm903 = vmor %vm901, %vm902
    %v904 = vsel %vm903, %v896, %v900
    %v905 = vand.u32 2147483647, %v893
    %vm906 = vcmp.eq.f32.partialorder %v905, 8.507059e+37
    %v907 = vand.u32 %v893, 2147483648
    %v908 = vor.u32 1.1754944e-38, %v907
    %v909 = vsel %vm906, %v908, %v904
    %v910 = vmul.f32 1.0, %v909
    %v911 = vrcp.pop %v894
    %v912 = vmul.f32 %v894, %v911
    %v913 = vsub.f32 1.0, %v912
    %v914 = vmul.f32 %v911, %v913
    %v915 = vadd.f32 %v911, %v914
    %vm916 = vweird.f32 %v894
    %vm917 = vweird.f32 %v911
    %vm918 = vmor %vm916, %vm917
    %v919 = vsel %vm918, %v911, %v915
    %v920 = vand.u32 2147483647, %v894
    %vm921 = vcmp.eq.f32.partialorder %v920, 8.507059e+37
    %v922 = vand.u32 %v894, 2147483648
    %v923 = vor.u32 1.1754944e-38, %v922
    %v924 = vsel %vm921, %v923, %v919
    %v925 = vmul.f32 1.0, %v924
    %v926 = vrcp.pop %v895
    %v927 = vmul.f32 %v895, %v926
    %v928 = vsub.f32 1.0, %v927
    %v929 = vmul.f32 %v926, %v928
    %v930 = vadd.f32 %v926, %v929
    %vm931 = vweird.f32 %v895
    %vm932 = vweird.f32 %v926
    %vm933 = vmor %vm931, %vm932
    %v934 = vsel %vm933, %v926, %v930
    %v935 = vand.u32 2147483647, %v895
    %vm936 = vcmp.eq.f32.partialorder %v935, 8.507059e+37
    %v937 = vand.u32 %v895, 2147483648
    %v938 = vor.u32 1.1754944e-38, %v937
    %v939 = vsel %vm936, %v938, %v934
    %v940 = vmul.f32 1.0, %v939
    %v941 = vtanh.pop %v883
    %v942 = vmul.f32 %v925, %v663
    %v943 = vmul.f32 %v910, %v941
    %v944 = vadd.f32 %v942, %v943
    %945 = vst [vmem:[#allocation4] sm:$0xff] %v944
    %v946 = vtanh.pop %v944
    %v947 = vmul.f32 %v940, %v946
    %v948 = vpack.c.bf16 %v947, %v947
    %949 = vst [vmem:[#allocation3] sm:$0xf] %v948
    %s950 = scalar_lea.vmem %s1, 8
    %v951 = vld [vmem:[%s950] sm:$0xff]
    %v952 = vld [vmem:[#allocation3] sm:$0xf]
    %v953 = vld [vmem:[#allocation4] sm:$0xff]
    %v954 = vpack.c.bf16 %v953, %v953
    %955 = vmatpush.bf16.msra.mxu0 %v633
    %956 = vmatpush.bf16.msra.mxu0 %v632
    %957 = vmatpush.bf16.msra.mxu0 %v631
    %958 = vmatpush.bf16.msra.mxu0 %v630
    %959 = vmatpush.bf16.msra.mxu0 %v629
    %960 = vmatpush.bf16.msra.mxu0 %v628
    %961 = vmatpush.bf16.msra.mxu0 %v627
    %962 = vmatpush.bf16.msra.mxu0 %v626
    %963 = vmatmul.bf16.gmra.mxu0 %v954
    %v964 = vpop.f32.mrf.mxu0
    %v965 = vadd.f32 %v588, %v964
    %v966 = vpop.f32.mrf.mxu0
    %967 = vdwg.mxu0
    %v968 = vtanh.pop %v965
    %v969 = vsub.f32 %v953, %v968
    %971 = vset.pattern.permute.xlu0 0
    %972 = vperm.xlu0 %971, %v951
    %v973 = vpop.permute.xlu0 %972
    %v975 = vmul.f32 %v973, %v968
    %v976 = vadd.f32 %v969, %v975
    %s977 = scalar_lea.vmem [#allocation2], 32
    %v978 = vld [vmem:[%s977] sm:$0xff]
    %v979 = vld [vmem:[%s977 + $0x8] sm:$0xff]
    %v980 = vld [vmem:[%s977 + $0x10] sm:$0xff]
    %v981 = vld [vmem:[%s977 + $0x18] sm:$0xff]
    %982 = vmatpush.bf16.msra.mxu0 %v792
    %983 = vmatpush.bf16.msra.mxu0 %v788
    %984 = vmatpush.bf16.msra.mxu0 %v784
    %985 = vmatpush.bf16.msra.mxu0 %v780
    %986 = vmatpush.bf16.msra.mxu0 %v776
    %987 = vmatpush.bf16.msra.mxu0 %v772
    %988 = vmatpush.bf16.msra.mxu0 %v768
    %989 = vmatpush.bf16.msra.mxu0 %v764
    %990 = vmatmul.bf16.gmra.mxu0 %v952
    %v991 = vpop.f32.mrf.mxu0
    %v992 = vadd.f32 0.0, %v991
    %v993 = vpop.f32.mrf.mxu0
    %994 = vdwg.mxu0
    %995 = vmatpush.bf16.msra.mxu0 %v793
    %996 = vmatpush.bf16.msra.mxu0 %v789
    %997 = vmatpush.bf16.msra.mxu0 %v785
    %998 = vmatpush.bf16.msra.mxu0 %v781
    %999 = vmatpush.bf16.msra.mxu0 %v777
    %1000 = vmatpush.bf16.msra.mxu0 %v773
    %1001 = vmatpush.bf16.msra.mxu0 %v769
    %1002 = vmatpush.bf16.msra.mxu0 %v765
    %1003 = vmatmul.bf16.gmra.mxu0 %v952
    %v1004 = vpop.f32.mrf.mxu0
    %v1005 = vadd.f32 0.0, %v1004
    %v1006 = vpop.f32.mrf.mxu0
    %1007 = vdwg.mxu0
    %1008 = vmatpush.bf16.msra.mxu0 %v794
    %1009 = vmatpush.bf16.msra.mxu0 %v790
    %1010 = vmatpush.bf16.msra.mxu0 %v786
    %1011 = vmatpush.bf16.msra.mxu0 %v782
    %1012 = vmatpush.bf16.msra.mxu0 %v778
    %1013 = vmatpush.bf16.msra.mxu0 %v774
    %1014 = vmatpush.bf16.msra.mxu0 %v770
    %1015 = vmatpush.bf16.msra.mxu0 %v766
    %1016 = vmatmul.bf16.gmra.mxu0 %v952
    %v1017 = vpop.f32.mrf.mxu0
    %v1018 = vadd.f32 0.0, %v1017
    %v1019 = vpop.f32.mrf.mxu0
    %1020 = vdwg.mxu0
    %1021 = vmatpush.bf16.msra.mxu0 %v795
    %1022 = vmatpush.bf16.msra.mxu0 %v791
    %1023 = vmatpush.bf16.msra.mxu0 %v787
    %1024 = vmatpush.bf16.msra.mxu0 %v783
    %1025 = vmatpush.bf16.msra.mxu0 %v779
    %1026 = vmatpush.bf16.msra.mxu0 %v775
    %1027 = vmatpush.bf16.msra.mxu0 %v771
    %1028 = vmatpush.bf16.msra.mxu0 %v767
    %1029 = vmatmul.bf16.gmra.mxu0 %v952
    %v1030 = vpop.f32.mrf.mxu0
    %v1031 = vadd.f32 0.0, %v1030
    %v1032 = vpop.f32.mrf.mxu0
    %1033 = vdwg.mxu0
    %v1034 = vadd.f32 %v978, %v992
    %v1035 = vadd.f32 %v979, %v1005
    %v1036 = vadd.f32 %v980, %v1018
    %v1037 = vadd.f32 %v981, %v1031
    %v1038 = vxor.u32 %v1034, 2147483648
    %v1039 = vxor.u32 %v1035, 2147483648
    %v1040 = vxor.u32 %v1036, 2147483648
    %v1041 = vmul.f32 %v1038, 1.442695
    %v1042 = vpow.pop %v1041
    %v1043 = vmul.f32 %v1039, 1.442695
    %v1044 = vpow.pop %v1043
    %v1045 = vmul.f32 %v1040, 1.442695
    %v1046 = vpow.pop %v1045
    %v1047 = vadd.f32 %v1042, 1.0
    %v1048 = vadd.f32 %v1044, 1.0
    %v1049 = vadd.f32 %v1046, 1.0
    %v1050 = vrcp.pop %v1047
    %v1051 = vmul.f32 %v1047, %v1050
    %v1052 = vsub.f32 1.0, %v1051
    %v1053 = vmul.f32 %v1050, %v1052
    %v1054 = vadd.f32 %v1050, %v1053
    %vm1055 = vweird.f32 %v1047
    %vm1056 = vweird.f32 %v1050
    %vm1057 = vmor %vm1055, %vm1056
    %v1058 = vsel %vm1057, %v1050, %v1054
    %v1059 = vand.u32 2147483647, %v1047
    %vm1060 = vcmp.eq.f32.partialorder %v1059, 8.507059e+37
    %v1061 = vand.u32 %v1047, 2147483648
    %v1062 = vor.u32 1.1754944e-38, %v1061
    %v1063 = vsel %vm1060, %v1062, %v1058
    %v1064 = vmul.f32 1.0, %v1063
    %v1065 = vrcp.pop %v1048
    %v1066 = vmul.f32 %v1048, %v1065
    %v1067 = vsub.f32 1.0, %v1066
    %v1068 = vmul.f32 %v1065, %v1067
    %v1069 = vadd.f32 %v1065, %v1068
    %vm1070 = vweird.f32 %v1048
    %vm1071 = vweird.f32 %v1065
    %vm1072 = vmor %vm1070, %vm1071
    %v1073 = vsel %vm1072, %v1065, %v1069
    %v1074 = vand.u32 2147483647, %v1048
    %vm1075 = vcmp.eq.f32.partialorder %v1074, 8.507059e+37
    %v1076 = vand.u32 %v1048, 2147483648
    %v1077 = vor.u32 1.1754944e-38, %v1076
    %v1078 = vsel %vm1075, %v1077, %v1073
    %v1079 = vmul.f32 1.0, %v1078
    %v1080 = vrcp.pop %v1049
    %v1081 = vmul.f32 %v1049, %v1080
    %v1082 = vsub.f32 1.0, %v1081
    %v1083 = vmul.f32 %v1080, %v1082
    %v1084 = vadd.f32 %v1080, %v1083
    %vm1085 = vweird.f32 %v1049
    %vm1086 = vweird.f32 %v1080
    %vm1087 = vmor %vm1085, %vm1086
    %v1088 = vsel %vm1087, %v1080, %v1084
    %v1089 = vand.u32 2147483647, %v1049
    %vm1090 = vcmp.eq.f32.partialorder %v1089, 8.507059e+37
    %v1091 = vand.u32 %v1049, 2147483648
    %v1092 = vor.u32 1.1754944e-38, %v1091
    %v1093 = vsel %vm1090, %v1092, %v1088
    %v1094 = vmul.f32 1.0, %v1093
    %v1095 = vtanh.pop %v1037
    %v1096 = vmul.f32 %v1079, %v976
    %v1097 = vmul.f32 %v1064, %v1095
    %v1098 = vadd.f32 %v1096, %v1097
    %1099 = vst [vmem:[#allocation4] sm:$0xff] %v1098
    %v1100 = vtanh.pop %v1098
    %v1101 = vmul.f32 %v1094, %v1100
    %v1102 = vpack.c.bf16 %v1101, %v1101
    %1103 = vst [vmem:[#allocation3] sm:$0xf] %v1102
    %s1104 = scalar_lea.vmem %s1, 16
    %v1105 = vld [vmem:[%s1104] sm:$0xff]
    %v1106 = vld [vmem:[#allocation3] sm:$0xf]
    %v1107 = vld [vmem:[#allocation4] sm:$0xff]
    %v1108 = vpack.c.bf16 %v1107, %v1107
    %1109 = vmatpush.bf16.msra.mxu0 %v633
    %1110 = vmatpush.bf16.msra.mxu0 %v632
    %1111 = vmatpush.bf16.msra.mxu0 %v631
    %1112 = vmatpush.bf16.msra.mxu0 %v630
    %1113 = vmatpush.bf16.msra.mxu0 %v629
    %1114 = vmatpush.bf16.msra.mxu0 %v628
    %1115 = vmatpush.bf16.msra.mxu0 %v627
    %1116 = vmatpush.bf16.msra.mxu0 %v626
    %1117 = vmatmul.bf16.gmra.mxu0 %v1108
    %v1118 = vpop.f32.mrf.mxu0
    %v1119 = vadd.f32 %v588, %v1118
    %v1120 = vpop.f32.mrf.mxu0
    %1121 = vdwg.mxu0
    %v1122 = vtanh.pop %v1119
    %v1123 = vsub.f32 %v1107, %v1122
    %1125 = vset.pattern.permute.xlu0 0
    %1126 = vperm.xlu0 %1125, %v1105
    %v1127 = vpop.permute.xlu0 %1126
    %v1129 = vmul.f32 %v1127, %v1122
    %v1130 = vadd.f32 %v1123, %v1129
    %s1131 = scalar_lea.vmem [#allocation2], 64
    %v1132 = vld [vmem:[%s1131] sm:$0xff]
    %v1133 = vld [vmem:[%s1131 + $0x8] sm:$0xff]
    %v1134 = vld [vmem:[%s1131 + $0x10] sm:$0xff]
    %v1135 = vld [vmem:[%s1131 + $0x18] sm:$0xff]
    %1136 = vmatpush.bf16.msra.mxu0 %v792
    %1137 = vmatpush.bf16.msra.mxu0 %v788
    %1138 = vmatpush.bf16.msra.mxu0 %v784
    %1139 = vmatpush.bf16.msra.mxu0 %v780
    %1140 = vmatpush.bf16.msra.mxu0 %v776
    %1141 = vmatpush.bf16.msra.mxu0 %v772
    %1142 = vmatpush.bf16.msra.mxu0 %v768
    %1143 = vmatpush.bf16.msra.mxu0 %v764
    %1144 = vmatmul.bf16.gmra.mxu0 %v1106
    %v1145 = vpop.f32.mrf.mxu0
    %v1146 = vadd.f32 0.0, %v1145
    %v1147 = vpop.f32.mrf.mxu0
    %1148 = vdwg.mxu0
    %1149 = vmatpush.bf16.msra.mxu0 %v793
    %1150 = vmatpush.bf16.msra.mxu0 %v789
    %1151 = vmatpush.bf16.msra.mxu0 %v785
    %1152 = vmatpush.bf16.msra.mxu0 %v781
    %1153 = vmatpush.bf16.msra.mxu0 %v777
    %1154 = vmatpush.bf16.msra.mxu0 %v773
    %1155 = vmatpush.bf16.msra.mxu0 %v769
    %1156 = vmatpush.bf16.msra.mxu0 %v765
    %1157 = vmatmul.bf16.gmra.mxu0 %v1106
    %v1158 = vpop.f32.mrf.mxu0
    %v1159 = vadd.f32 0.0, %v1158
    %v1160 = vpop.f32.mrf.mxu0
    %1161 = vdwg.mxu0
    %1162 = vmatpush.bf16.msra.mxu0 %v794
    %1163 = vmatpush.bf16.msra.mxu0 %v790
    %1164 = vmatpush.bf16.msra.mxu0 %v786
    %1165 = vmatpush.bf16.msra.mxu0 %v782
    %1166 = vmatpush.bf16.msra.mxu0 %v778
    %1167 = vmatpush.bf16.msra.mxu0 %v774
    %1168 = vmatpush.bf16.msra.mxu0 %v770
    %1169 = vmatpush.bf16.msra.mxu0 %v766
    %1170 = vmatmul.bf16.gmra.mxu0 %v1106
    %v1171 = vpop.f32.mrf.mxu0
    %v1172 = vadd.f32 0.0, %v1171
    %v1173 = vpop.f32.mrf.mxu0
    %1174 = vdwg.mxu0
    %1175 = vmatpush.bf16.msra.mxu0 %v795
    %1176 = vmatpush.bf16.msra.mxu0 %v791
    %1177 = vmatpush.bf16.msra.mxu0 %v787
    %1178 = vmatpush.bf16.msra.mxu0 %v783
    %1179 = vmatpush.bf16.msra.mxu0 %v779
    %1180 = vmatpush.bf16.msra.mxu0 %v775
    %1181 = vmatpush.bf16.msra.mxu0 %v771
    %1182 = vmatpush.bf16.msra.mxu0 %v767
    %1183 = vmatmul.bf16.gmra.mxu0 %v1106
    %v1184 = vpop.f32.mrf.mxu0
    %v1185 = vadd.f32 0.0, %v1184
    %v1186 = vpop.f32.mrf.mxu0
    %1187 = vdwg.mxu0
    %v1188 = vadd.f32 %v1132, %v1146
    %v1189 = vadd.f32 %v1133, %v1159
    %v1190 = vadd.f32 %v1134, %v1172
    %v1191 = vadd.f32 %v1135, %v1185
    %v1192 = vxor.u32 %v1188, 2147483648
    %v1193 = vxor.u32 %v1189, 2147483648
    %v1194 = vxor.u32 %v1190, 2147483648
    %v1195 = vmul.f32 %v1192, 1.442695
    %v1196 = vpow.pop %v1195
    %v1197 = vmul.f32 %v1193, 1.442695
    %v1198 = vpow.pop %v1197
    %v1199 = vmul.f32 %v1194, 1.442695
    %v1200 = vpow.pop %v1199
    %v1201 = vadd.f32 %v1196, 1.0
    %v1202 = vadd.f32 %v1198, 1.0
    %v1203 = vadd.f32 %v1200, 1.0
    %v1204 = vrcp.pop %v1201
    %v1205 = vmul.f32 %v1201, %v1204
    %v1206 = vsub.f32 1.0, %v1205
    %v1207 = vmul.f32 %v1204, %v1206
    %v1208 = vadd.f32 %v1204, %v1207
    %vm1209 = vweird.f32 %v1201
    %vm1210 = vweird.f32 %v1204
    %vm1211 = vmor %vm1209, %vm1210
    %v1212 = vsel %vm1211, %v1204, %v1208
    %v1213 = vand.u32 2147483647, %v1201
    %vm1214 = vcmp.eq.f32.partialorder %v1213, 8.507059e+37
    %v1215 = vand.u32 %v1201, 2147483648
    %v1216 = vor.u32 1.1754944e-38, %v1215
    %v1217 = vsel %vm1214, %v1216, %v1212
    %v1218 = vmul.f32 1.0, %v1217
    %v1219 = vrcp.pop %v1202
    %v1220 = vmul.f32 %v1202, %v1219
    %v1221 = vsub.f32 1.0, %v1220
    %v1222 = vmul.f32 %v1219, %v1221
    %v1223 = vadd.f32 %v1219, %v1222
    %vm1224 = vweird.f32 %v1202
    %vm1225 = vweird.f32 %v1219
    %vm1226 = vmor %vm1224, %vm1225
    %v1227 = vsel %vm1226, %v1219, %v1223
    %v1228 = vand.u32 2147483647, %v1202
    %vm1229 = vcmp.eq.f32.partialorder %v1228, 8.507059e+37
    %v1230 = vand.u32 %v1202, 2147483648
    %v1231 = vor.u32 1.1754944e-38, %v1230
    %v1232 = vsel %vm1229, %v1231, %v1227
    %v1233 = vmul.f32 1.0, %v1232
    %v1234 = vrcp.pop %v1203
    %v1235 = vmul.f32 %v1203, %v1234
    %v1236 = vsub.f32 1.0, %v1235
    %v1237 = vmul.f32 %v1234, %v1236
    %v1238 = vadd.f32 %v1234, %v1237
    %vm1239 = vweird.f32 %v1203
    %vm1240 = vweird.f32 %v1234
    %vm1241 = vmor %vm1239, %vm1240
    %v1242 = vsel %vm1241, %v1234, %v1238
    %v1243 = vand.u32 2147483647, %v1203
    %vm1244 = vcmp.eq.f32.partialorder %v1243, 8.507059e+37
    %v1245 = vand.u32 %v1203, 2147483648
    %v1246 = vor.u32 1.1754944e-38, %v1245
    %v1247 = vsel %vm1244, %v1246, %v1242
    %v1248 = vmul.f32 1.0, %v1247
    %v1249 = vtanh.pop %v1191
    %v1250 = vmul.f32 %v1233, %v1130
    %v1251 = vmul.f32 %v1218, %v1249
    %v1252 = vadd.f32 %v1250, %v1251
    %1253 = vst [vmem:[#allocation4] sm:$0xff] %v1252
    %v1254 = vtanh.pop %v1252
    %v1255 = vmul.f32 %v1248, %v1254
    %v1256 = vpack.c.bf16 %v1255, %v1255
    %1257 = vst [vmem:[#allocation3] sm:$0xf] %v1256
    %s1258 = scalar_lea.vmem %s1, 24
    %v1259 = vld [vmem:[%s1258] sm:$0xff]
    %v1260 = vld [vmem:[#allocation3] sm:$0xf]
    %v1261 = vld [vmem:[#allocation4] sm:$0xff]
    %v1262 = vpack.c.bf16 %v1261, %v1261
    %1263 = vmatpush.bf16.msra.mxu0 %v633
    %1264 = vmatpush.bf16.msra.mxu0 %v632
    %1265 = vmatpush.bf16.msra.mxu0 %v631
    %1266 = vmatpush.bf16.msra.mxu0 %v630
    %1267 = vmatpush.bf16.msra.mxu0 %v629
    %1268 = vmatpush.bf16.msra.mxu0 %v628
    %1269 = vmatpush.bf16.msra.mxu0 %v627
    %1270 = vmatpush.bf16.msra.mxu0 %v626
    %1271 = vmatmul.bf16.gmra.mxu0 %v1262
    %v1272 = vpop.f32.mrf.mxu0
    %v1273 = vadd.f32 %v588, %v1272
    %v1274 = vpop.f32.mrf.mxu0
    %1275 = vdwg.mxu0
    %v1276 = vtanh.pop %v1273
    %v1277 = vsub.f32 %v1261, %v1276
    %1279 = vset.pattern.permute.xlu0 0
    %1280 = vperm.xlu0 %1279, %v1259
    %v1281 = vpop.permute.xlu0 %1280
    %v1283 = vmul.f32 %v1281, %v1276
    %v1284 = vadd.f32 %v1277, %v1283
    %s1285 = scalar_lea.vmem [#allocation2], 96
    %v1286 = vld [vmem:[%s1285] sm:$0xff]
    %v1287 = vld [vmem:[%s1285 + $0x8] sm:$0xff]
    %v1288 = vld [vmem:[%s1285 + $0x10] sm:$0xff]
    %v1289 = vld [vmem:[%s1285 + $0x18] sm:$0xff]
    %1290 = vmatpush.bf16.msra.mxu0 %v792
    %1291 = vmatpush.bf16.msra.mxu0 %v788
    %1292 = vmatpush.bf16.msra.mxu0 %v784
    %1293 = vmatpush.bf16.msra.mxu0 %v780
    %1294 = vmatpush.bf16.msra.mxu0 %v776
    %1295 = vmatpush.bf16.msra.mxu0 %v772
    %1296 = vmatpush.bf16.msra.mxu0 %v768
    %1297 = vmatpush.bf16.msra.mxu0 %v764
    %1298 = vmatmul.bf16.gmra.mxu0 %v1260
    %v1299 = vpop.f32.mrf.mxu0
    %v1300 = vadd.f32 0.0, %v1299
    %v1301 = vpop.f32.mrf.mxu0
    %1302 = vdwg.mxu0
    %1303 = vmatpush.bf16.msra.mxu0 %v793
    %1304 = vmatpush.bf16.msra.mxu0 %v789
    %1305 = vmatpush.bf16.msra.mxu0 %v785
    %1306 = vmatpush.bf16.msra.mxu0 %v781
    %1307 = vmatpush.bf16.msra.mxu0 %v777
    %1308 = vmatpush.bf16.msra.mxu0 %v773
    %1309 = vmatpush.bf16.msra.mxu0 %v769
    %1310 = vmatpush.bf16.msra.mxu0 %v765
    %1311 = vmatmul.bf16.gmra.mxu0 %v1260
    %v1312 = vpop.f32.mrf.mxu0
    %v1313 = vadd.f32 0.0, %v1312
    %v1314 = vpop.f32.mrf.mxu0
    %1315 = vdwg.mxu0
    %1316 = vmatpush.bf16.msra.mxu0 %v794
    %1317 = vmatpush.bf16.msra.mxu0 %v790
    %1318 = vmatpush.bf16.msra.mxu0 %v786
    %1319 = vmatpush.bf16.msra.mxu0 %v782
    %1320 = vmatpush.bf16.msra.mxu0 %v778
    %1321 = vmatpush.bf16.msra.mxu0 %v774
    %1322 = vmatpush.bf16.msra.mxu0 %v770
    %1323 = vmatpush.bf16.msra.mxu0 %v766
    %1324 = vmatmul.bf16.gmra.mxu0 %v1260
    %v1325 = vpop.f32.mrf.mxu0
    %v1326 = vadd.f32 0.0, %v1325
    %v1327 = vpop.f32.mrf.mxu0
    %1328 = vdwg.mxu0
    %1329 = vmatpush.bf16.msra.mxu0 %v795
    %1330 = vmatpush.bf16.msra.mxu0 %v791
    %1331 = vmatpush.bf16.msra.mxu0 %v787
    %1332 = vmatpush.bf16.msra.mxu0 %v783
    %1333 = vmatpush.bf16.msra.mxu0 %v779
    %1334 = vmatpush.bf16.msra.mxu0 %v775
    %1335 = vmatpush.bf16.msra.mxu0 %v771
    %1336 = vmatpush.bf16.msra.mxu0 %v767
    %1337 = vmatmul.bf16.gmra.mxu0 %v1260
    %v1338 = vpop.f32.mrf.mxu0
    %v1339 = vadd.f32 0.0, %v1338
    %v1340 = vpop.f32.mrf.mxu0
    %1341 = vdwg.mxu0
    %v1342 = vadd.f32 %v1286, %v1300
    %v1343 = vadd.f32 %v1287, %v1313
    %v1344 = vadd.f32 %v1288, %v1326
    %v1345 = vadd.f32 %v1289, %v1339
    %v1346 = vxor.u32 %v1342, 2147483648
    %v1347 = vxor.u32 %v1343, 2147483648
    %v1348 = vxor.u32 %v1344, 2147483648
    %v1349 = vmul.f32 %v1346, 1.442695
    %v1350 = vpow.pop %v1349
    %v1351 = vmul.f32 %v1347, 1.442695
    %v1352 = vpow.pop %v1351
    %v1353 = vmul.f32 %v1348, 1.442695
    %v1354 = vpow.pop %v1353
    %v1355 = vadd.f32 %v1350, 1.0
    %v1356 = vadd.f32 %v1352, 1.0
    %v1357 = vadd.f32 %v1354, 1.0
    %v1358 = vrcp.pop %v1355
    %v1359 = vmul.f32 %v1355, %v1358
    %v1360 = vsub.f32 1.0, %v1359
    %v1361 = vmul.f32 %v1358, %v1360
    %v1362 = vadd.f32 %v1358, %v1361
    %vm1363 = vweird.f32 %v1355
    %vm1364 = vweird.f32 %v1358
    %vm1365 = vmor %vm1363, %vm1364
    %v1366 = vsel %vm1365, %v1358, %v1362
    %v1367 = vand.u32 2147483647, %v1355
    %vm1368 = vcmp.eq.f32.partialorder %v1367, 8.507059e+37
    %v1369 = vand.u32 %v1355, 2147483648
    %v1370 = vor.u32 1.1754944e-38, %v1369
    %v1371 = vsel %vm1368, %v1370, %v1366
    %v1372 = vmul.f32 1.0, %v1371
    %v1373 = vrcp.pop %v1356
    %v1374 = vmul.f32 %v1356, %v1373
    %v1375 = vsub.f32 1.0, %v1374
    %v1376 = vmul.f32 %v1373, %v1375
    %v1377 = vadd.f32 %v1373, %v1376
    %vm1378 = vweird.f32 %v1356
    %vm1379 = vweird.f32 %v1373
    %vm1380 = vmor %vm1378, %vm1379
    %v1381 = vsel %vm1380, %v1373, %v1377
    %v1382 = vand.u32 2147483647, %v1356
    %vm1383 = vcmp.eq.f32.partialorder %v1382, 8.507059e+37
    %v1384 = vand.u32 %v1356, 2147483648
    %v1385 = vor.u32 1.1754944e-38, %v1384
    %v1386 = vsel %vm1383, %v1385, %v1381
    %v1387 = vmul.f32 1.0, %v1386
    %v1388 = vrcp.pop %v1357
    %v1389 = vmul.f32 %v1357, %v1388
    %v1390 = vsub.f32 1.0, %v1389
    %v1391 = vmul.f32 %v1388, %v1390
    %v1392 = vadd.f32 %v1388, %v1391
    %vm1393 = vweird.f32 %v1357
    %vm1394 = vweird.f32 %v1388
    %vm1395 = vmor %vm1393, %vm1394
    %v1396 = vsel %vm1395, %v1388, %v1392
    %v1397 = vand.u32 2147483647, %v1357
    %vm1398 = vcmp.eq.f32.partialorder %v1397, 8.507059e+37
    %v1399 = vand.u32 %v1357, 2147483648
    %v1400 = vor.u32 1.1754944e-38, %v1399
    %v1401 = vsel %vm1398, %v1400, %v1396
    %v1402 = vmul.f32 1.0, %v1401
    %v1403 = vtanh.pop %v1345
    %v1404 = vmul.f32 %v1387, %v1284
    %v1405 = vmul.f32 %v1372, %v1403
    %v1406 = vadd.f32 %v1404, %v1405
    %1407 = vst [vmem:[#allocation4] sm:$0xff] %v1406
    %v1408 = vtanh.pop %v1406
    %v1409 = vmul.f32 %v1402, %v1408
    %v1410 = vpack.c.bf16 %v1409, %v1409
    %1411 = vst [vmem:[#allocation3] sm:$0xf] %v1410
    %s1412 = scalar_lea.vmem %s1, 32
    %v1413 = vld [vmem:[%s1412] sm:$0xff]
    %v1414 = vld [vmem:[#allocation3] sm:$0xf]
    %v1415 = vld [vmem:[#allocation4] sm:$0xff]
    %v1416 = vpack.c.bf16 %v1415, %v1415
    %1417 = vmatpush.bf16.msra.mxu0 %v633
    %1418 = vmatpush.bf16.msra.mxu0 %v632
    %1419 = vmatpush.bf16.msra.mxu0 %v631
    %1420 = vmatpush.bf16.msra.mxu0 %v630
    %1421 = vmatpush.bf16.msra.mxu0 %v629
    %1422 = vmatpush.bf16.msra.mxu0 %v628
    %1423 = vmatpush.bf16.msra.mxu0 %v627
    %1424 = vmatpush.bf16.msra.mxu0 %v626
    %1425 = vmatmul.bf16.gmra.mxu0 %v1416
    %v1426 = vpop.f32.mrf.mxu0
    %v1427 = vadd.f32 %v588, %v1426
    %v1428 = vpop.f32.mrf.mxu0
    %1429 = vdwg.mxu0
    %v1430 = vtanh.pop %v1427
    %v1431 = vsub.f32 %v1415, %v1430
    %1433 = vset.pattern.permute.xlu0 0
    %1434 = vperm.xlu0 %1433, %v1413
    %v1435 = vpop.permute.xlu0 %1434
    %v1437 = vmul.f32 %v1435, %v1430
    %v1438 = vadd.f32 %v1431, %v1437
    %s1439 = scalar_lea.vmem [#allocation2], 128
    %v1440 = vld [vmem:[%s1439] sm:$0xff]
    %v1441 = vld [vmem:[%s1439 + $0x8] sm:$0xff]
    %v1442 = vld [vmem:[%s1439 + $0x10] sm:$0xff]
    %v1443 = vld [vmem:[%s1439 + $0x18] sm:$0xff]
    %1444 = vmatpush.bf16.msra.mxu0 %v792
    %1445 = vmatpush.bf16.msra.mxu0 %v788
    %1446 = vmatpush.bf16.msra.mxu0 %v784
    %1447 = vmatpush.bf16.msra.mxu0 %v780
    %1448 = vmatpush.bf16.msra.mxu0 %v776
    %1449 = vmatpush.bf16.msra.mxu0 %v772
    %1450 = vmatpush.bf16.msra.mxu0 %v768
    %1451 = vmatpush.bf16.msra.mxu0 %v764
    %1452 = vmatmul.bf16.gmra.mxu0 %v1414
    %v1453 = vpop.f32.mrf.mxu0
    %v1454 = vadd.f32 0.0, %v1453
    %v1455 = vpop.f32.mrf.mxu0
    %1456 = vdwg.mxu0
    %1457 = vmatpush.bf16.msra.mxu0 %v793
    %1458 = vmatpush.bf16.msra.mxu0 %v789
    %1459 = vmatpush.bf16.msra.mxu0 %v785
    %1460 = vmatpush.bf16.msra.mxu0 %v781
    %1461 = vmatpush.bf16.msra.mxu0 %v777
    %1462 = vmatpush.bf16.msra.mxu0 %v773
    %1463 = vmatpush.bf16.msra.mxu0 %v769
    %1464 = vmatpush.bf16.msra.mxu0 %v765
    %1465 = vmatmul.bf16.gmra.mxu0 %v1414
    %v1466 = vpop.f32.mrf.mxu0
    %v1467 = vadd.f32 0.0, %v1466
    %v1468 = vpop.f32.mrf.mxu0
    %1469 = vdwg.mxu0
    %1470 = vmatpush.bf16.msra.mxu0 %v794
    %1471 = vmatpush.bf16.msra.mxu0 %v790
    %1472 = vmatpush.bf16.msra.mxu0 %v786
    %1473 = vmatpush.bf16.msra.mxu0 %v782
    %1474 = vmatpush.bf16.msra.mxu0 %v778
    %1475 = vmatpush.bf16.msra.mxu0 %v774
    %1476 = vmatpush.bf16.msra.mxu0 %v770
    %1477 = vmatpush.bf16.msra.mxu0 %v766
    %1478 = vmatmul.bf16.gmra.mxu0 %v1414
    %v1479 = vpop.f32.mrf.mxu0
    %v1480 = vadd.f32 0.0, %v1479
    %v1481 = vpop.f32.mrf.mxu0
    %1482 = vdwg.mxu0
    %1483 = vmatpush.bf16.msra.mxu0 %v795
    %1484 = vmatpush.bf16.msra.mxu0 %v791
    %1485 = vmatpush.bf16.msra.mxu0 %v787
    %1486 = vmatpush.bf16.msra.mxu0 %v783
    %1487 = vmatpush.bf16.msra.mxu0 %v779
    %1488 = vmatpush.bf16.msra.mxu0 %v775
    %1489 = vmatpush.bf16.msra.mxu0 %v771
    %1490 = vmatpush.bf16.msra.mxu0 %v767
    %1491 = vmatmul.bf16.gmra.mxu0 %v1414
    %v1492 = vpop.f32.mrf.mxu0
    %v1493 = vadd.f32 0.0, %v1492
    %v1494 = vpop.f32.mrf.mxu0
    %1495 = vdwg.mxu0
    %v1496 = vadd.f32 %v1440, %v1454
    %v1497 = vadd.f32 %v1441, %v1467
    %v1498 = vadd.f32 %v1442, %v1480
    %v1499 = vadd.f32 %v1443, %v1493
    %v1500 = vxor.u32 %v1496, 2147483648
    %v1501 = vxor.u32 %v1497, 2147483648
    %v1502 = vxor.u32 %v1498, 2147483648
    %v1503 = vmul.f32 %v1500, 1.442695
    %v1504 = vpow.pop %v1503
    %v1505 = vmul.f32 %v1501, 1.442695
    %v1506 = vpow.pop %v1505
    %v1507 = vmul.f32 %v1502, 1.442695
    %v1508 = vpow.pop %v1507
    %v1509 = vadd.f32 %v1504, 1.0
    %v1510 = vadd.f32 %v1506, 1.0
    %v1511 = vadd.f32 %v1508, 1.0
    %v1512 = vrcp.pop %v1509
    %v1513 = vmul.f32 %v1509, %v1512
    %v1514 = vsub.f32 1.0, %v1513
    %v1515 = vmul.f32 %v1512, %v1514
    %v1516 = vadd.f32 %v1512, %v1515
    %vm1517 = vweird.f32 %v1509
    %vm1518 = vweird.f32 %v1512
    %vm1519 = vmor %vm1517, %vm1518
    %v1520 = vsel %vm1519, %v1512, %v1516
    %v1521 = vand.u32 2147483647, %v1509
    %vm1522 = vcmp.eq.f32.partialorder %v1521, 8.507059e+37
    %v1523 = vand.u32 %v1509, 2147483648
    %v1524 = vor.u32 1.1754944e-38, %v1523
    %v1525 = vsel %vm1522, %v1524, %v1520
    %v1526 = vmul.f32 1.0, %v1525
    %v1527 = vrcp.pop %v1510
    %v1528 = vmul.f32 %v1510, %v1527
    %v1529 = vsub.f32 1.0, %v1528
    %v1530 = vmul.f32 %v1527, %v1529
    %v1531 = vadd.f32 %v1527, %v1530
    %vm1532 = vweird.f32 %v1510
    %vm1533 = vweird.f32 %v1527
    %vm1534 = vmor %vm1532, %vm1533
    %v1535 = vsel %vm1534, %v1527, %v1531
    %v1536 = vand.u32 2147483647, %v1510
    %vm1537 = vcmp.eq.f32.partialorder %v1536, 8.507059e+37
    %v1538 = vand.u32 %v1510, 2147483648
    %v1539 = vor.u32 1.1754944e-38, %v1538
    %v1540 = vsel %vm1537, %v1539, %v1535
    %v1541 = vmul.f32 1.0, %v1540
    %v1542 = vrcp.pop %v1511
    %v1543 = vmul.f32 %v1511, %v1542
    %v1544 = vsub.f32 1.0, %v1543
    %v1545 = vmul.f32 %v1542, %v1544
    %v1546 = vadd.f32 %v1542, %v1545
    %vm1547 = vweird.f32 %v1511
    %vm1548 = vweird.f32 %v1542
    %vm1549 = vmor %vm1547, %vm1548
    %v1550 = vsel %vm1549, %v1542, %v1546
    %v1551 = vand.u32 2147483647, %v1511
    %vm1552 = vcmp.eq.f32.partialorder %v1551, 8.507059e+37
    %v1553 = vand.u32 %v1511, 2147483648
    %v1554 = vor.u32 1.1754944e-38, %v1553
    %v1555 = vsel %vm1552, %v1554, %v1550
    %v1556 = vmul.f32 1.0, %v1555
    %v1557 = vtanh.pop %v1499
    %v1558 = vmul.f32 %v1541, %v1438
    %v1559 = vmul.f32 %v1526, %v1557
    %v1560 = vadd.f32 %v1558, %v1559
    %1561 = vst [vmem:[#allocation4] sm:$0xff] %v1560
    %v1562 = vtanh.pop %v1560
    %v1563 = vmul.f32 %v1556, %v1562
    %v1564 = vpack.c.bf16 %v1563, %v1563
    %1565 = vst [vmem:[#allocation3] sm:$0xf] %v1564
    %s1566 = scalar_lea.vmem %s1, 40
    %v1567 = vld [vmem:[%s1566] sm:$0xff]
    %v1568 = vld [vmem:[#allocation3] sm:$0xf]
    %v1569 = vld [vmem:[#allocation4] sm:$0xff]
    %v1570 = vpack.c.bf16 %v1569, %v1569
    %1571 = vmatpush.bf16.msra.mxu0 %v633
    %1572 = vmatpush.bf16.msra.mxu0 %v632
    %1573 = vmatpush.bf16.msra.mxu0 %v631
    %1574 = vmatpush.bf16.msra.mxu0 %v630
    %1575 = vmatpush.bf16.msra.mxu0 %v629
    %1576 = vmatpush.bf16.msra.mxu0 %v628
    %1577 = vmatpush.bf16.msra.mxu0 %v627
    %1578 = vmatpush.bf16.msra.mxu0 %v626
    %1579 = vmatmul.bf16.gmra.mxu0 %v1570
    %v1580 = vpop.f32.mrf.mxu0
    %v1581 = vadd.f32 %v588, %v1580
    %v1582 = vpop.f32.mrf.mxu0
    %1583 = vdwg.mxu0
    %v1584 = vtanh.pop %v1581
    %v1585 = vsub.f32 %v1569, %v1584
    %1587 = vset.pattern.permute.xlu0 0
    %1588 = vperm.xlu0 %1587, %v1567
    %v1589 = vpop.permute.xlu0 %1588
    %v1591 = vmul.f32 %v1589, %v1584
    %v1592 = vadd.f32 %v1585, %v1591
    %s1593 = scalar_lea.vmem [#allocation2], 160
    %v1594 = vld [vmem:[%s1593] sm:$0xff]
    %v1595 = vld [vmem:[%s1593 + $0x8] sm:$0xff]
    %v1596 = vld [vmem:[%s1593 + $0x10] sm:$0xff]
    %v1597 = vld [vmem:[%s1593 + $0x18] sm:$0xff]
    %1598 = vmatpush.bf16.msra.mxu0 %v792
    %1599 = vmatpush.bf16.msra.mxu0 %v788
    %1600 = vmatpush.bf16.msra.mxu0 %v784
    %1601 = vmatpush.bf16.msra.mxu0 %v780
    %1602 = vmatpush.bf16.msra.mxu0 %v776
    %1603 = vmatpush.bf16.msra.mxu0 %v772
    %1604 = vmatpush.bf16.msra.mxu0 %v768
    %1605 = vmatpush.bf16.msra.mxu0 %v764
    %1606 = vmatmul.bf16.gmra.mxu0 %v1568
    %v1607 = vpop.f32.mrf.mxu0
    %v1608 = vadd.f32 0.0, %v1607
    %v1609 = vpop.f32.mrf.mxu0
    %1610 = vdwg.mxu0
    %1611 = vmatpush.bf16.msra.mxu0 %v793
    %1612 = vmatpush.bf16.msra.mxu0 %v789
    %1613 = vmatpush.bf16.msra.mxu0 %v785
    %1614 = vmatpush.bf16.msra.mxu0 %v781
    %1615 = vmatpush.bf16.msra.mxu0 %v777
    %1616 = vmatpush.bf16.msra.mxu0 %v773
    %1617 = vmatpush.bf16.msra.mxu0 %v769
    %1618 = vmatpush.bf16.msra.mxu0 %v765
    %1619 = vmatmul.bf16.gmra.mxu0 %v1568
    %v1620 = vpop.f32.mrf.mxu0
    %v1621 = vadd.f32 0.0, %v1620
    %v1622 = vpop.f32.mrf.mxu0
    %1623 = vdwg.mxu0
    %1624 = vmatpush.bf16.msra.mxu0 %v794
    %1625 = vmatpush.bf16.msra.mxu0 %v790
    %1626 = vmatpush.bf16.msra.mxu0 %v786
    %1627 = vmatpush.bf16.msra.mxu0 %v782
    %1628 = vmatpush.bf16.msra.mxu0 %v778
    %1629 = vmatpush.bf16.msra.mxu0 %v774
    %1630 = vmatpush.bf16.msra.mxu0 %v770
    %1631 = vmatpush.bf16.msra.mxu0 %v766
    %1632 = vmatmul.bf16.gmra.mxu0 %v1568
    %v1633 = vpop.f32.mrf.mxu0
    %v1634 = vadd.f32 0.0, %v1633
    %v1635 = vpop.f32.mrf.mxu0
    %1636 = vdwg.mxu0
    %1637 = vmatpush.bf16.msra.mxu0 %v795
    %1638 = vmatpush.bf16.msra.mxu0 %v791
    %1639 = vmatpush.bf16.msra.mxu0 %v787
    %1640 = vmatpush.bf16.msra.mxu0 %v783
    %1641 = vmatpush.bf16.msra.mxu0 %v779
    %1642 = vmatpush.bf16.msra.mxu0 %v775
    %1643 = vmatpush.bf16.msra.mxu0 %v771
    %1644 = vmatpush.bf16.msra.mxu0 %v767
    %1645 = vmatmul.bf16.gmra.mxu0 %v1568
    %v1646 = vpop.f32.mrf.mxu0
    %v1647 = vadd.f32 0.0, %v1646
    %v1648 = vpop.f32.mrf.mxu0
    %1649 = vdwg.mxu0
    %v1650 = vadd.f32 %v1594, %v1608
    %v1651 = vadd.f32 %v1595, %v1621
    %v1652 = vadd.f32 %v1596, %v1634
    %v1653 = vadd.f32 %v1597, %v1647
    %v1654 = vxor.u32 %v1650, 2147483648
    %v1655 = vxor.u32 %v1651, 2147483648
    %v1656 = vxor.u32 %v1652, 2147483648
    %v1657 = vmul.f32 %v1654, 1.442695
    %v1658 = vpow.pop %v1657
    %v1659 = vmul.f32 %v1655, 1.442695
    %v1660 = vpow.pop %v1659
    %v1661 = vmul.f32 %v1656, 1.442695
    %v1662 = vpow.pop %v1661
    %v1663 = vadd.f32 %v1658, 1.0
    %v1664 = vadd.f32 %v1660, 1.0
    %v1665 = vadd.f32 %v1662, 1.0
    %v1666 = vrcp.pop %v1663
    %v1667 = vmul.f32 %v1663, %v1666
    %v1668 = vsub.f32 1.0, %v1667
    %v1669 = vmul.f32 %v1666, %v1668
    %v1670 = vadd.f32 %v1666, %v1669
    %vm1671 = vweird.f32 %v1663
    %vm1672 = vweird.f32 %v1666
    %vm1673 = vmor %vm1671, %vm1672
    %v1674 = vsel %vm1673, %v1666, %v1670
    %v1675 = vand.u32 2147483647, %v1663
    %vm1676 = vcmp.eq.f32.partialorder %v1675, 8.507059e+37
    %v1677 = vand.u32 %v1663, 2147483648
    %v1678 = vor.u32 1.1754944e-38, %v1677
    %v1679 = vsel %vm1676, %v1678, %v1674
    %v1680 = vmul.f32 1.0, %v1679
    %v1681 = vrcp.pop %v1664
    %v1682 = vmul.f32 %v1664, %v1681
    %v1683 = vsub.f32 1.0, %v1682
    %v1684 = vmul.f32 %v1681, %v1683
    %v1685 = vadd.f32 %v1681, %v1684
    %vm1686 = vweird.f32 %v1664
    %vm1687 = vweird.f32 %v1681
    %vm1688 = vmor %vm1686, %vm1687
    %v1689 = vsel %vm1688, %v1681, %v1685
    %v1690 = vand.u32 2147483647, %v1664
    %vm1691 = vcmp.eq.f32.partialorder %v1690, 8.507059e+37
    %v1692 = vand.u32 %v1664, 2147483648
    %v1693 = vor.u32 1.1754944e-38, %v1692
    %v1694 = vsel %vm1691, %v1693, %v1689
    %v1695 = vmul.f32 1.0, %v1694
    %v1696 = vrcp.pop %v1665
    %v1697 = vmul.f32 %v1665, %v1696
    %v1698 = vsub.f32 1.0, %v1697
    %v1699 = vmul.f32 %v1696, %v1698
    %v1700 = vadd.f32 %v1696, %v1699
    %vm1701 = vweird.f32 %v1665
    %vm1702 = vweird.f32 %v1696
    %vm1703 = vmor %vm1701, %vm1702
    %v1704 = vsel %vm1703, %v1696, %v1700
    %v1705 = vand.u32 2147483647, %v1665
    %vm1706 = vcmp.eq.f32.partialorder %v1705, 8.507059e+37
    %v1707 = vand.u32 %v1665, 2147483648
    %v1708 = vor.u32 1.1754944e-38, %v1707
    %v1709 = vsel %vm1706, %v1708, %v1704
    %v1710 = vmul.f32 1.0, %v1709
    %v1711 = vtanh.pop %v1653
    %v1712 = vmul.f32 %v1695, %v1592
    %v1713 = vmul.f32 %v1680, %v1711
    %v1714 = vadd.f32 %v1712, %v1713
    %1715 = vst [vmem:[#allocation4] sm:$0xff] %v1714
    %v1716 = vtanh.pop %v1714
    %v1717 = vmul.f32 %v1710, %v1716
    %v1718 = vpack.c.bf16 %v1717, %v1717
    %1719 = vst [vmem:[#allocation3] sm:$0xf] %v1718
    %s1720 = scalar_lea.vmem %s1, 48
    %v1721 = vld [vmem:[%s1720] sm:$0xff]
    %v1722 = vld [vmem:[#allocation3] sm:$0xf]
    %v1723 = vld [vmem:[#allocation4] sm:$0xff]
    %v1724 = vpack.c.bf16 %v1723, %v1723
    %1725 = vmatpush.bf16.msra.mxu0 %v633
    %1726 = vmatpush.bf16.msra.mxu0 %v632
    %1727 = vmatpush.bf16.msra.mxu0 %v631
    %1728 = vmatpush.bf16.msra.mxu0 %v630
    %1729 = vmatpush.bf16.msra.mxu0 %v629
    %1730 = vmatpush.bf16.msra.mxu0 %v628
    %1731 = vmatpush.bf16.msra.mxu0 %v627
    %1732 = vmatpush.bf16.msra.mxu0 %v626
    %1733 = vmatmul.bf16.gmra.mxu0 %v1724
    %v1734 = vpop.f32.mrf.mxu0
    %v1735 = vadd.f32 %v588, %v1734
    %v1736 = vpop.f32.mrf.mxu0
    %1737 = vdwg.mxu0
    %v1738 = vtanh.pop %v1735
    %v1739 = vsub.f32 %v1723, %v1738
    %1741 = vset.pattern.permute.xlu0 0
    %1742 = vperm.xlu0 %1741, %v1721
    %v1743 = vpop.permute.xlu0 %1742
    %v1745 = vmul.f32 %v1743, %v1738
    %v1746 = vadd.f32 %v1739, %v1745
    %s1747 = scalar_lea.vmem [#allocation2], 192
    %v1748 = vld [vmem:[%s1747] sm:$0xff]
    %v1749 = vld [vmem:[%s1747 + $0x8] sm:$0xff]
    %v1750 = vld [vmem:[%s1747 + $0x10] sm:$0xff]
    %v1751 = vld [vmem:[%s1747 + $0x18] sm:$0xff]
    %1752 = vmatpush.bf16.msra.mxu0 %v792
    %1753 = vmatpush.bf16.msra.mxu0 %v788
    %1754 = vmatpush.bf16.msra.mxu0 %v784
    %1755 = vmatpush.bf16.msra.mxu0 %v780
    %1756 = vmatpush.bf16.msra.mxu0 %v776
    %1757 = vmatpush.bf16.msra.mxu0 %v772
    %1758 = vmatpush.bf16.msra.mxu0 %v768
    %1759 = vmatpush.bf16.msra.mxu0 %v764
    %1760 = vmatmul.bf16.gmra.mxu0 %v1722
    %v1761 = vpop.f32.mrf.mxu0
    %v1762 = vadd.f32 0.0, %v1761
    %v1763 = vpop.f32.mrf.mxu0
    %1764 = vdwg.mxu0
    %1765 = vmatpush.bf16.msra.mxu0 %v793
    %1766 = vmatpush.bf16.msra.mxu0 %v789
    %1767 = vmatpush.bf16.msra.mxu0 %v785
    %1768 = vmatpush.bf16.msra.mxu0 %v781
    %1769 = vmatpush.bf16.msra.mxu0 %v777
    %1770 = vmatpush.bf16.msra.mxu0 %v773
    %1771 = vmatpush.bf16.msra.mxu0 %v769
    %1772 = vmatpush.bf16.msra.mxu0 %v765
    %1773 = vmatmul.bf16.gmra.mxu0 %v1722
    %v1774 = vpop.f32.mrf.mxu0
    %v1775 = vadd.f32 0.0, %v1774
    %v1776 = vpop.f32.mrf.mxu0
    %1777 = vdwg.mxu0
    %1778 = vmatpush.bf16.msra.mxu0 %v794
    %1779 = vmatpush.bf16.msra.mxu0 %v790
    %1780 = vmatpush.bf16.msra.mxu0 %v786
    %1781 = vmatpush.bf16.msra.mxu0 %v782
    %1782 = vmatpush.bf16.msra.mxu0 %v778
    %1783 = vmatpush.bf16.msra.mxu0 %v774
    %1784 = vmatpush.bf16.msra.mxu0 %v770
    %1785 = vmatpush.bf16.msra.mxu0 %v766
    %1786 = vmatmul.bf16.gmra.mxu0 %v1722
    %v1787 = vpop.f32.mrf.mxu0
    %v1788 = vadd.f32 0.0, %v1787
    %v1789 = vpop.f32.mrf.mxu0
    %1790 = vdwg.mxu0
    %1791 = vmatpush.bf16.msra.mxu0 %v795
    %1792 = vmatpush.bf16.msra.mxu0 %v791
    %1793 = vmatpush.bf16.msra.mxu0 %v787
    %1794 = vmatpush.bf16.msra.mxu0 %v783
    %1795 = vmatpush.bf16.msra.mxu0 %v779
    %1796 = vmatpush.bf16.msra.mxu0 %v775
    %1797 = vmatpush.bf16.msra.mxu0 %v771
    %1798 = vmatpush.bf16.msra.mxu0 %v767
    %1799 = vmatmul.bf16.gmra.mxu0 %v1722
    %v1800 = vpop.f32.mrf.mxu0
    %v1801 = vadd.f32 0.0, %v1800
    %v1802 = vpop.f32.mrf.mxu0
    %1803 = vdwg.mxu0
    %v1804 = vadd.f32 %v1748, %v1762
    %v1805 = vadd.f32 %v1749, %v1775
    %v1806 = vadd.f32 %v1750, %v1788
    %v1807 = vadd.f32 %v1751, %v1801
    %v1808 = vxor.u32 %v1804, 2147483648
    %v1809 = vxor.u32 %v1805, 2147483648
    %v1810 = vxor.u32 %v1806, 2147483648
    %v1811 = vmul.f32 %v1808, 1.442695
    %v1812 = vpow.pop %v1811
    %v1813 = vmul.f32 %v1809, 1.442695
    %v1814 = vpow.pop %v1813
    %v1815 = vmul.f32 %v1810, 1.442695
    %v1816 = vpow.pop %v1815
    %v1817 = vadd.f32 %v1812, 1.0
    %v1818 = vadd.f32 %v1814, 1.0
    %v1819 = vadd.f32 %v1816, 1.0
    %v1820 = vrcp.pop %v1817
    %v1821 = vmul.f32 %v1817, %v1820
    %v1822 = vsub.f32 1.0, %v1821
    %v1823 = vmul.f32 %v1820, %v1822
    %v1824 = vadd.f32 %v1820, %v1823
    %vm1825 = vweird.f32 %v1817
    %vm1826 = vweird.f32 %v1820
    %vm1827 = vmor %vm1825, %vm1826
    %v1828 = vsel %vm1827, %v1820, %v1824
    %v1829 = vand.u32 2147483647, %v1817
    %vm1830 = vcmp.eq.f32.partialorder %v1829, 8.507059e+37
    %v1831 = vand.u32 %v1817, 2147483648
    %v1832 = vor.u32 1.1754944e-38, %v1831
    %v1833 = vsel %vm1830, %v1832, %v1828
    %v1834 = vmul.f32 1.0, %v1833
    %v1835 = vrcp.pop %v1818
    %v1836 = vmul.f32 %v1818, %v1835
    %v1837 = vsub.f32 1.0, %v1836
    %v1838 = vmul.f32 %v1835, %v1837
    %v1839 = vadd.f32 %v1835, %v1838
    %vm1840 = vweird.f32 %v1818
    %vm1841 = vweird.f32 %v1835
    %vm1842 = vmor %vm1840, %vm1841
    %v1843 = vsel %vm1842, %v1835, %v1839
    %v1844 = vand.u32 2147483647, %v1818
    %vm1845 = vcmp.eq.f32.partialorder %v1844, 8.507059e+37
    %v1846 = vand.u32 %v1818, 2147483648
    %v1847 = vor.u32 1.1754944e-38, %v1846
    %v1848 = vsel %vm1845, %v1847, %v1843
    %v1849 = vmul.f32 1.0, %v1848
    %v1850 = vrcp.pop %v1819
    %v1851 = vmul.f32 %v1819, %v1850
    %v1852 = vsub.f32 1.0, %v1851
    %v1853 = vmul.f32 %v1850, %v1852
    %v1854 = vadd.f32 %v1850, %v1853
    %vm1855 = vweird.f32 %v1819
    %vm1856 = vweird.f32 %v1850
    %vm1857 = vmor %vm1855, %vm1856
    %v1858 = vsel %vm1857, %v1850, %v1854
    %v1859 = vand.u32 2147483647, %v1819
    %vm1860 = vcmp.eq.f32.partialorder %v1859, 8.507059e+37
    %v1861 = vand.u32 %v1819, 2147483648
    %v1862 = vor.u32 1.1754944e-38, %v1861
    %v1863 = vsel %vm1860, %v1862, %v1858
    %v1864 = vmul.f32 1.0, %v1863
    %v1865 = vtanh.pop %v1807
    %v1866 = vmul.f32 %v1849, %v1746
    %v1867 = vmul.f32 %v1834, %v1865
    %v1868 = vadd.f32 %v1866, %v1867
    %1869 = vst [vmem:[#allocation4] sm:$0xff] %v1868
    %v1870 = vtanh.pop %v1868
    %v1871 = vmul.f32 %v1864, %v1870
    %v1872 = vpack.c.bf16 %v1871, %v1871
    %1873 = vst [vmem:[#allocation3] sm:$0xf] %v1872
    %s1874 = scalar_lea.vmem %s1, 56
    %v1875 = vld [vmem:[%s1874] sm:$0xff]
    %v1876 = vld [vmem:[#allocation3] sm:$0xf]
    %v1877 = vld [vmem:[#allocation4] sm:$0xff]
    %v1878 = vpack.c.bf16 %v1877, %v1877
    %1879 = vmatpush.bf16.msra.mxu0 %v633
    %1880 = vmatpush.bf16.msra.mxu0 %v632
    %1881 = vmatpush.bf16.msra.mxu0 %v631
    %1882 = vmatpush.bf16.msra.mxu0 %v630
    %1883 = vmatpush.bf16.msra.mxu0 %v629
    %1884 = vmatpush.bf16.msra.mxu0 %v628
    %1885 = vmatpush.bf16.msra.mxu0 %v627
    %1886 = vmatpush.bf16.msra.mxu0 %v626
    %1887 = vmatmul.bf16.gmra.mxu0 %v1878
    %v1888 = vpop.f32.mrf.mxu0
    %v1889 = vadd.f32 %v588, %v1888
    %v1890 = vpop.f32.mrf.mxu0
    %1891 = vdwg.mxu0
    %v1892 = vtanh.pop %v1889
    %v1893 = vsub.f32 %v1877, %v1892
    %1895 = vset.pattern.permute.xlu0 0
    %1896 = vperm.xlu0 %1895, %v1875
    %v1897 = vpop.permute.xlu0 %1896
    %v1899 = vmul.f32 %v1897, %v1892
    %v1900 = vadd.f32 %v1893, %v1899
    %s1901 = scalar_lea.vmem [#allocation2], 224
    %v1902 = vld [vmem:[%s1901] sm:$0xff]
    %v1903 = vld [vmem:[%s1901 + $0x8] sm:$0xff]
    %v1904 = vld [vmem:[%s1901 + $0x10] sm:$0xff]
    %v1905 = vld [vmem:[%s1901 + $0x18] sm:$0xff]
    %1906 = vmatpush.bf16.msra.mxu0 %v792
    %1907 = vmatpush.bf16.msra.mxu0 %v788
    %1908 = vmatpush.bf16.msra.mxu0 %v784
    %1909 = vmatpush.bf16.msra.mxu0 %v780
    %1910 = vmatpush.bf16.msra.mxu0 %v776
    %1911 = vmatpush.bf16.msra.mxu0 %v772
    %1912 = vmatpush.bf16.msra.mxu0 %v768
    %1913 = vmatpush.bf16.msra.mxu0 %v764
    %1914 = vmatmul.bf16.gmra.mxu0 %v1876
    %v1915 = vpop.f32.mrf.mxu0
    %v1916 = vadd.f32 0.0, %v1915
    %v1917 = vpop.f32.mrf.mxu0
    %1918 = vdwg.mxu0
    %1919 = vmatpush.bf16.msra.mxu0 %v793
    %1920 = vmatpush.bf16.msra.mxu0 %v789
    %1921 = vmatpush.bf16.msra.mxu0 %v785
    %1922 = vmatpush.bf16.msra.mxu0 %v781
    %1923 = vmatpush.bf16.msra.mxu0 %v777
    %1924 = vmatpush.bf16.msra.mxu0 %v773
    %1925 = vmatpush.bf16.msra.mxu0 %v769
    %1926 = vmatpush.bf16.msra.mxu0 %v765
    %1927 = vmatmul.bf16.gmra.mxu0 %v1876
    %v1928 = vpop.f32.mrf.mxu0
    %v1929 = vadd.f32 0.0, %v1928
    %v1930 = vpop.f32.mrf.mxu0
    %1931 = vdwg.mxu0
    %1932 = vmatpush.bf16.msra.mxu0 %v794
    %1933 = vmatpush.bf16.msra.mxu0 %v790
    %1934 = vmatpush.bf16.msra.mxu0 %v786
    %1935 = vmatpush.bf16.msra.mxu0 %v782
    %1936 = vmatpush.bf16.msra.mxu0 %v778
    %1937 = vmatpush.bf16.msra.mxu0 %v774
    %1938 = vmatpush.bf16.msra.mxu0 %v770
    %1939 = vmatpush.bf16.msra.mxu0 %v766
    %1940 = vmatmul.bf16.gmra.mxu0 %v1876
    %v1941 = vpop.f32.mrf.mxu0
    %v1942 = vadd.f32 0.0, %v1941
    %v1943 = vpop.f32.mrf.mxu0
    %1944 = vdwg.mxu0
    %1945 = vmatpush.bf16.msra.mxu0 %v795
    %1946 = vmatpush.bf16.msra.mxu0 %v791
    %1947 = vmatpush.bf16.msra.mxu0 %v787
    %1948 = vmatpush.bf16.msra.mxu0 %v783
    %1949 = vmatpush.bf16.msra.mxu0 %v779
    %1950 = vmatpush.bf16.msra.mxu0 %v775
    %1951 = vmatpush.bf16.msra.mxu0 %v771
    %1952 = vmatpush.bf16.msra.mxu0 %v767
    %1953 = vmatmul.bf16.gmra.mxu0 %v1876
    %v1954 = vpop.f32.mrf.mxu0
    %v1955 = vadd.f32 0.0, %v1954
    %v1956 = vpop.f32.mrf.mxu0
    %1957 = vdwg.mxu0
    %v1958 = vadd.f32 %v1902, %v1916
    %v1959 = vadd.f32 %v1903, %v1929
    %v1960 = vadd.f32 %v1904, %v1942
    %v1961 = vadd.f32 %v1905, %v1955
    %v1962 = vxor.u32 %v1958, 2147483648
    %v1963 = vxor.u32 %v1959, 2147483648
    %v1964 = vxor.u32 %v1960, 2147483648
    %v1965 = vmul.f32 %v1962, 1.442695
    %v1966 = vpow.pop %v1965
    %v1967 = vmul.f32 %v1963, 1.442695
    %v1968 = vpow.pop %v1967
    %v1969 = vmul.f32 %v1964, 1.442695
    %v1970 = vpow.pop %v1969
    %v1971 = vadd.f32 %v1966, 1.0
    %v1972 = vadd.f32 %v1968, 1.0
    %v1973 = vadd.f32 %v1970, 1.0
    %v1974 = vrcp.pop %v1971
    %v1975 = vmul.f32 %v1971, %v1974
    %v1976 = vsub.f32 1.0, %v1975
    %v1977 = vmul.f32 %v1974, %v1976
    %v1978 = vadd.f32 %v1974, %v1977
    %vm1979 = vweird.f32 %v1971
    %vm1980 = vweird.f32 %v1974
    %vm1981 = vmor %vm1979, %vm1980
    %v1982 = vsel %vm1981, %v1974, %v1978
    %v1983 = vand.u32 2147483647, %v1971
    %vm1984 = vcmp.eq.f32.partialorder %v1983, 8.507059e+37
    %v1985 = vand.u32 %v1971, 2147483648
    %v1986 = vor.u32 1.1754944e-38, %v1985
    %v1987 = vsel %vm1984, %v1986, %v1982
    %v1988 = vmul.f32 1.0, %v1987
    %v1989 = vrcp.pop %v1972
    %v1990 = vmul.f32 %v1972, %v1989
    %v1991 = vsub.f32 1.0, %v1990
    %v1992 = vmul.f32 %v1989, %v1991
    %v1993 = vadd.f32 %v1989, %v1992
    %vm1994 = vweird.f32 %v1972
    %vm1995 = vweird.f32 %v1989
    %vm1996 = vmor %vm1994, %vm1995
    %v1997 = vsel %vm1996, %v1989, %v1993
    %v1998 = vand.u32 2147483647, %v1972
    %vm1999 = vcmp.eq.f32.partialorder %v1998, 8.507059e+37
    %v2000 = vand.u32 %v1972, 2147483648
    %v2001 = vor.u32 1.1754944e-38, %v2000
    %v2002 = vsel %vm1999, %v2001, %v1997
    %v2003 = vmul.f32 1.0, %v2002
    %v2004 = vrcp.pop %v1973
    %v2005 = vmul.f32 %v1973, %v2004
    %v2006 = vsub.f32 1.0, %v2005
    %v2007 = vmul.f32 %v2004, %v2006
    %v2008 = vadd.f32 %v2004, %v2007
    %vm2009 = vweird.f32 %v1973
    %vm2010 = vweird.f32 %v2004
    %vm2011 = vmor %vm2009, %vm2010
    %v2012 = vsel %vm2011, %v2004, %v2008
    %v2013 = vand.u32 2147483647, %v1973
    %vm2014 = vcmp.eq.f32.partialorder %v2013, 8.507059e+37
    %v2015 = vand.u32 %v1973, 2147483648
    %v2016 = vor.u32 1.1754944e-38, %v2015
    %v2017 = vsel %vm2014, %v2016, %v2012
    %v2018 = vmul.f32 1.0, %v2017
    %v2019 = vtanh.pop %v1961
    %v2020 = vmul.f32 %v2003, %v1900
    %v2021 = vmul.f32 %v1988, %v2019
    %v2022 = vadd.f32 %v2020, %v2021
    %2023 = vst [vmem:[#allocation4] sm:$0xff] %v2022
    %v2024 = vtanh.pop %v2022
    %v2025 = vmul.f32 %v2018, %v2024
    %v2026 = vpack.c.bf16 %v2025, %v2025
    %2027 = vst [vmem:[#allocation3] sm:$0xf] %v2026
    // Predicated region
    $region70: #{tpu_custom_call.1} parent=1 // pred_check
      %p2028 = pneg %p118
    $region71: #{tpu_custom_call.1} parent=1 // pred_check_branch
      %2030 = sbr.rel (%p2028) target = $region73
    $region72: #{tpu_custom_call.1} parent=1 // pred_region
      %v2031 = vld [vmem:[#allocation3] sm:$0xf]
      %v2032 = vld [vmem:[#allocation11] sm:$0xf]
      %v2033 = vld [vmem:[#allocation11 + $0x4] sm:$0xf]
      %v2034 = vld [vmem:[#allocation11 + $0x8] sm:$0xf]
      %v2035 = vld [vmem:[#allocation11 + $0xc] sm:$0xf]
      %v2036 = vld [vmem:[#allocation11 + $0x10] sm:$0xf]
      %v2037 = vld [vmem:[#allocation11 + $0x14] sm:$0xf]
      %v2038 = vld [vmem:[#allocation11 + $0x18] sm:$0xf]
      %v2039 = vld [vmem:[#allocation11 + $0x1c] sm:$0xf]
      %v2040 = vld [vmem:[#allocation11 + $0x20] sm:$0xf]
      %v2041 = vld [vmem:[#allocation11 + $0x24] sm:$0xf]
      %v2042 = vld [vmem:[#allocation11 + $0x28] sm:$0xf]
      %v2043 = vld [vmem:[#allocation11 + $0x2c] sm:$0xf]
      %v2044 = vld [vmem:[#allocation11 + $0x30] sm:$0xf]
      %v2045 = vld [vmem:[#allocation11 + $0x34] sm:$0xf]
      %v2046 = vld [vmem:[#allocation11 + $0x38] sm:$0xf]
      %v2047 = vld [vmem:[#allocation11 + $0x3c] sm:$0xf]
      %v2048 = vld [vmem:[%s8] sm:$0x1]
      %v2050 = vperm.slane %v2048, 0
      %v2068 = vunpack.c.l.b16 %v2032
      %v2069 = vunpack.c.l.b16 %v2033
      %v2070 = vunpack.c.l.b16 %v2034
      %v2071 = vunpack.c.l.b16 %v2035
      %v2072 = vunpack.c.l.b16 %v2036
      %v2073 = vunpack.c.l.b16 %v2037
      %v2074 = vunpack.c.l.b16 %v2038
      %v2075 = vunpack.c.l.b16 %v2039
      %v2076 = vunpack.c.l.b16 %v2040
      %v2077 = vunpack.c.l.b16 %v2041
      %v2078 = vunpack.c.l.b16 %v2042
      %v2079 = vunpack.c.l.b16 %v2043
      %v2080 = vunpack.c.l.b16 %v2044
      %v2081 = vunpack.c.l.b16 %v2045
      %v2082 = vunpack.c.l.b16 %v2046
      %v2083 = vunpack.c.l.b16 %v2047
      %v2084 = vpack.c.b16 %v2069, %v2068
      %v2085 = vpack.c.b16 %v2071, %v2070
      %v2086 = vpack.c.b16 %v2073, %v2072
      %v2087 = vpack.c.b16 %v2075, %v2074
      %v2088 = vpack.c.b16 %v2077, %v2076
      %v2089 = vpack.c.b16 %v2079, %v2078
      %v2090 = vpack.c.b16 %v2081, %v2080
      %v2091 = vpack.c.b16 %v2083, %v2082
      %2100 = vmatpush.bf16.msra.mxu0 %v2091
      %2101 = vmatpush.bf16.msra.mxu0 %v2090
      %2102 = vmatpush.bf16.msra.mxu0 %v2089
      %2103 = vmatpush.bf16.msra.mxu0 %v2088
      %2104 = vmatpush.bf16.msra.mxu0 %v2087
      %2105 = vmatpush.bf16.msra.mxu0 %v2086
      %2106 = vmatpush.bf16.msra.mxu0 %v2085
      %2107 = vmatpush.bf16.msra.mxu0 %v2084
      %2108 = vmatmul.bf16.gmra.mxu0 %v2031
      %v2109 = vpop.f32.mrf.mxu0
      %v2110 = vadd.f32 %v2050, %v2109
      %v2111 = vpop.f32.mrf.mxu0
      %2112 = vdwg.mxu0
      %v2113 = vmax.f32 %v2110, 0.0
      %v2114 = vpack.c.bf16 %v2113, %v2113
      %v2115 = vld [vmem:[#allocation13] sm:$0xf]
      %v2116 = vld [vmem:[#allocation13 + $0x4] sm:$0xf]
      %v2117 = vld [vmem:[#allocation13 + $0x8] sm:$0xf]
      %v2118 = vld [vmem:[#allocation13 + $0xc] sm:$0xf]
      %v2119 = vld [vmem:[#allocation13 + $0x10] sm:$0xf]
      %v2120 = vld [vmem:[#allocation13 + $0x14] sm:$0xf]
      %v2121 = vld [vmem:[#allocation13 + $0x18] sm:$0xf]
      %v2122 = vld [vmem:[#allocation13 + $0x1c] sm:$0xf]
      %v2123 = vld [vmem:[#allocation13 + $0x20] sm:$0xf]
      %v2124 = vld [vmem:[#allocation13 + $0x24] sm:$0xf]
      %v2125 = vld [vmem:[#allocation13 + $0x28] sm:$0xf]
      %v2126 = vld [vmem:[#allocation13 + $0x2c] sm:$0xf]
      %v2127 = vld [vmem:[#allocation13 + $0x30] sm:$0xf]
      %v2128 = vld [vmem:[#allocation13 + $0x34] sm:$0xf]
      %v2129 = vld [vmem:[#allocation13 + $0x38] sm:$0xf]
      %v2130 = vld [vmem:[#allocation13 + $0x3c] sm:$0xf]
      %v2131 = vld [vmem:[%s10] sm:$0x1]
      %v2133 = vperm.slane %v2131, 0
      %v2151 = vunpack.c.l.b16 %v2115
      %v2152 = vunpack.c.l.b16 %v2116
      %v2153 = vunpack.c.l.b16 %v2117
      %v2154 = vunpack.c.l.b16 %v2118
      %v2155 = vunpack.c.l.b16 %v2119
      %v2156 = vunpack.c.l.b16 %v2120
      %v2157 = vunpack.c.l.b16 %v2121
      %v2158 = vunpack.c.l.b16 %v2122
      %v2159 = vunpack.c.l.b16 %v2123
      %v2160 = vunpack.c.l.b16 %v2124
      %v2161 = vunpack.c.l.b16 %v2125
      %v2162 = vunpack.c.l.b16 %v2126
      %v2163 = vunpack.c.l.b16 %v2127
      %v2164 = vunpack.c.l.b16 %v2128
      %v2165 = vunpack.c.l.b16 %v2129
      %v2166 = vunpack.c.l.b16 %v2130
      %v2167 = vpack.c.b16 %v2152, %v2151
      %v2168 = vpack.c.b16 %v2154, %v2153
      %v2169 = vpack.c.b16 %v2156, %v2155
      %v2170 = vpack.c.b16 %v2158, %v2157
      %v2171 = vpack.c.b16 %v2160, %v2159
      %v2172 = vpack.c.b16 %v2162, %v2161
      %v2173 = vpack.c.b16 %v2164, %v2163
      %v2174 = vpack.c.b16 %v2166, %v2165
      %2183 = vmatpush.bf16.msra.mxu0 %v2174
      %2184 = vmatpush.bf16.msra.mxu0 %v2173
      %2185 = vmatpush.bf16.msra.mxu0 %v2172
      %2186 = vmatpush.bf16.msra.mxu0 %v2171
      %2187 = vmatpush.bf16.msra.mxu0 %v2170
      %2188 = vmatpush.bf16.msra.mxu0 %v2169
      %2189 = vmatpush.bf16.msra.mxu0 %v2168
      %2190 = vmatpush.bf16.msra.mxu0 %v2167
      %2191 = vmatmul.bf16.gmra.mxu0 %v2114
      %v2192 = vpop.f32.mrf.mxu0
      %v2193 = vadd.f32 %v2133, %v2192
      %v2194 = vpop.f32.mrf.mxu0
      %2195 = vdwg.mxu0
      %2196 = vst [vmem:[#allocation14] sm:$0xff] %v2193
    $region73: #{tpu_custom_call.1} parent=1 // pred_fallthru
      _
    // Predicated region
    $region74: #{tpu_custom_call.1} parent=1 // pred_check
      _
    $region75: #{tpu_custom_call.1} parent=1 // pred_check_branch
      %2198 = sbr.rel (0) target = $region77
    $region76: #{tpu_custom_call.1} parent=1 // pred_region
      %2200 = vsyncadd [#allocation7], 0
      %s2202 = sshll.u32 [#allocation14], 4
      %s2203 = int_to_ptr.vmem [resolvable:$true] %s2202
      %s2204 = sshll.u32 %s11, 4
      %s2205 = int_to_ptr.hbm [resolvable:$true] %s2204
      %2207 = dma.vmem_to_hbm [thread:$0]  %s2203, 128, %s2205, [#allocation7]
    $region77: #{tpu_custom_call.1} parent=1 // pred_fallthru
      _
    // Predicated region
    $region78: #{tpu_custom_call.1} parent=1 // pred_check
      _
    $region79: #{tpu_custom_call.1} parent=1 // pred_check_branch
      %2209 = sbr.rel (0) target = $region81
    $region80: #{tpu_custom_call.1} parent=1 // pred_region
      %2211 = dma.done [#allocation7], 128
    $region81: #{tpu_custom_call.1} parent=1 // pred_fallthru
      _
    %2212 = vsyncpa [#allocation6], 1
    %2213 = vsyncpa [#allocation9], 1
    %2214 = vsyncpa [#allocation12], 1
    %2215 = vsyncpa [#allocation7], 1

// kernel: tpu_custom_call.1
$region0: #{tpu_custom_call.1}
  #allocation0 [shape = 'u32[]', space=smem, size = 0x4, offset = 0x4, fixed_abs, tag = 'smem constant byte address 0x4 - core index']
  #allocation1 [shape = 'u32[72,128]{1,0:T(1,128)}', space=vmem, size = 0x9000, scoped, tag = 'internal scratch']
  #allocation2 [shape = 'f32[8,8,512]{2,1,0:T(8,128)}', space=vmem, size = 0x20000, scoped, tag = 'scratch operand']
  #allocation3 [shape = 'bf16[8,128]{1,0:T(8,128)(2,1)}', space=vmem, size = 0x800, scoped, tag = 'scratch operand']
  #allocation4 [shape = 'f32[8,128]{1,0:T(8,128)}', space=vmem, size = 0x1000, scoped, tag = 'scratch operand']
  %s0 = inlined_call_operand.hbm [shape: bf16[8,8,128], index: 0, kind: input, shape index: {}]
  %s1 = inlined_call_operand.vmem [shape: f32[8,8,1], index: 1, kind: input, shape index: {}]
  %s2 = inlined_call_operand.hbm [shape: bf16[128,512], index: 2, kind: input, shape index: {}]
  %s3 = inlined_call_operand.vmem [shape: f32[1,512], index: 3, kind: input, shape index: {}]
  %s4 = inlined_call_operand.hbm [shape: bf16[128,512], index: 4, kind: input, shape index: {}]
  %s5 = inlined_call_operand.vmem [shape: bf16[128,128], index: 5, kind: input, shape index: {}]
  %s6 = inlined_call_operand.vmem [shape: f32[1,128], index: 6, kind: input, shape index: {}]
  %s7 = inlined_call_operand.hbm [shape: bf16[128,128], index: 7, kind: input, shape index: {}]
  %s8 = inlined_call_operand.vmem [shape: f32[1,128], index: 8, kind: input, shape index: {}]
  %s9 = inlined_call_operand.hbm [shape: bf16[128,128], index: 9, kind: input, shape index: {}]
  %s10 = inlined_call_operand.vmem [shape: f32[1,128], index: 10, kind: input, shape index: {}]
  %s11 = inlined_call_operand.hbm [shape: f32[8,128], index: 11, kind: output, shape index: {}]
  %s12 = sld [smem:[#allocation0]]
  $region82: #{tpu_custom_call.1} parent=0
    _
  %s14 = ssub.s32 1, %s12
  %s15 = scalar_select 0, %s14, %s12
  $region1: #{tpu_custom_call.1} parent=0
    #allocation5 [shape = 'u8[16384]{0}', space=vmem, size = 0x4000, scoped, tag = 'input window, operand 0, single buffered']
    #allocation6 [shape = 's32[1]{0}', space=sflag, size = 0x4, scoped, tag = 'scoped memory for tpu_custom_call.1']
    #allocation7 [shape = 's32[1]{0}', space=sflag, size = 0x4, scoped, tag = 'scoped memory for tpu_custom_call.1']
    #allocation8 [shape = 'u8[131072]{0}', space=vmem, size = 0x20000, scoped, tag = 'input window, operand 2, single buffered']
    #allocation9 [shape = 's32[1]{0}', space=sflag, size = 0x4, scoped, tag = 'scoped memory for tpu_custom_call.1']
    #allocation10 [shape = 'u8[131072]{0}', space=vmem, size = 0x20000, scoped, tag = 'input window, operand 4, single buffered']
    #allocation11 [shape = 'u8[32768]{0}', space=vmem, size = 0x8000, scoped, tag = 'input window, operand 7, single buffered']
    #allocation12 [shape = 's32[1]{0}', space=sflag, size = 0x4, scoped, tag = 'scoped memory for tpu_custom_call.1']
    #allocation13 [shape = 'u8[32768]{0}', space=vmem, size = 0x8000, scoped, tag = 'input window, operand 9, single buffered']
    #allocation14 [shape = 'u8[4096]{0}', space=vmem, size = 0x1000, scoped, tag = 'output window, operand 0, single buffered']
    %16 = vsyncpa [#allocation6], 0
    %17 = vsyncpa [#allocation9], 0
    %18 = vsyncpa [#allocation12], 0
    %19 = vsyncpa [#allocation7], 0
    // Predicated region
    $region2: #{tpu_custom_call.1} parent=1 // pred_check
      _
    $region3: #{tpu_custom_call.1} parent=1 // pred_check_branch
      %21 = sbr.rel (0) target = $region5
    $region4: #{tpu_custom_call.1} parent=1 // pred_region
      %23 = vsyncadd [#allocation6], 0
      %s24 = sshll.u32 %s0, 4
      %s25 = int_to_ptr.hbm [resolvable:$true] %s24
      %s26 = sshll.u32 [#allocation5], 4
      %s27 = int_to_ptr.vmem [resolvable:$true] %s26
      %32 = dma.hbm_to_vmem [thread:$0]  %s25, 512, %s27, [#allocation6], 64, 64, 4
    $region5: #{tpu_custom_call.1} parent=1 // pred_fallthru
      _
    // Predicated region
    $region6: #{tpu_custom_call.1} parent=1 // pred_check
      _
    $region7: #{tpu_custom_call.1} parent=1 // pred_check_branch
      %34 = sbr.rel (0) target = $region9
    $region8: #{tpu_custom_call.1} parent=1 // pred_region
      _
    $region9: #{tpu_custom_call.1} parent=1 // pred_fallthru
      _
    // Predicated region
    $region10: #{tpu_custom_call.1} parent=1 // pred_check
      _
    $region11: #{tpu_custom_call.1} parent=1 // pred_check_branch
      %36 = sbr.rel (0) target = $region13
    $region12: #{tpu_custom_call.1} parent=1 // pred_region
      %38 = vsyncadd [#allocation9], 0
      %s39 = sshll.u32 %s2, 4
      %s40 = int_to_ptr.hbm [resolvable:$true] %s39
      %s41 = sshll.u32 [#allocation8], 4
      %s42 = int_to_ptr.vmem [resolvable:$true] %s41
      %47 = dma.hbm_to_vmem [thread:$0]  %s40, 4096, %s42, [#allocation9], 256, 256, 16
    $region13: #{tpu_custom_call.1} parent=1 // pred_fallthru
      _
    // Predicated region
    $region14: #{tpu_custom_call.1} parent=1 // pred_check
      _
    $region15: #{tpu_custom_call.1} parent=1 // pred_check_branch
      %49 = sbr.rel (0) target = $region17
    $region16: #{tpu_custom_call.1} parent=1 // pred_region
      _
    $region17: #{tpu_custom_call.1} parent=1 // pred_fallthru
      _
    // Predicated region
    $region18: #{tpu_custom_call.1} parent=1 // pred_check
      _
    $region19: #{tpu_custom_call.1} parent=1 // pred_check_branch
      %51 = sbr.rel (0) target = $region21
    $region20: #{tpu_custom_call.1} parent=1 // pred_region
      %53 = vsyncadd [#allocation9], 0
      %s54 = sshll.u32 %s4, 4
      %s55 = int_to_ptr.hbm [resolvable:$true] %s54
      %s56 = sshll.u32 [#allocation10], 4
      %s57 = int_to_ptr.vmem [resolvable:$true] %s56
      %62 = dma.hbm_to_vmem [thread:$0]  %s55, 4096, %s57, [#allocation9], 256, 256, 16
    $region21: #{tpu_custom_call.1} parent=1 // pred_fallthru
      _
    // Predicated region
    $region22: #{tpu_custom_call.1} parent=1 // pred_check
      _
    $region23: #{tpu_custom_call.1} parent=1 // pred_check_branch
      %64 = sbr.rel (0) target = $region25
    $region24: #{tpu_custom_call.1} parent=1 // pred_region
      _
    $region25: #{tpu_custom_call.1} parent=1 // pred_fallthru
      _
    // Predicated region
    $region26: #{tpu_custom_call.1} parent=1 // pred_check
      _
    $region27: #{tpu_custom_call.1} parent=1 // pred_check_branch
      %66 = sbr.rel (0) target = $region29
    $region28: #{tpu_custom_call.1} parent=1 // pred_region
      _
    $region29: #{tpu_custom_call.1} parent=1 // pred_fallthru
      _
    // Predicated region
    $region30: #{tpu_custom_call.1} parent=1 // pred_check
      _
    $region31: #{tpu_custom_call.1} parent=1 // pred_check_branch
      %68 = sbr.rel (0) target = $region33
    $region32: #{tpu_custom_call.1} parent=1 // pred_region
      %70 = vsyncadd [#allocation12], 0
      %s71 = sshll.u32 %s7, 4
      %s72 = int_to_ptr.hbm [resolvable:$true] %s71
      %s73 = sshll.u32 [#allocation11], 4
      %s74 = int_to_ptr.vmem [resolvable:$true] %s73
      %79 = dma.hbm_to_vmem [thread:$0]  %s72, 1024, %s74, [#allocation12], 64, 64, 4
    $region33: #{tpu_custom_call.1} parent=1 // pred_fallthru
      _
    // Predicated region
    $region34: #{tpu_custom_call.1} parent=1 // pred_check
      _
    $region35: #{tpu_custom_call.1} parent=1 // pred_check_branch
      %81 = sbr.rel (0) target = $region37
    $region36: #{tpu_custom_call.1} parent=1 // pred_region
      _
    $region37: #{tpu_custom_call.1} parent=1 // pred_fallthru
      _
    // Predicated region
    $region38: #{tpu_custom_call.1} parent=1 // pred_check
      _
    $region39: #{tpu_custom_call.1} parent=1 // pred_check_branch
      %83 = sbr.rel (0) target = $region41
    $region40: #{tpu_custom_call.1} parent=1 // pred_region
      %85 = vsyncadd [#allocation12], 0
      %s86 = sshll.u32 %s9, 4
      %s87 = int_to_ptr.hbm [resolvable:$true] %s86
      %s88 = sshll.u32 [#allocation13], 4
      %s89 = int_to_ptr.vmem [resolvable:$true] %s88
      %94 = dma.hbm_to_vmem [thread:$0]  %s87, 1024, %s89, [#allocation12], 64, 64, 4
    $region41: #{tpu_custom_call.1} parent=1 // pred_fallthru
      _
    // Predicated region
    $region42: #{tpu_custom_call.1} parent=1 // pred_check
      _
    $region43: #{tpu_custom_call.1} parent=1 // pred_check_branch
      %96 = sbr.rel (0) target = $region45
    $region44: #{tpu_custom_call.1} parent=1 // pred_region
      _
    $region45: #{tpu_custom_call.1} parent=1 // pred_fallthru
      _
    // Predicated region
    $region46: #{tpu_custom_call.1} parent=1 // pred_check
      _
    $region47: #{tpu_custom_call.1} parent=1 // pred_check_branch
      %98 = sbr.rel (0) target = $region49
    $region48: #{tpu_custom_call.1} parent=1 // pred_region
      %100 = dma.done [#allocation6], 512
    $region49: #{tpu_custom_call.1} parent=1 // pred_fallthru
      _
    // Predicated region
    $region50: #{tpu_custom_call.1} parent=1 // pred_check
      _
    $region51: #{tpu_custom_call.1} parent=1 // pred_check_branch
      %102 = sbr.rel (0) target = $region53
    $region52: #{tpu_custom_call.1} parent=1 // pred_region
      %104 = dma.done [#allocation9], 4096
    $region53: #{tpu_custom_call.1} parent=1 // pred_fallthru
      _
    // Predicated region
    $region54: #{tpu_custom_call.1} parent=1 // pred_check
      _
    $region55: #{tpu_custom_call.1} parent=1 // pred_check_branch
      %106 = sbr.rel (0) target = $region57
    $region56: #{tpu_custom_call.1} parent=1 // pred_region
      %108 = dma.done [#allocation9], 4096
    $region57: #{tpu_custom_call.1} parent=1 // pred_fallthru
      _
    // Predicated region
    $region58: #{tpu_custom_call.1} parent=1 // pred_check
      _
    $region59: #{tpu_custom_call.1} parent=1 // pred_check_branch
      %110 = sbr.rel (0) target = $region61
    $region60: #{tpu_custom_call.1} parent=1 // pred_region
      %112 = dma.done [#allocation12], 1024
    $region61: #{tpu_custom_call.1} parent=1 // pred_fallthru
      _
    // Predicated region
    $region62: #{tpu_custom_call.1} parent=1 // pred_check
      _
    $region63: #{tpu_custom_call.1} parent=1 // pred_check_branch
      %114 = sbr.rel (0) target = $region65
    $region64: #{tpu_custom_call.1} parent=1 // pred_region
      %116 = dma.done [#allocation12], 1024
    $region65: #{tpu_custom_call.1} parent=1 // pred_fallthru
      _
    %p118 = scmp.eq.s32.totalorder 0, 0
    // Predicated region
    $region66: #{tpu_custom_call.1} parent=1 // pred_check
      %p119 = pneg %p118
    $region67: #{tpu_custom_call.1} parent=1 // pred_check_branch
      %121 = sbr.rel (%p119) target = $region69
    $region68: #{tpu_custom_call.1} parent=1 // pred_region
      %122 = vst [vmem:[#allocation3] sm:$0xf] 0
      %123 = vst [vmem:[#allocation4] sm:$0xff] 0.0
    $region69: #{tpu_custom_call.1} parent=1 // pred_fallthru
      _
    %v124 = vld [vmem:[#allocation5] sm:$0xf]
    %v125 = vld [vmem:[#allocation5 + $0x4] sm:$0xf]
    %v126 = vld [vmem:[#allocation5 + $0x8] sm:$0xf]
    %v127 = vld [vmem:[#allocation5 + $0xc] sm:$0xf]
    %v128 = vld [vmem:[#allocation5 + $0x10] sm:$0xf]
    %v129 = vld [vmem:[#allocation5 + $0x14] sm:$0xf]
    %v130 = vld [vmem:[#allocation5 + $0x18] sm:$0xf]
    %v131 = vld [vmem:[#allocation5 + $0x1c] sm:$0xf]
    %v132 = vld [vmem:[#allocation8] sm:$0xff]
    %v133 = vld [vmem:[#allocation8 + $0x8] sm:$0xff]
    %v134 = vld [vmem:[#allocation8 + $0x10] sm:$0xff]
    %v135 = vld [vmem:[#allocation8 + $0x18] sm:$0xff]
    %v136 = vld [vmem:[#allocation8 + $0x20] sm:$0xff]
    %v137 = vld [vmem:[#allocation8 + $0x28] sm:$0xff]
    %v138 = vld [vmem:[#allocation8 + $0x30] sm:$0xff]
    %v139 = vld [vmem:[#allocation8 + $0x38] sm:$0xff]
    %v140 = vld [vmem:[#allocation8 + $0x40] sm:$0xff]
    %v141 = vld [vmem:[#allocation8 + $0x48] sm:$0xff]
    %v142 = vld [vmem:[#allocation8 + $0x50] sm:$0xff]
    %v143 = vld [vmem:[#allocation8 + $0x58] sm:$0xff]
    %v144 = vld [vmem:[#allocation8 + $0x60] sm:$0xff]
    %v145 = vld [vmem:[#allocation8 + $0x68] sm:$0xff]
    %v146 = vld [vmem:[#allocation8 + $0x70] sm:$0xff]
    %v147 = vld [vmem:[#allocation8 + $0x78] sm:$0xff]
    %v148 = vld [vmem:[#allocation8 + $0x80] sm:$0xff]
    %v149 = vld [vmem:[#allocation8 + $0x88] sm:$0xff]
    %v150 = vld [vmem:[#allocation8 + $0x90] sm:$0xff]
    %v151 = vld [vmem:[#allocation8 + $0x98] sm:$0xff]
    %v152 = vld [vmem:[#allocation8 + $0xa0] sm:$0xff]
    %v153 = vld [vmem:[#allocation8 + $0xa8] sm:$0xff]
    %v154 = vld [vmem:[#allocation8 + $0xb0] sm:$0xff]
    %v155 = vld [vmem:[#allocation8 + $0xb8] sm:$0xff]
    %v156 = vld [vmem:[#allocation8 + $0xc0] sm:$0xff]
    %v157 = vld [vmem:[#allocation8 + $0xc8] sm:$0xff]
    %v158 = vld [vmem:[#allocation8 + $0xd0] sm:$0xff]
    %v159 = vld [vmem:[#allocation8 + $0xd8] sm:$0xff]
    %v160 = vld [vmem:[#allocation8 + $0xe0] sm:$0xff]
    %v161 = vld [vmem:[#allocation8 + $0xe8] sm:$0xff]
    %v162 = vld [vmem:[#allocation8 + $0xf0] sm:$0xff]
    %v163 = vld [vmem:[#allocation8 + $0xf8] sm:$0xff]
    %v172 = vunpack.c.l.b16 %v124
    %v173 = vunpack.c.l.b16 %v125
    %v174 = vunpack.c.l.b16 %v126
    %v175 = vunpack.c.l.b16 %v127
    %v176 = vunpack.c.l.b16 %v128
    %v177 = vunpack.c.l.b16 %v129
    %v178 = vunpack.c.l.b16 %v130
    %v179 = vunpack.c.l.b16 %v131
    %v180 = vpack.c.b16 %v173, %v172
    %v181 = vpack.c.b16 %v175, %v174
    %v182 = vpack.c.b16 %v177, %v176
    %v183 = vpack.c.b16 %v179, %v178
    %v220 = vunpack.c.l.b16 %v132
    %v221 = vunpack.c.h.b16 %v132
    %v222 = vunpack.c.l.b16 %v133
    %v223 = vunpack.c.h.b16 %v133
    %v224 = vunpack.c.l.b16 %v134
    %v225 = vunpack.c.h.b16 %v134
    %v226 = vunpack.c.l.b16 %v135
    %v227 = vunpack.c.h.b16 %v135
    %v228 = vunpack.c.l.b16 %v136
    %v229 = vunpack.c.h.b16 %v136
    %v230 = vunpack.c.l.b16 %v137
    %v231 = vunpack.c.h.b16 %v137
    %v232 = vunpack.c.l.b16 %v138
    %v233 = vunpack.c.h.b16 %v138
    %v234 = vunpack.c.l.b16 %v139
    %v235 = vunpack.c.h.b16 %v139
    %v236 = vunpack.c.l.b16 %v140
    %v237 = vunpack.c.h.b16 %v140
    %v238 = vunpack.c.l.b16 %v141
    %v239 = vunpack.c.h.b16 %v141
    %v240 = vunpack.c.l.b16 %v142
    %v241 = vunpack.c.h.b16 %v142
    %v242 = vunpack.c.l.b16 %v143
    %v243 = vunpack.c.h.b16 %v143
    %v244 = vunpack.c.l.b16 %v144
    %v245 = vunpack.c.h.b16 %v144
    %v246 = vunpack.c.l.b16 %v145
    %v247 = vunpack.c.h.b16 %v145
    %v248 = vunpack.c.l.b16 %v146
    %v249 = vunpack.c.h.b16 %v146
    %v250 = vunpack.c.l.b16 %v147
    %v251 = vunpack.c.h.b16 %v147
    %v252 = vunpack.c.l.b16 %v148
    %v253 = vunpack.c.h.b16 %v148
    %v254 = vunpack.c.l.b16 %v149
    %v255 = vunpack.c.h.b16 %v149
    %v256 = vunpack.c.l.b16 %v150
    %v257 = vunpack.c.h.b16 %v150
    %v258 = vunpack.c.l.b16 %v151
    %v259 = vunpack.c.h.b16 %v151
    %v260 = vunpack.c.l.b16 %v152
    %v261 = vunpack.c.h.b16 %v152
    %v262 = vunpack.c.l.b16 %v153
    %v263 = vunpack.c.h.b16 %v153
    %v264 = vunpack.c.l.b16 %v154
    %v265 = vunpack.c.h.b16 %v154
    %v266 = vunpack.c.l.b16 %v155
    %v267 = vunpack.c.h.b16 %v155
    %v268 = vunpack.c.l.b16 %v156
    %v269 = vunpack.c.h.b16 %v156
    %v270 = vunpack.c.l.b16 %v157
    %v271 = vunpack.c.h.b16 %v157
    %v272 = vunpack.c.l.b16 %v158
    %v273 = vunpack.c.h.b16 %v158
    %v274 = vunpack.c.l.b16 %v159
    %v275 = vunpack.c.h.b16 %v159
    %v276 = vunpack.c.l.b16 %v160
    %v277 = vunpack.c.h.b16 %v160
    %v278 = vunpack.c.l.b16 %v161
    %v279 = vunpack.c.h.b16 %v161
    %v280 = vunpack.c.l.b16 %v162
    %v281 = vunpack.c.h.b16 %v162
    %v282 = vunpack.c.l.b16 %v163
    %v283 = vunpack.c.h.b16 %v163
    %v284 = vpack.c.b16 %v224, %v220
    %v285 = vpack.c.b16 %v225, %v221
    %v286 = vpack.c.b16 %v226, %v222
    %v287 = vpack.c.b16 %v227, %v223
    %v288 = vpack.c.b16 %v232, %v228
    %v289 = vpack.c.b16 %v233, %v229
    %v290 = vpack.c.b16 %v234, %v230
    %v291 = vpack.c.b16 %v235, %v231
    %v292 = vpack.c.b16 %v240, %v236
    %v293 = vpack.c.b16 %v241, %v237
    %v294 = vpack.c.b16 %v242, %v238
    %v295 = vpack.c.b16 %v243, %v239
    %v296 = vpack.c.b16 %v248, %v244
    %v297 = vpack.c.b16 %v249, %v245
    %v298 = vpack.c.b16 %v250, %v246
    %v299 = vpack.c.b16 %v251, %v247
    %v300 = vpack.c.b16 %v256, %v252
    %v301 = vpack.c.b16 %v257, %v253
    %v302 = vpack.c.b16 %v258, %v254
    %v303 = vpack.c.b16 %v259, %v255
    %v304 = vpack.c.b16 %v264, %v260
    %v305 = vpack.c.b16 %v265, %v261
    %v306 = vpack.c.b16 %v266, %v262
    %v307 = vpack.c.b16 %v267, %v263
    %v308 = vpack.c.b16 %v272, %v268
    %v309 = vpack.c.b16 %v273, %v269
    %v310 = vpack.c.b16 %v274, %v270
    %v311 = vpack.c.b16 %v275, %v271
    %v312 = vpack.c.b16 %v280, %v276
    %v313 = vpack.c.b16 %v281, %v277
    %v314 = vpack.c.b16 %v282, %v278
    %v315 = vpack.c.b16 %v283, %v279
    %348 = vmatpush.bf16.msra.mxu0 %v312
    %349 = vmatpush.bf16.msra.mxu0 %v308
    %350 = vmatpush.bf16.msra.mxu0 %v304
    %351 = vmatpush.bf16.msra.mxu0 %v300
    %352 = vmatpush.bf16.msra.mxu0 %v296
    %353 = vmatpush.bf16.msra.mxu0 %v292
    %354 = vmatpush.bf16.msra.mxu0 %v288
    %355 = vmatpush.bf16.msra.mxu0 %v284
    %356 = vmatmul.bf16.gmra.mxu0 %v180
    %v357 = vpop.f32.mrf.mxu0
    %v358 = vadd.f32 0.0, %v357
    %v359 = vpop.f32.mrf.mxu0
    %v360 = vadd.f32 0.0, %v359
    %361 = vmatmul.bf16.gmra.mxu0 %v181
    %v362 = vpop.f32.mrf.mxu0
    %v363 = vadd.f32 0.0, %v362
    %v364 = vpop.f32.mrf.mxu0
    %v365 = vadd.f32 0.0, %v364
    %366 = vmatmul.bf16.gmra.mxu0 %v182
    %v367 = vpop.f32.mrf.mxu0
    %v368 = vadd.f32 0.0, %v367
    %v369 = vpop.f32.mrf.mxu0
    %v370 = vadd.f32 0.0, %v369
    %371 = vmatmul.bf16.gmra.mxu0 %v183
    %v372 = vpop.f32.mrf.mxu0
    %v373 = vadd.f32 0.0, %v372
    %v374 = vpop.f32.mrf.mxu0
    %v375 = vadd.f32 0.0, %v374
    %376 = vdwg.mxu0
    %377 = vmatpush.bf16.msra.mxu0 %v313
    %378 = vmatpush.bf16.msra.mxu0 %v309
    %379 = vmatpush.bf16.msra.mxu0 %v305
    %380 = vmatpush.bf16.msra.mxu0 %v301
    %381 = vmatpush.bf16.msra.mxu0 %v297
    %382 = vmatpush.bf16.msra.mxu0 %v293
    %383 = vmatpush.bf16.msra.mxu0 %v289
    %384 = vmatpush.bf16.msra.mxu0 %v285
    %385 = vmatmul.bf16.gmra.mxu0 %v180
    %v386 = vpop.f32.mrf.mxu0
    %v387 = vadd.f32 0.0, %v386
    %v388 = vpop.f32.mrf.mxu0
    %v389 = vadd.f32 0.0, %v388
    %390 = vmatmul.bf16.gmra.mxu0 %v181
    %v391 = vpop.f32.mrf.mxu0
    %v392 = vadd.f32 0.0, %v391
    %v393 = vpop.f32.mrf.mxu0
    %v394 = vadd.f32 0.0, %v393
    %395 = vmatmul.bf16.gmra.mxu0 %v182
    %v396 = vpop.f32.mrf.mxu0
    %v397 = vadd.f32 0.0, %v396
    %v398 = vpop.f32.mrf.mxu0
    %v399 = vadd.f32 0.0, %v398
    %400 = vmatmul.bf16.gmra.mxu0 %v183
    %v401 = vpop.f32.mrf.mxu0
    %v402 = vadd.f32 0.0, %v401
    %v403 = vpop.f32.mrf.mxu0
    %v404 = vadd.f32 0.0, %v403
    %405 = vdwg.mxu0
    %406 = vmatpush.bf16.msra.mxu0 %v314
    %407 = vmatpush.bf16.msra.mxu0 %v310
    %408 = vmatpush.bf16.msra.mxu0 %v306
    %409 = vmatpush.bf16.msra.mxu0 %v302
    %410 = vmatpush.bf16.msra.mxu0 %v298
    %411 = vmatpush.bf16.msra.mxu0 %v294
    %412 = vmatpush.bf16.msra.mxu0 %v290
    %413 = vmatpush.bf16.msra.mxu0 %v286
    %414 = vmatmul.bf16.gmra.mxu0 %v180
    %v415 = vpop.f32.mrf.mxu0
    %v416 = vadd.f32 0.0, %v415
    %v417 = vpop.f32.mrf.mxu0
    %v418 = vadd.f32 0.0, %v417
    %419 = vmatmul.bf16.gmra.mxu0 %v181
    %v420 = vpop.f32.mrf.mxu0
    %v421 = vadd.f32 0.0, %v420
    %v422 = vpop.f32.mrf.mxu0
    %v423 = vadd.f32 0.0, %v422
    %424 = vmatmul.bf16.gmra.mxu0 %v182
    %v425 = vpop.f32.mrf.mxu0
    %v426 = vadd.f32 0.0, %v425
    %v427 = vpop.f32.mrf.mxu0
    %v428 = vadd.f32 0.0, %v427
    %429 = vmatmul.bf16.gmra.mxu0 %v183
    %v430 = vpop.f32.mrf.mxu0
    %v431 = vadd.f32 0.0, %v430
    %v432 = vpop.f32.mrf.mxu0
    %v433 = vadd.f32 0.0, %v432
    %434 = vdwg.mxu0
    %435 = vmatpush.bf16.msra.mxu0 %v315
    %436 = vmatpush.bf16.msra.mxu0 %v311
    %437 = vmatpush.bf16.msra.mxu0 %v307
    %438 = vmatpush.bf16.msra.mxu0 %v303
    %439 = vmatpush.bf16.msra.mxu0 %v299
    %440 = vmatpush.bf16.msra.mxu0 %v295
    %441 = vmatpush.bf16.msra.mxu0 %v291
    %442 = vmatpush.bf16.msra.mxu0 %v287
    %443 = vmatmul.bf16.gmra.mxu0 %v180
    %v444 = vpop.f32.mrf.mxu0
    %v445 = vadd.f32 0.0, %v444
    %v446 = vpop.f32.mrf.mxu0
    %v447 = vadd.f32 0.0, %v446
    %448 = vmatmul.bf16.gmra.mxu0 %v181
    %v449 = vpop.f32.mrf.mxu0
    %v450 = vadd.f32 0.0, %v449
    %v451 = vpop.f32.mrf.mxu0
    %v452 = vadd.f32 0.0, %v451
    %453 = vmatmul.bf16.gmra.mxu0 %v182
    %v454 = vpop.f32.mrf.mxu0
    %v455 = vadd.f32 0.0, %v454
    %v456 = vpop.f32.mrf.mxu0
    %v457 = vadd.f32 0.0, %v456
    %458 = vmatmul.bf16.gmra.mxu0 %v183
    %v459 = vpop.f32.mrf.mxu0
    %v460 = vadd.f32 0.0, %v459
    %v461 = vpop.f32.mrf.mxu0
    %v462 = vadd.f32 0.0, %v461
    %463 = vdwg.mxu0
    %v464 = vld [vmem:[%s3] sm:$0xf]
    %v466 = vperm.slane %v464, 0
    %v467 = vperm.slane %v464, 1
    %v468 = vperm.slane %v464, 2
    %v469 = vperm.slane %v464, 3
    %v474 = vadd.f32 %v358, %v466
    %v475 = vadd.f32 %v387, %v467
    %v476 = vadd.f32 %v416, %v468
    %v477 = vadd.f32 %v445, %v469
    %v478 = vadd.f32 %v360, %v466
    %v479 = vadd.f32 %v389, %v467
    %v480 = vadd.f32 %v418, %v468
    %v481 = vadd.f32 %v447, %v469
    %v482 = vadd.f32 %v363, %v466
    %v483 = vadd.f32 %v392, %v467
    %v484 = vadd.f32 %v421, %v468
    %v485 = vadd.f32 %v450, %v469
    %v486 = vadd.f32 %v365, %v466
    %v487 = vadd.f32 %v394, %v467
    %v488 = vadd.f32 %v423, %v468
    %v489 = vadd.f32 %v452, %v469
    %v490 = vadd.f32 %v368, %v466
    %v491 = vadd.f32 %v397, %v467
    %v492 = vadd.f32 %v426, %v468
    %v493 = vadd.f32 %v455, %v469
    %v494 = vadd.f32 %v370, %v466
    %v495 = vadd.f32 %v399, %v467
    %v496 = vadd.f32 %v428, %v468
    %v497 = vadd.f32 %v457, %v469
    %v498 = vadd.f32 %v373, %v466
    %v499 = vadd.f32 %v402, %v467
    %v500 = vadd.f32 %v431, %v468
    %v501 = vadd.f32 %v460, %v469
    %v502 = vadd.f32 %v375, %v466
    %v503 = vadd.f32 %v404, %v467
    %v504 = vadd.f32 %v433, %v468
    %v505 = vadd.f32 %v462, %v469
    %506 = vst [vmem:[#allocation2] sm:$0xff] %v474
    %507 = vst [vmem:[#allocation2 + $0x8] sm:$0xff] %v475
    %508 = vst [vmem:[#allocation2 + $0x10] sm:$0xff] %v476
    %509 = vst [vmem:[#allocation2 + $0x18] sm:$0xff] %v477
    %510 = vst [vmem:[#allocation2 + $0x20] sm:$0xff] %v478
    %511 = vst [vmem:[#allocation2 + $0x28] sm:$0xff] %v479
    %512 = vst [vmem:[#allocation2 + $0x30] sm:$0xff] %v480
    %513 = vst [vmem:[#allocation2 + $0x38] sm:$0xff] %v481
    %514 = vst [vmem:[#allocation2 + $0x40] sm:$0xff] %v482
    %515 = vst [vmem:[#allocation2 + $0x48] sm:$0xff] %v483
    %516 = vst [vmem:[#allocation2 + $0x50] sm:$0xff] %v484
    %517 = vst [vmem:[#allocation2 + $0x58] sm:$0xff] %v485
    %518 = vst [vmem:[#allocation2 + $0x60] sm:$0xff] %v486
    %519 = vst [vmem:[#allocation2 + $0x68] sm:$0xff] %v487
    %520 = vst [vmem:[#allocation2 + $0x70] sm:$0xff] %v488
    %521 = vst [vmem:[#allocation2 + $0x78] sm:$0xff] %v489
    %522 = vst [vmem:[#allocation2 + $0x80] sm:$0xff] %v490
    %523 = vst [vmem:[#allocation2 + $0x88] sm:$0xff] %v491
    %524 = vst [vmem:[#allocation2 + $0x90] sm:$0xff] %v492
    %525 = vst [vmem:[#allocation2 + $0x98] sm:$0xff] %v493
    %526 = vst [vmem:[#allocation2 + $0xa0] sm:$0xff] %v494
    %527 = vst [vmem:[#allocation2 + $0xa8] sm:$0xff] %v495
    %528 = vst [vmem:[#allocation2 + $0xb0] sm:$0xff] %v496
    %529 = vst [vmem:[#allocation2 + $0xb8] sm:$0xff] %v497
    %530 = vst [vmem:[#allocation2 + $0xc0] sm:$0xff] %v498
    %531 = vst [vmem:[#allocation2 + $0xc8] sm:$0xff] %v499
    %532 = vst [vmem:[#allocation2 + $0xd0] sm:$0xff] %v500
    %533 = vst [vmem:[#allocation2 + $0xd8] sm:$0xff] %v501
    %534 = vst [vmem:[#allocation2 + $0xe0] sm:$0xff] %v502
    %535 = vst [vmem:[#allocation2 + $0xe8] sm:$0xff] %v503
    %536 = vst [vmem:[#allocation2 + $0xf0] sm:$0xff] %v504
    %537 = vst [vmem:[#allocation2 + $0xf8] sm:$0xff] %v505
    %v538 = vld [vmem:[#allocation10] sm:$0xff]
    %v539 = vld [vmem:[#allocation10 + $0x8] sm:$0xff]
    %v540 = vld [vmem:[#allocation10 + $0x10] sm:$0xff]
    %v541 = vld [vmem:[#allocation10 + $0x18] sm:$0xff]
    %v542 = vld [vmem:[#allocation10 + $0x20] sm:$0xff]
    %v543 = vld [vmem:[#allocation10 + $0x28] sm:$0xff]
    %v544 = vld [vmem:[#allocation10 + $0x30] sm:$0xff]
    %v545 = vld [vmem:[#allocation10 + $0x38] sm:$0xff]
    %v546 = vld [vmem:[#allocation10 + $0x40] sm:$0xff]
    %v547 = vld [vmem:[#allocation10 + $0x48] sm:$0xff]
    %v548 = vld [vmem:[#allocation10 + $0x50] sm:$0xff]
    %v549 = vld [vmem:[#allocation10 + $0x58] sm:$0xff]
    %v550 = vld [vmem:[#allocation10 + $0x60] sm:$0xff]
    %v551 = vld [vmem:[#allocation10 + $0x68] sm:$0xff]
    %v552 = vld [vmem:[#allocation10 + $0x70] sm:$0xff]
    %v553 = vld [vmem:[#allocation10 + $0x78] sm:$0xff]
    %v554 = vld [vmem:[#allocation10 + $0x80] sm:$0xff]
    %v555 = vld [vmem:[#allocation10 + $0x88] sm:$0xff]
    %v556 = vld [vmem:[#allocation10 + $0x90] sm:$0xff]
    %v557 = vld [vmem:[#allocation10 + $0x98] sm:$0xff]
    %v558 = vld [vmem:[#allocation10 + $0xa0] sm:$0xff]
    %v559 = vld [vmem:[#allocation10 + $0xa8] sm:$0xff]
    %v560 = vld [vmem:[#allocation10 + $0xb0] sm:$0xff]
    %v561 = vld [vmem:[#allocation10 + $0xb8] sm:$0xff]
    %v562 = vld [vmem:[#allocation10 + $0xc0] sm:$0xff]
    %v563 = vld [vmem:[#allocation10 + $0xc8] sm:$0xff]
    %v564 = vld [vmem:[#allocation10 + $0xd0] sm:$0xff]
    %v565 = vld [vmem:[#allocation10 + $0xd8] sm:$0xff]
    %v566 = vld [vmem:[#allocation10 + $0xe0] sm:$0xff]
    %v567 = vld [vmem:[#allocation10 + $0xe8] sm:$0xff]
    %v568 = vld [vmem:[#allocation10 + $0xf0] sm:$0xff]
    %v569 = vld [vmem:[#allocation10 + $0xf8] sm:$0xff]
    %v570 = vld [vmem:[%s5] sm:$0xf]
    %v571 = vld [vmem:[%s5 + $0x4] sm:$0xf]
    %v572 = vld [vmem:[%s5 + $0x8] sm:$0xf]
    %v573 = vld [vmem:[%s5 + $0xc] sm:$0xf]
    %v574 = vld [vmem:[%s5 + $0x10] sm:$0xf]
    %v575 = vld [vmem:[%s5 + $0x14] sm:$0xf]
    %v576 = vld [vmem:[%s5 + $0x18] sm:$0xf]
    %v577 = vld [vmem:[%s5 + $0x1c] sm:$0xf]
    %v578 = vld [vmem:[%s5 + $0x20] sm:$0xf]
    %v579 = vld [vmem:[%s5 + $0x24] sm:$0xf]
    %v580 = vld [vmem:[%s5 + $0x28] sm:$0xf]
    %v581 = vld [vmem:[%s5 + $0x2c] sm:$0xf]
    %v582 = vld [vmem:[%s5 + $0x30] sm:$0xf]
    %v583 = vld [vmem:[%s5 + $0x34] sm:$0xf]
    %v584 = vld [vmem:[%s5 + $0x38] sm:$0xf]
    %v585 = vld [vmem:[%s5 + $0x3c] sm:$0xf]
    %v586 = vld [vmem:[%s6] sm:$0x1]
    %v588 = vperm.slane %v586, 0
    %v590 = vld [vmem:[%s1] sm:$0xff]
    %v591 = vld [vmem:[#allocation3] sm:$0xf]
    %v592 = vld [vmem:[#allocation4] sm:$0xff]
    %v593 = vpack.c.bf16 %v592, %v592
    %v610 = vunpack.c.l.b16 %v570
    %v611 = vunpack.c.l.b16 %v571
    %v612 = vunpack.c.l.b16 %v572
    %v613 = vunpack.c.l.b16 %v573
    %v614 = vunpack.c.l.b16 %v574
    %v615 = vunpack.c.l.b16 %v575
    %v616 = vunpack.c.l.b16 %v576
    %v617 = vunpack.c.l.b16 %v577
    %v618 = vunpack.c.l.b16 %v578
    %v619 = vunpack.c.l.b16 %v579
    %v620 = vunpack.c.l.b16 %v580
    %v621 = vunpack.c.l.b16 %v581
    %v622 = vunpack.c.l.b16 %v582
    %v623 = vunpack.c.l.b16 %v583
    %v624 = vunpack.c.l.b16 %v584
    %v625 = vunpack.c.l.b16 %v585
    %v626 = vpack.c.b16 %v611, %v610
    %v627 = vpack.c.b16 %v613, %v612
    %v628 = vpack.c.b16 %v615, %v614
    %v629 = vpack.c.b16 %v617, %v616
    %v630 = vpack.c.b16 %v619, %v618
    %v631 = vpack.c.b16 %v621, %v620
    %v632 = vpack.c.b16 %v623, %v622
    %v633 = vpack.c.b16 %v625, %v624
    %642 = vmatpush.bf16.msra.mxu0 %v633
    %643 = vmatpush.bf16.msra.mxu0 %v632
    %644 = vmatpush.bf16.msra.mxu0 %v631
    %645 = vmatpush.bf16.msra.mxu0 %v630
    %646 = vmatpush.bf16.msra.mxu0 %v629
    %647 = vmatpush.bf16.msra.mxu0 %v628
    %648 = vmatpush.bf16.msra.mxu0 %v627
    %649 = vmatpush.bf16.msra.mxu0 %v626
    %650 = vmatmul.bf16.gmra.mxu0 %v593
    %v651 = vpop.f32.mrf.mxu0
    %v652 = vadd.f32 %v588, %v651
    %v653 = vpop.f32.mrf.mxu0
    %654 = vdwg.mxu0
    %v655 = vtanh.pop %v652
    %v656 = vsub.f32 %v592, %v655
    %658 = vset.pattern.permute.xlu0 0
    %659 = vperm.xlu0 %658, %v590
    %v660 = vpop.permute.xlu0 %659
    %v662 = vmul.f32 %v660, %v655
    %v663 = vadd.f32 %v656, %v662
    %v664 = vld [vmem:[#allocation2] sm:$0xff]
    %v665 = vld [vmem:[#allocation2 + $0x8] sm:$0xff]
    %v666 = vld [vmem:[#allocation2 + $0x10] sm:$0xff]
    %v667 = vld [vmem:[#allocation2 + $0x18] sm:$0xff]
    %v700 = vunpack.c.l.b16 %v538
    %v701 = vunpack.c.h.b16 %v538
    %v702 = vunpack.c.l.b16 %v539
    %v703 = vunpack.c.h.b16 %v539
    %v704 = vunpack.c.l.b16 %v540
    %v705 = vunpack.c.h.b16 %v540
    %v706 = vunpack.c.l.b16 %v541
    %v707 = vunpack.c.h.b16 %v541
    %v708 = vunpack.c.l.b16 %v542
    %v709 = vunpack.c.h.b16 %v542
    %v710 = vunpack.c.l.b16 %v543
    %v711 = vunpack.c.h.b16 %v543
    %v712 = vunpack.c.l.b16 %v544
    %v713 = vunpack.c.h.b16 %v544
    %v714 = vunpack.c.l.b16 %v545
    %v715 = vunpack.c.h.b16 %v545
    %v716 = vunpack.c.l.b16 %v546
    %v717 = vunpack.c.h.b16 %v546
    %v718 = vunpack.c.l.b16 %v547
    %v719 = vunpack.c.h.b16 %v547
    %v720 = vunpack.c.l.b16 %v548
    %v721 = vunpack.c.h.b16 %v548
    %v722 = vunpack.c.l.b16 %v549
    %v723 = vunpack.c.h.b16 %v549
    %v724 = vunpack.c.l.b16 %v550
    %v725 = vunpack.c.h.b16 %v550
    %v726 = vunpack.c.l.b16 %v551
    %v727 = vunpack.c.h.b16 %v551
    %v728 = vunpack.c.l.b16 %v552
    %v729 = vunpack.c.h.b16 %v552
    %v730 = vunpack.c.l.b16 %v553
    %v731 = vunpack.c.h.b16 %v553
    %v732 = vunpack.c.l.b16 %v554
    %v733 = vunpack.c.h.b16 %v554
    %v734 = vunpack.c.l.b16 %v555
    %v735 = vunpack.c.h.b16 %v555
    %v736 = vunpack.c.l.b16 %v556
    %v737 = vunpack.c.h.b16 %v556
    %v738 = vunpack.c.l.b16 %v557
    %v739 = vunpack.c.h.b16 %v557
    %v740 = vunpack.c.l.b16 %v558
    %v741 = vunpack.c.h.b16 %v558
    %v742 = vunpack.c.l.b16 %v559
    %v743 = vunpack.c.h.b16 %v559
    %v744 = vunpack.c.l.b16 %v560
    %v745 = vunpack.c.h.b16 %v560
    %v746 = vunpack.c.l.b16 %v561
    %v747 = vunpack.c.h.b16 %v561
    %v748 = vunpack.c.l.b16 %v562
    %v749 = vunpack.c.h.b16 %v562
    %v750 = vunpack.c.l.b16 %v563
    %v751 = vunpack.c.h.b16 %v563
    %v752 = vunpack.c.l.b16 %v564
    %v753 = vunpack.c.h.b16 %v564
    %v754 = vunpack.c.l.b16 %v565
    %v755 = vunpack.c.h.b16 %v565
    %v756 = vunpack.c.l.b16 %v566
    %v757 = vunpack.c.h.b16 %v566
    %v758 = vunpack.c.l.b16 %v567
    %v759 = vunpack.c.h.b16 %v567
    %v760 = vunpack.c.l.b16 %v568
    %v761 = vunpack.c.h.b16 %v568
    %v762 = vunpack.c.l.b16 %v569
    %v763 = vunpack.c.h.b16 %v569
    %v764 = vpack.c.b16 %v704, %v700
    %v765 = vpack.c.b16 %v705, %v701
    %v766 = vpack.c.b16 %v706, %v702
    %v767 = vpack.c.b16 %v707, %v703
    %v768 = vpack.c.b16 %v712, %v708
    %v769 = vpack.c.b16 %v713, %v709
    %v770 = vpack.c.b16 %v714, %v710
    %v771 = vpack.c.b16 %v715, %v711
    %v772 = vpack.c.b16 %v720, %v716
    %v773 = vpack.c.b16 %v721, %v717
    %v774 = vpack.c.b16 %v722, %v718
    %v775 = vpack.c.b16 %v723, %v719
    %v776 = vpack.c.b16 %v728, %v724
    %v777 = vpack.c.b16 %v729, %v725
    %v778 = vpack.c.b16 %v730, %v726
    %v779 = vpack.c.b16 %v731, %v727
    %v780 = vpack.c.b16 %v736, %v732
    %v781 = vpack.c.b16 %v737, %v733
    %v782 = vpack.c.b16 %v738, %v734
    %v783 = vpack.c.b16 %v739, %v735
    %v784 = vpack.c.b16 %v744, %v740
    %v785 = vpack.c.b16 %v745, %v741
    %v786 = vpack.c.b16 %v746, %v742
    %v787 = vpack.c.b16 %v747, %v743
    %v788 = vpack.c.b16 %v752, %v748
    %v789 = vpack.c.b16 %v753, %v749
    %v790 = vpack.c.b16 %v754, %v750
    %v791 = vpack.c.b16 %v755, %v751
    %v792 = vpack.c.b16 %v760, %v756
    %v793 = vpack.c.b16 %v761, %v757
    %v794 = vpack.c.b16 %v762, %v758
    %v795 = vpack.c.b16 %v763, %v759
    %828 = vmatpush.bf16.msra.mxu0 %v792
    %829 = vmatpush.bf16.msra.mxu0 %v788
    %830 = vmatpush.bf16.msra.mxu0 %v784
    %831 = vmatpush.bf16.msra.mxu0 %v780
    %832 = vmatpush.bf16.msra.mxu0 %v776
    %833 = vmatpush.bf16.msra.mxu0 %v772
    %834 = vmatpush.bf16.msra.mxu0 %v768
    %835 = vmatpush.bf16.msra.mxu0 %v764
    %836 = vmatmul.bf16.gmra.mxu0 %v591
    %v837 = vpop.f32.mrf.mxu0
    %v838 = vadd.f32 0.0, %v837
    %v839 = vpop.f32.mrf.mxu0
    %840 = vdwg.mxu0
    %841 = vmatpush.bf16.msra.mxu0 %v793
    %842 = vmatpush.bf16.msra.mxu0 %v789
    %843 = vmatpush.bf16.msra.mxu0 %v785
    %844 = vmatpush.bf16.msra.mxu0 %v781
    %845 = vmatpush.bf16.msra.mxu0 %v777
    %846 = vmatpush.bf16.msra.mxu0 %v773
    %847 = vmatpush.bf16.msra.mxu0 %v769
    %848 = vmatpush.bf16.msra.mxu0 %v765
    %849 = vmatmul.bf16.gmra.mxu0 %v591
    %v850 = vpop.f32.mrf.mxu0
    %v851 = vadd.f32 0.0, %v850
    %v852 = vpop.f32.mrf.mxu0
    %853 = vdwg.mxu0
    %854 = vmatpush.bf16.msra.mxu0 %v794
    %855 = vmatpush.bf16.msra.mxu0 %v790
    %856 = vmatpush.bf16.msra.mxu0 %v786
    %857 = vmatpush.bf16.msra.mxu0 %v782
    %858 = vmatpush.bf16.msra.mxu0 %v778
    %859 = vmatpush.bf16.msra.mxu0 %v774
    %860 = vmatpush.bf16.msra.mxu0 %v770
    %861 = vmatpush.bf16.msra.mxu0 %v766
    %862 = vmatmul.bf16.gmra.mxu0 %v591
    %v863 = vpop.f32.mrf.mxu0
    %v864 = vadd.f32 0.0, %v863
    %v865 = vpop.f32.mrf.mxu0
    %866 = vdwg.mxu0
    %867 = vmatpush.bf16.msra.mxu0 %v795
    %868 = vmatpush.bf16.msra.mxu0 %v791
    %869 = vmatpush.bf16.msra.mxu0 %v787
    %870 = vmatpush.bf16.msra.mxu0 %v783
    %871 = vmatpush.bf16.msra.mxu0 %v779
    %872 = vmatpush.bf16.msra.mxu0 %v775
    %873 = vmatpush.bf16.msra.mxu0 %v771
    %874 = vmatpush.bf16.msra.mxu0 %v767
    %875 = vmatmul.bf16.gmra.mxu0 %v591
    %v876 = vpop.f32.mrf.mxu0
    %v877 = vadd.f32 0.0, %v876
    %v878 = vpop.f32.mrf.mxu0
    %879 = vdwg.mxu0
    %v880 = vadd.f32 %v664, %v838
    %v881 = vadd.f32 %v665, %v851
    %v882 = vadd.f32 %v666, %v864
    %v883 = vadd.f32 %v667, %v877
    %v884 = vxor.u32 %v880, 2147483648
    %v885 = vxor.u32 %v881, 2147483648
    %v886 = vxor.u32 %v882, 2147483648
    %v887 = vmul.f32 %v884, 1.442695
    %v888 = vpow.pop %v887
    %v889 = vmul.f32 %v885, 1.442695
    %v890 = vpow.pop %v889
    %v891 = vmul.f32 %v886, 1.442695
    %v892 = vpow.pop %v891
    %v893 = vadd.f32 %v888, 1.0
    %v894 = vadd.f32 %v890, 1.0
    %v895 = vadd.f32 %v892, 1.0
    %v896 = vrcp.pop %v893
    %v897 = vmul.f32 %v893, %v896
    %v898 = vsub.f32 1.0, %v897
    %v899 = vmul.f32 %v896, %v898
    %v900 = vadd.f32 %v896, %v899
    %vm901 = vweird.f32 %v893
    %vm902 = vweird.f32 %v896
    %vm903 = vmor %vm901, %vm902
    %v904 = vsel %vm903, %v896, %v900
    %v905 = vand.u32 2147483647, %v893
    %vm906 = vcmp.eq.f32.partialorder %v905, 8.507059e+37
    %v907 = vand.u32 %v893, 2147483648
    %v908 = vor.u32 1.1754944e-38, %v907
    %v909 = vsel %vm906, %v908, %v904
    %v910 = vmul.f32 1.0, %v909
    %v911 = vrcp.pop %v894
    %v912 = vmul.f32 %v894, %v911
    %v913 = vsub.f32 1.0, %v912
    %v914 = vmul.f32 %v911, %v913
    %v915 = vadd.f32 %v911, %v914
    %vm916 = vweird.f32 %v894
    %vm917 = vweird.f32 %v911
    %vm918 = vmor %vm916, %vm917
    %v919 = vsel %vm918, %v911, %v915
    %v920 = vand.u32 2147483647, %v894
    %vm921 = vcmp.eq.f32.partialorder %v920, 8.507059e+37
    %v922 = vand.u32 %v894, 2147483648
    %v923 = vor.u32 1.1754944e-38, %v922
    %v924 = vsel %vm921, %v923, %v919
    %v925 = vmul.f32 1.0, %v924
    %v926 = vrcp.pop %v895
    %v927 = vmul.f32 %v895, %v926
    %v928 = vsub.f32 1.0, %v927
    %v929 = vmul.f32 %v926, %v928
    %v930 = vadd.f32 %v926, %v929
    %vm931 = vweird.f32 %v895
    %vm932 = vweird.f32 %v926
    %vm933 = vmor %vm931, %vm932
    %v934 = vsel %vm933, %v926, %v930
    %v935 = vand.u32 2147483647, %v895
    %vm936 = vcmp.eq.f32.partialorder %v935, 8.507059e+37
    %v937 = vand.u32 %v895, 2147483648
    %v938 = vor.u32 1.1754944e-38, %v937
    %v939 = vsel %vm936, %v938, %v934
    %v940 = vmul.f32 1.0, %v939
    %v941 = vtanh.pop %v883
    %v942 = vmul.f32 %v925, %v663
    %v943 = vmul.f32 %v910, %v941
    %v944 = vadd.f32 %v942, %v943
    %945 = vst [vmem:[#allocation4] sm:$0xff] %v944
    %v946 = vtanh.pop %v944
    %v947 = vmul.f32 %v940, %v946
    %v948 = vpack.c.bf16 %v947, %v947
    %949 = vst [vmem:[#allocation3] sm:$0xf] %v948
    %s950 = scalar_lea.vmem %s1, 8
    %v951 = vld [vmem:[%s950] sm:$0xff]
    %v952 = vld [vmem:[#allocation3] sm:$0xf]
    %v953 = vld [vmem:[#allocation4] sm:$0xff]
    %v954 = vpack.c.bf16 %v953, %v953
    %955 = vmatpush.bf16.msra.mxu0 %v633
    %956 = vmatpush.bf16.msra.mxu0 %v632
    %957 = vmatpush.bf16.msra.mxu0 %v631
    %958 = vmatpush.bf16.msra.mxu0 %v630
    %959 = vmatpush.bf16.msra.mxu0 %v629
    %960 = vmatpush.bf16.msra.mxu0 %v628
    %961 = vmatpush.bf16.msra.mxu0 %v627
    %962 = vmatpush.bf16.msra.mxu0 %v626
    %963 = vmatmul.bf16.gmra.mxu0 %v954
    %v964 = vpop.f32.mrf.mxu0
    %v965 = vadd.f32 %v588, %v964
    %v966 = vpop.f32.mrf.mxu0
    %967 = vdwg.mxu0
    %v968 = vtanh.pop %v965
    %v969 = vsub.f32 %v953, %v968
    %971 = vset.pattern.permute.xlu0 0
    %972 = vperm.xlu0 %971, %v951
    %v973 = vpop.permute.xlu0 %972
    %v975 = vmul.f32 %v973, %v968
    %v976 = vadd.f32 %v969, %v975
    %s977 = scalar_lea.vmem [#allocation2], 32
    %v978 = vld [vmem:[%s977] sm:$0xff]
    %v979 = vld [vmem:[%s977 + $0x8] sm:$0xff]
    %v980 = vld [vmem:[%s977 + $0x10] sm:$0xff]
    %v981 = vld [vmem:[%s977 + $0x18] sm:$0xff]
    %982 = vmatpush.bf16.msra.mxu0 %v792
    %983 = vmatpush.bf16.msra.mxu0 %v788
    %984 = vmatpush.bf16.msra.mxu0 %v784
    %985 = vmatpush.bf16.msra.mxu0 %v780
    %986 = vmatpush.bf16.msra.mxu0 %v776
    %987 = vmatpush.bf16.msra.mxu0 %v772
    %988 = vmatpush.bf16.msra.mxu0 %v768
    %989 = vmatpush.bf16.msra.mxu0 %v764
    %990 = vmatmul.bf16.gmra.mxu0 %v952
    %v991 = vpop.f32.mrf.mxu0
    %v992 = vadd.f32 0.0, %v991
    %v993 = vpop.f32.mrf.mxu0
    %994 = vdwg.mxu0
    %995 = vmatpush.bf16.msra.mxu0 %v793
    %996 = vmatpush.bf16.msra.mxu0 %v789
    %997 = vmatpush.bf16.msra.mxu0 %v785
    %998 = vmatpush.bf16.msra.mxu0 %v781
    %999 = vmatpush.bf16.msra.mxu0 %v777
    %1000 = vmatpush.bf16.msra.mxu0 %v773
    %1001 = vmatpush.bf16.msra.mxu0 %v769
    %1002 = vmatpush.bf16.msra.mxu0 %v765
    %1003 = vmatmul.bf16.gmra.mxu0 %v952
    %v1004 = vpop.f32.mrf.mxu0
    %v1005 = vadd.f32 0.0, %v1004
    %v1006 = vpop.f32.mrf.mxu0
    %1007 = vdwg.mxu0
    %1008 = vmatpush.bf16.msra.mxu0 %v794
    %1009 = vmatpush.bf16.msra.mxu0 %v790
    %1010 = vmatpush.bf16.msra.mxu0 %v786
    %1011 = vmatpush.bf16.msra.mxu0 %v782
    %1012 = vmatpush.bf16.msra.mxu0 %v778
    %1013 = vmatpush.bf16.msra.mxu0 %v774
    %1014 = vmatpush.bf16.msra.mxu0 %v770
    %1015 = vmatpush.bf16.msra.mxu0 %v766
    %1016 = vmatmul.bf16.gmra.mxu0 %v952
    %v1017 = vpop.f32.mrf.mxu0
    %v1018 = vadd.f32 0.0, %v1017
    %v1019 = vpop.f32.mrf.mxu0
    %1020 = vdwg.mxu0
    %1021 = vmatpush.bf16.msra.mxu0 %v795
    %1022 = vmatpush.bf16.msra.mxu0 %v791
    %1023 = vmatpush.bf16.msra.mxu0 %v787
    %1024 = vmatpush.bf16.msra.mxu0 %v783
    %1025 = vmatpush.bf16.msra.mxu0 %v779
    %1026 = vmatpush.bf16.msra.mxu0 %v775
    %1027 = vmatpush.bf16.msra.mxu0 %v771
    %1028 = vmatpush.bf16.msra.mxu0 %v767
    %1029 = vmatmul.bf16.gmra.mxu0 %v952
    %v1030 = vpop.f32.mrf.mxu0
    %v1031 = vadd.f32 0.0, %v1030
    %v1032 = vpop.f32.mrf.mxu0
    %1033 = vdwg.mxu0
    %v1034 = vadd.f32 %v978, %v992
    %v1035 = vadd.f32 %v979, %v1005
    %v1036 = vadd.f32 %v980, %v1018
    %v1037 = vadd.f32 %v981, %v1031
    %v1038 = vxor.u32 %v1034, 2147483648
    %v1039 = vxor.u32 %v1035, 2147483648
    %v1040 = vxor.u32 %v1036, 2147483648
    %v1041 = vmul.f32 %v1038, 1.442695
    %v1042 = vpow.pop %v1041
    %v1043 = vmul.f32 %v1039, 1.442695
    %v1044 = vpow.pop %v1043
    %v1045 = vmul.f32 %v1040, 1.442695
    %v1046 = vpow.pop %v1045
    %v1047 = vadd.f32 %v1042, 1.0
    %v1048 = vadd.f32 %v1044, 1.0
    %v1049 = vadd.f32 %v1046, 1.0
    %v1050 = vrcp.pop %v1047
    %v1051 = vmul.f32 %v1047, %v1050
    %v1052 = vsub.f32 1.0, %v1051
    %v1053 = vmul.f32 %v1050, %v1052
    %v1054 = vadd.f32 %v1050, %v1053
    %vm1055 = vweird.f32 %v1047
    %vm1056 = vweird.f32 %v1050
    %vm1057 = vmor %vm1055, %vm1056
    %v1058 = vsel %vm1057, %v1050, %v1054
    %v1059 = vand.u32 2147483647, %v1047
    %vm1060 = vcmp.eq.f32.partialorder %v1059, 8.507059e+37
    %v1061 = vand.u32 %v1047, 2147483648
    %v1062 = vor.u32 1.1754944e-38, %v1061
    %v1063 = vsel %vm1060, %v1062, %v1058
    %v1064 = vmul.f32 1.0, %v1063
    %v1065 = vrcp.pop %v1048
    %v1066 = vmul.f32 %v1048, %v1065
    %v1067 = vsub.f32 1.0, %v1066
    %v1068 = vmul.f32 %v1065, %v1067
    %v1069 = vadd.f32 %v1065, %v1068
    %vm1070 = vweird.f32 %v1048
    %vm1071 = vweird.f32 %v1065
    %vm1072 = vmor %vm1070, %vm1071
    %v1073 = vsel %vm1072, %v1065, %v1069
    %v1074 = vand.u32 2147483647, %v1048
    %vm1075 = vcmp.eq.f32.partialorder %v1074, 8.507059e+37
    %v1076 = vand.u32 %v1048, 2147483648
    %v1077 = vor.u32 1.1754944e-38, %v1076
    %v1078 = vsel %vm1075, %v1077, %v1073
    %v1079 = vmul.f32 1.0, %v1078
    %v1080 = vrcp.pop %v1049
    %v1081 = vmul.f32 %v1049, %v1080
    %v1082 = vsub.f32 1.0, %v1081
    %v1083 = vmul.f32 %v1080, %v1082
    %v1084 = vadd.f32 %v1080, %v1083
    %vm1085 = vweird.f32 %v1049
    %vm1086 = vweird.f32 %v1080
    %vm1087 = vmor %vm1085, %vm1086
    %v1088 = vsel %vm1087, %v1080, %v1084
    %v1089 = vand.u32 2147483647, %v1049
    %vm1090 = vcmp.eq.f32.partialorder %v1089, 8.507059e+37
    %v1091 = vand.u32 %v1049, 2147483648
    %v1092 = vor.u32 1.1754944e-38, %v1091
    %v1093 = vsel %vm1090, %v1092, %v1088
    %v1094 = vmul.f32 1.0, %v1093
    %v1095 = vtanh.pop %v1037
    %v1096 = vmul.f32 %v1079, %v976
    %v1097 = vmul.f32 %v1064, %v1095
    %v1098 = vadd.f32 %v1096, %v1097
    %1099 = vst [vmem:[#allocation4] sm:$0xff] %v1098
    %v1100 = vtanh.pop %v1098
    %v1101 = vmul.f32 %v1094, %v1100
    %v1102 = vpack.c.bf16 %v1101, %v1101
    %1103 = vst [vmem:[#allocation3] sm:$0xf] %v1102
    %s1104 = scalar_lea.vmem %s1, 16
    %v1105 = vld [vmem:[%s1104] sm:$0xff]
    %v1106 = vld [vmem:[#allocation3] sm:$0xf]
    %v1107 = vld [vmem:[#allocation4] sm:$0xff]
    %v1108 = vpack.c.bf16 %v1107, %v1107
    %1109 = vmatpush.bf16.msra.mxu0 %v633
    %1110 = vmatpush.bf16.msra.mxu0 %v632
    %1111 = vmatpush.bf16.msra.mxu0 %v631
    %1112 = vmatpush.bf16.msra.mxu0 %v630
    %1113 = vmatpush.bf16.msra.mxu0 %v629
    %1114 = vmatpush.bf16.msra.mxu0 %v628
    %1115 = vmatpush.bf16.msra.mxu0 %v627
    %1116 = vmatpush.bf16.msra.mxu0 %v626
    %1117 = vmatmul.bf16.gmra.mxu0 %v1108
    %v1118 = vpop.f32.mrf.mxu0
    %v1119 = vadd.f32 %v588, %v1118
    %v1120 = vpop.f32.mrf.mxu0
    %1121 = vdwg.mxu0
    %v1122 = vtanh.pop %v1119
    %v1123 = vsub.f32 %v1107, %v1122
    %1125 = vset.pattern.permute.xlu0 0
    %1126 = vperm.xlu0 %1125, %v1105
    %v1127 = vpop.permute.xlu0 %1126
    %v1129 = vmul.f32 %v1127, %v1122
    %v1130 = vadd.f32 %v1123, %v1129
    %s1131 = scalar_lea.vmem [#allocation2], 64
    %v1132 = vld [vmem:[%s1131] sm:$0xff]
    %v1133 = vld [vmem:[%s1131 + $0x8] sm:$0xff]
    %v1134 = vld [vmem:[%s1131 + $0x10] sm:$0xff]
    %v1135 = vld [vmem:[%s1131 + $0x18] sm:$0xff]
    %1136 = vmatpush.bf16.msra.mxu0 %v792
    %1137 = vmatpush.bf16.msra.mxu0 %v788
    %1138 = vmatpush.bf16.msra.mxu0 %v784
    %1139 = vmatpush.bf16.msra.mxu0 %v780
    %1140 = vmatpush.bf16.msra.mxu0 %v776
    %1141 = vmatpush.bf16.msra.mxu0 %v772
    %1142 = vmatpush.bf16.msra.mxu0 %v768
    %1143 = vmatpush.bf16.msra.mxu0 %v764
    %1144 = vmatmul.bf16.gmra.mxu0 %v1106
    %v1145 = vpop.f32.mrf.mxu0
    %v1146 = vadd.f32 0.0, %v1145
    %v1147 = vpop.f32.mrf.mxu0
    %1148 = vdwg.mxu0
    %1149 = vmatpush.bf16.msra.mxu0 %v793
    %1150 = vmatpush.bf16.msra.mxu0 %v789
    %1151 = vmatpush.bf16.msra.mxu0 %v785
    %1152 = vmatpush.bf16.msra.mxu0 %v781
    %1153 = vmatpush.bf16.msra.mxu0 %v777
    %1154 = vmatpush.bf16.msra.mxu0 %v773
    %1155 = vmatpush.bf16.msra.mxu0 %v769
    %1156 = vmatpush.bf16.msra.mxu0 %v765
    %1157 = vmatmul.bf16.gmra.mxu0 %v1106
    %v1158 = vpop.f32.mrf.mxu0
    %v1159 = vadd.f32 0.0, %v1158
    %v1160 = vpop.f32.mrf.mxu0
    %1161 = vdwg.mxu0
    %1162 = vmatpush.bf16.msra.mxu0 %v794
    %1163 = vmatpush.bf16.msra.mxu0 %v790
    %1164 = vmatpush.bf16.msra.mxu0 %v786
    %1165 = vmatpush.bf16.msra.mxu0 %v782
    %1166 = vmatpush.bf16.msra.mxu0 %v778
    %1167 = vmatpush.bf16.msra.mxu0 %v774
    %1168 = vmatpush.bf16.msra.mxu0 %v770
    %1169 = vmatpush.bf16.msra.mxu0 %v766
    %1170 = vmatmul.bf16.gmra.mxu0 %v1106
    %v1171 = vpop.f32.mrf.mxu0
    %v1172 = vadd.f32 0.0, %v1171
    %v1173 = vpop.f32.mrf.mxu0
    %1174 = vdwg.mxu0
    %1175 = vmatpush.bf16.msra.mxu0 %v795
    %1176 = vmatpush.bf16.msra.mxu0 %v791
    %1177 = vmatpush.bf16.msra.mxu0 %v787
    %1178 = vmatpush.bf16.msra.mxu0 %v783
    %1179 = vmatpush.bf16.msra.mxu0 %v779
    %1180 = vmatpush.bf16.msra.mxu0 %v775
    %1181 = vmatpush.bf16.msra.mxu0 %v771
    %1182 = vmatpush.bf16.msra.mxu0 %v767
    %1183 = vmatmul.bf16.gmra.mxu0 %v1106
    %v1184 = vpop.f32.mrf.mxu0
    %v1185 = vadd.f32 0.0, %v1184
    %v1186 = vpop.f32.mrf.mxu0
    %1187 = vdwg.mxu0
    %v1188 = vadd.f32 %v1132, %v1146
    %v1189 = vadd.f32 %v1133, %v1159
    %v1190 = vadd.f32 %v1134, %v1172
    %v1191 = vadd.f32 %v1135, %v1185
    %v1192 = vxor.u32 %v1188, 2147483648
    %v1193 = vxor.u32 %v1189, 2147483648
    %v1194 = vxor.u32 %v1190, 2147483648
    %v1195 = vmul.f32 %v1192, 1.442695
    %v1196 = vpow.pop %v1195
    %v1197 = vmul.f32 %v1193, 1.442695
    %v1198 = vpow.pop %v1197
    %v1199 = vmul.f32 %v1194, 1.442695
    %v1200 = vpow.pop %v1199
    %v1201 = vadd.f32 %v1196, 1.0
    %v1202 = vadd.f32 %v1198, 1.0
    %v1203 = vadd.f32 %v1200, 1.0
    %v1204 = vrcp.pop %v1201
    %v1205 = vmul.f32 %v1201, %v1204
    %v1206 = vsub.f32 1.0, %v1205
    %v1207 = vmul.f32 %v1204, %v1206
    %v1208 = vadd.f32 %v1204, %v1207
    %vm1209 = vweird.f32 %v1201
    %vm1210 = vweird.f32 %v1204
    %vm1211 = vmor %vm1209, %vm1210
    %v1212 = vsel %vm1211, %v1204, %v1208
    %v1213 = vand.u32 2147483647, %v1201
    %vm1214 = vcmp.eq.f32.partialorder %v1213, 8.507059e+37
    %v1215 = vand.u32 %v1201, 2147483648
    %v1216 = vor.u32 1.1754944e-38, %v1215
    %v1217 = vsel %vm1214, %v1216, %v1212
    %v1218 = vmul.f32 1.0, %v1217
    %v1219 = vrcp.pop %v1202
    %v1220 = vmul.f32 %v1202, %v1219
    %v1221 = vsub.f32 1.0, %v1220
    %v1222 = vmul.f32 %v1219, %v1221
    %v1223 = vadd.f32 %v1219, %v1222
    %vm1224 = vweird.f32 %v1202
    %vm1225 = vweird.f32 %v1219
    %vm1226 = vmor %vm1224, %vm1225
    %v1227 = vsel %vm1226, %v1219, %v1223
    %v1228 = vand.u32 2147483647, %v1202
    %vm1229 = vcmp.eq.f32.partialorder %v1228, 8.507059e+37
    %v1230 = vand.u32 %v1202, 2147483648
    %v1231 = vor.u32 1.1754944e-38, %v1230
    %v1232 = vsel %vm1229, %v1231, %v1227
    %v1233 = vmul.f32 1.0, %v1232
    %v1234 = vrcp.pop %v1203
    %v1235 = vmul.f32 %v1203, %v1234
    %v1236 = vsub.f32 1.0, %v1235
    %v1237 = vmul.f32 %v1234, %v1236
    %v1238 = vadd.f32 %v1234, %v1237
    %vm1239 = vweird.f32 %v1203
    %vm1240 = vweird.f32 %v1234
    %vm1241 = vmor %vm1239, %vm1240
    %v1242 = vsel %vm1241, %v1234, %v1238
    %v1243 = vand.u32 2147483647, %v1203
    %vm1244 = vcmp.eq.f32.partialorder %v1243, 8.507059e+37
    %v1245 = vand.u32 %v1203, 2147483648
    %v1246 = vor.u32 1.1754944e-38, %v1245
    %v1247 = vsel %vm1244, %v1246, %v1242
    %v1248 = vmul.f32 1.0, %v1247
    %v1249 = vtanh.pop %v1191
    %v1250 = vmul.f32 %v1233, %v1130
    %v1251 = vmul.f32 %v1218, %v1249
    %v1252 = vadd.f32 %v1250, %v1251
    %1253 = vst [vmem:[#allocation4] sm:$0xff] %v1252
    %v1254 = vtanh.pop %v1252
    %v1255 = vmul.f32 %v1248, %v1254
    %v1256 = vpack.c.bf16 %v1255, %v1255
    %1257 = vst [vmem:[#allocation3] sm:$0xf] %v1256
    %s1258 = scalar_lea.vmem %s1, 24
    %v1259 = vld [vmem:[%s1258] sm:$0xff]
    %v1260 = vld [vmem:[#allocation3] sm:$0xf]
    %v1261 = vld [vmem:[#allocation4] sm:$0xff]
    %v1262 = vpack.c.bf16 %v1261, %v1261
    %1263 = vmatpush.bf16.msra.mxu0 %v633
    %1264 = vmatpush.bf16.msra.mxu0 %v632
    %1265 = vmatpush.bf16.msra.mxu0 %v631
    %1266 = vmatpush.bf16.msra.mxu0 %v630
    %1267 = vmatpush.bf16.msra.mxu0 %v629
    %1268 = vmatpush.bf16.msra.mxu0 %v628
    %1269 = vmatpush.bf16.msra.mxu0 %v627
    %1270 = vmatpush.bf16.msra.mxu0 %v626
    %1271 = vmatmul.bf16.gmra.mxu0 %v1262
    %v1272 = vpop.f32.mrf.mxu0
    %v1273 = vadd.f32 %v588, %v1272
    %v1274 = vpop.f32.mrf.mxu0
    %1275 = vdwg.mxu0
    %v1276 = vtanh.pop %v1273
    %v1277 = vsub.f32 %v1261, %v1276
    %1279 = vset.pattern.permute.xlu0 0
    %1280 = vperm.xlu0 %1279, %v1259
    %v1281 = vpop.permute.xlu0 %1280
    %v1283 = vmul.f32 %v1281, %v1276
    %v1284 = vadd.f32 %v1277, %v1283
    %s1285 = scalar_lea.vmem [#allocation2], 96
    %v1286 = vld [vmem:[%s1285] sm:$0xff]
    %v1287 = vld [vmem:[%s1285 + $0x8] sm:$0xff]
    %v1288 = vld [vmem:[%s1285 + $0x10] sm:$0xff]
    %v1289 = vld [vmem:[%s1285 + $0x18] sm:$0xff]
    %1290 = vmatpush.bf16.msra.mxu0 %v792
    %1291 = vmatpush.bf16.msra.mxu0 %v788
    %1292 = vmatpush.bf16.msra.mxu0 %v784
    %1293 = vmatpush.bf16.msra.mxu0 %v780
    %1294 = vmatpush.bf16.msra.mxu0 %v776
    %1295 = vmatpush.bf16.msra.mxu0 %v772
    %1296 = vmatpush.bf16.msra.mxu0 %v768
    %1297 = vmatpush.bf16.msra.mxu0 %v764
    %1298 = vmatmul.bf16.gmra.mxu0 %v1260
    %v1299 = vpop.f32.mrf.mxu0
    %v1300 = vadd.f32 0.0, %v1299
    %v1301 = vpop.f32.mrf.mxu0
    %1302 = vdwg.mxu0
    %1303 = vmatpush.bf16.msra.mxu0 %v793
    %1304 = vmatpush.bf16.msra.mxu0 %v789
    %1305 = vmatpush.bf16.msra.mxu0 %v785
    %1306 = vmatpush.bf16.msra.mxu0 %v781
    %1307 = vmatpush.bf16.msra.mxu0 %v777
    %1308 = vmatpush.bf16.msra.mxu0 %v773
    %1309 = vmatpush.bf16.msra.mxu0 %v769
    %1310 = vmatpush.bf16.msra.mxu0 %v765
    %1311 = vmatmul.bf16.gmra.mxu0 %v1260
    %v1312 = vpop.f32.mrf.mxu0
    %v1313 = vadd.f32 0.0, %v1312
    %v1314 = vpop.f32.mrf.mxu0
    %1315 = vdwg.mxu0
    %1316 = vmatpush.bf16.msra.mxu0 %v794
    %1317 = vmatpush.bf16.msra.mxu0 %v790
    %1318 = vmatpush.bf16.msra.mxu0 %v786
    %1319 = vmatpush.bf16.msra.mxu0 %v782
    %1320 = vmatpush.bf16.msra.mxu0 %v778
    %1321 = vmatpush.bf16.msra.mxu0 %v774
    %1322 = vmatpush.bf16.msra.mxu0 %v770
    %1323 = vmatpush.bf16.msra.mxu0 %v766
    %1324 = vmatmul.bf16.gmra.mxu0 %v1260
    %v1325 = vpop.f32.mrf.mxu0
    %v1326 = vadd.f32 0.0, %v1325
    %v1327 = vpop.f32.mrf.mxu0
    %1328 = vdwg.mxu0
    %1329 = vmatpush.bf16.msra.mxu0 %v795
    %1330 = vmatpush.bf16.msra.mxu0 %v791
    %1331 = vmatpush.bf16.msra.mxu0 %v787
    %1332 = vmatpush.bf16.msra.mxu0 %v783
    %1333 = vmatpush.bf16.msra.mxu0 %v779
    %1334 = vmatpush.bf16.msra.mxu0 %v775
    %1335 = vmatpush.bf16.msra.mxu0 %v771
    %1336 = vmatpush.bf16.msra.mxu0 %v767
    %1337 = vmatmul.bf16.gmra.mxu0 %v1260
    %v1338 = vpop.f32.mrf.mxu0
    %v1339 = vadd.f32 0.0, %v1338
    %v1340 = vpop.f32.mrf.mxu0
    %1341 = vdwg.mxu0
    %v1342 = vadd.f32 %v1286, %v1300
    %v1343 = vadd.f32 %v1287, %v1313
    %v1344 = vadd.f32 %v1288, %v1326
    %v1345 = vadd.f32 %v1289, %v1339
    %v1346 = vxor.u32 %v1342, 2147483648
    %v1347 = vxor.u32 %v1343, 2147483648
    %v1348 = vxor.u32 %v1344, 2147483648
    %v1349 = vmul.f32 %v1346, 1.442695
    %v1350 = vpow.pop %v1349
    %v1351 = vmul.f32 %v1347, 1.442695
    %v1352 = vpow.pop %v1351
    %v1353 = vmul.f32 %v1348, 1.442695
    %v1354 = vpow.pop %v1353
    %v1355 = vadd.f32 %v1350, 1.0
    %v1356 = vadd.f32 %v1352, 1.0
    %v1357 = vadd.f32 %v1354, 1.0
    %v1358 = vrcp.pop %v1355
    %v1359 = vmul.f32 %v1355, %v1358
    %v1360 = vsub.f32 1.0, %v1359
    %v1361 = vmul.f32 %v1358, %v1360
    %v1362 = vadd.f32 %v1358, %v1361
    %vm1363 = vweird.f32 %v1355
    %vm1364 = vweird.f32 %v1358
    %vm1365 = vmor %vm1363, %vm1364
    %v1366 = vsel %vm1365, %v1358, %v1362
    %v1367 = vand.u32 2147483647, %v1355
    %vm1368 = vcmp.eq.f32.partialorder %v1367, 8.507059e+37
    %v1369 = vand.u32 %v1355, 2147483648
    %v1370 = vor.u32 1.1754944e-38, %v1369
    %v1371 = vsel %vm1368, %v1370, %v1366
    %v1372 = vmul.f32 1.0, %v1371
    %v1373 = vrcp.pop %v1356
    %v1374 = vmul.f32 %v1356, %v1373
    %v1375 = vsub.f32 1.0, %v1374
    %v1376 = vmul.f32 %v1373, %v1375
    %v1377 = vadd.f32 %v1373, %v1376
    %vm1378 = vweird.f32 %v1356
    %vm1379 = vweird.f32 %v1373
    %vm1380 = vmor %vm1378, %vm1379
    %v1381 = vsel %vm1380, %v1373, %v1377
    %v1382 = vand.u32 2147483647, %v1356
    %vm1383 = vcmp.eq.f32.partialorder %v1382, 8.507059e+37
    %v1384 = vand.u32 %v1356, 2147483648
    %v1385 = vor.u32 1.1754944e-38, %v1384
    %v1386 = vsel %vm1383, %v1385, %v1381
    %v1387 = vmul.f32 1.0, %v1386
    %v1388 = vrcp.pop %v1357
    %v1389 = vmul.f32 %v1357, %v1388
    %v1390 = vsub.f32 1.0, %v1389
    %v1391 = vmul.f32 %v1388, %v1390
    %v1392 = vadd.f32 %v1388, %v1391
    %vm1393 = vweird.f32 %v1357
    %vm1394 = vweird.f32 %v1388
    %vm1395 = vmor %vm1393, %vm1394
    %v1396 = vsel %vm1395, %v1388, %v1392
    %v1397 = vand.u32 2147483647, %v1357
    %vm1398 = vcmp.eq.f32.partialorder %v1397, 8.507059e+37
    %v1399 = vand.u32 %v1357, 2147483648
    %v1400 = vor.u32 1.1754944e-38, %v1399
    %v1401 = vsel %vm1398, %v1400, %v1396
    %v1402 = vmul.f32 1.0, %v1401
    %v1403 = vtanh.pop %v1345
    %v1404 = vmul.f32 %v1387, %v1284
    %v1405 = vmul.f32 %v1372, %v1403
    %v1406 = vadd.f32 %v1404, %v1405
    %1407 = vst [vmem:[#allocation4] sm:$0xff] %v1406
    %v1408 = vtanh.pop %v1406
    %v1409 = vmul.f32 %v1402, %v1408
    %v1410 = vpack.c.bf16 %v1409, %v1409
    %1411 = vst [vmem:[#allocation3] sm:$0xf] %v1410
    %s1412 = scalar_lea.vmem %s1, 32
    %v1413 = vld [vmem:[%s1412] sm:$0xff]
    %v1414 = vld [vmem:[#allocation3] sm:$0xf]
    %v1415 = vld [vmem:[#allocation4] sm:$0xff]
    %v1416 = vpack.c.bf16 %v1415, %v1415
    %1417 = vmatpush.bf16.msra.mxu0 %v633
    %1418 = vmatpush.bf16.msra.mxu0 %v632
    %1419 = vmatpush.bf16.msra.mxu0 %v631
    %1420 = vmatpush.bf16.msra.mxu0 %v630
    %1421 = vmatpush.bf16.msra.mxu0 %v629
    %1422 = vmatpush.bf16.msra.mxu0 %v628
    %1423 = vmatpush.bf16.msra.mxu0 %v627
    %1424 = vmatpush.bf16.msra.mxu0 %v626
    %1425 = vmatmul.bf16.gmra.mxu0 %v1416
    %v1426 = vpop.f32.mrf.mxu0
    %v1427 = vadd.f32 %v588, %v1426
    %v1428 = vpop.f32.mrf.mxu0
    %1429 = vdwg.mxu0
    %v1430 = vtanh.pop %v1427
    %v1431 = vsub.f32 %v1415, %v1430
    %1433 = vset.pattern.permute.xlu0 0
    %1434 = vperm.xlu0 %1433, %v1413
    %v1435 = vpop.permute.xlu0 %1434
    %v1437 = vmul.f32 %v1435, %v1430
    %v1438 = vadd.f32 %v1431, %v1437
    %s1439 = scalar_lea.vmem [#allocation2], 128
    %v1440 = vld [vmem:[%s1439] sm:$0xff]
    %v1441 = vld [vmem:[%s1439 + $0x8] sm:$0xff]
    %v1442 = vld [vmem:[%s1439 + $0x10] sm:$0xff]
    %v1443 = vld [vmem:[%s1439 + $0x18] sm:$0xff]
    %1444 = vmatpush.bf16.msra.mxu0 %v792
    %1445 = vmatpush.bf16.msra.mxu0 %v788
    %1446 = vmatpush.bf16.msra.mxu0 %v784
    %1447 = vmatpush.bf16.msra.mxu0 %v780
    %1448 = vmatpush.bf16.msra.mxu0 %v776
    %1449 = vmatpush.bf16.msra.mxu0 %v772
    %1450 = vmatpush.bf16.msra.mxu0 %v768
    %1451 = vmatpush.bf16.msra.mxu0 %v764
    %1452 = vmatmul.bf16.gmra.mxu0 %v1414
    %v1453 = vpop.f32.mrf.mxu0
    %v1454 = vadd.f32 0.0, %v1453
    %v1455 = vpop.f32.mrf.mxu0
    %1456 = vdwg.mxu0
    %1457 = vmatpush.bf16.msra.mxu0 %v793
    %1458 = vmatpush.bf16.msra.mxu0 %v789
    %1459 = vmatpush.bf16.msra.mxu0 %v785
    %1460 = vmatpush.bf16.msra.mxu0 %v781
    %1461 = vmatpush.bf16.msra.mxu0 %v777
    %1462 = vmatpush.bf16.msra.mxu0 %v773
    %1463 = vmatpush.bf16.msra.mxu0 %v769
    %1464 = vmatpush.bf16.msra.mxu0 %v765
    %1465 = vmatmul.bf16.gmra.mxu0 %v1414
    %v1466 = vpop.f32.mrf.mxu0
    %v1467 = vadd.f32 0.0, %v1466
    %v1468 = vpop.f32.mrf.mxu0
    %1469 = vdwg.mxu0
    %1470 = vmatpush.bf16.msra.mxu0 %v794
    %1471 = vmatpush.bf16.msra.mxu0 %v790
    %1472 = vmatpush.bf16.msra.mxu0 %v786
    %1473 = vmatpush.bf16.msra.mxu0 %v782
    %1474 = vmatpush.bf16.msra.mxu0 %v778
    %1475 = vmatpush.bf16.msra.mxu0 %v774
    %1476 = vmatpush.bf16.msra.mxu0 %v770
    %1477 = vmatpush.bf16.msra.mxu0 %v766
    %1478 = vmatmul.bf16.gmra.mxu0 %v1414
    %v1479 = vpop.f32.mrf.mxu0
    %v1480 = vadd.f32 0.0, %v1479
    %v1481 = vpop.f32.mrf.mxu0
    %1482 = vdwg.mxu0
    %1483 = vmatpush.bf16.msra.mxu0 %v795
    %1484 = vmatpush.bf16.msra.mxu0 %v791
    %1485 = vmatpush.bf16.msra.mxu0 %v787
    %1486 = vmatpush.bf16.msra.mxu0 %v783
    %1487 = vmatpush.bf16.msra.mxu0 %v779
    %1488 = vmatpush.bf16.msra.mxu0 %v775
    %1489 = vmatpush.bf16.msra.mxu0 %v771
    %1490 = vmatpush.bf16.msra.mxu0 %v767
    %1491 = vmatmul.bf16.gmra.mxu0 %v1414
    %v1492 = vpop.f32.mrf.mxu0
    %v1493 = vadd.f32 0.0, %v1492
    %v1494 = vpop.f32.mrf.mxu0
    %1495 = vdwg.mxu0
    %v1496 = vadd.f32 %v1440, %v1454
    %v1497 = vadd.f32 %v1441, %v1467
    %v1498 = vadd.f32 %v1442, %v1480
    %v1499 = vadd.f32 %v1443, %v1493
    %v1500 = vxor.u32 %v1496, 2147483648
    %v1501 = vxor.u32 %v1497, 2147483648
    %v1502 = vxor.u32 %v1498, 2147483648
    %v1503 = vmul.f32 %v1500, 1.442695
    %v1504 = vpow.pop %v1503
    %v1505 = vmul.f32 %v1501, 1.442695
    %v1506 = vpow.pop %v1505
    %v1507 = vmul.f32 %v1502, 1.442695
    %v1508 = vpow.pop %v1507
    %v1509 = vadd.f32 %v1504, 1.0
    %v1510 = vadd.f32 %v1506, 1.0
    %v1511 = vadd.f32 %v1508, 1.0
    %v1512 = vrcp.pop %v1509
    %v1513 = vmul.f32 %v1509, %v1512
    %v1514 = vsub.f32 1.0, %v1513
    %v1515 = vmul.f32 %v1512, %v1514
    %v1516 = vadd.f32 %v1512, %v1515
    %vm1517 = vweird.f32 %v1509
    %vm1518 = vweird.f32 %v1512
    %vm1519 = vmor %vm1517, %vm1518
    %v1520 = vsel %vm1519, %v1512, %v1516
    %v1521 = vand.u32 2147483647, %v1509
    %vm1522 = vcmp.eq.f32.partialorder %v1521, 8.507059e+37
    %v1523 = vand.u32 %v1509, 2147483648
    %v1524 = vor.u32 1.1754944e-38, %v1523
    %v1525 = vsel %vm1522, %v1524, %v1520
    %v1526 = vmul.f32 1.0, %v1525
    %v1527 = vrcp.pop %v1510
    %v1528 = vmul.f32 %v1510, %v1527
    %v1529 = vsub.f32 1.0, %v1528
    %v1530 = vmul.f32 %v1527, %v1529
    %v1531 = vadd.f32 %v1527, %v1530
    %vm1532 = vweird.f32 %v1510
    %vm1533 = vweird.f32 %v1527
    %vm1534 = vmor %vm1532, %vm1533
    %v1535 = vsel %vm1534, %v1527, %v1531
    %v1536 = vand.u32 2147483647, %v1510
    %vm1537 = vcmp.eq.f32.partialorder %v1536, 8.507059e+37
    %v1538 = vand.u32 %v1510, 2147483648
    %v1539 = vor.u32 1.1754944e-38, %v1538
    %v1540 = vsel %vm1537, %v1539, %v1535
    %v1541 = vmul.f32 1.0, %v1540
    %v1542 = vrcp.pop %v1511
    %v1543 = vmul.f32 %v1511, %v1542
    %v1544 = vsub.f32 1.0, %v1543
    %v1545 = vmul.f32 %v1542, %v1544
    %v1546 = vadd.f32 %v1542, %v1545
    %vm1547 = vweird.f32 %v1511
    %vm1548 = vweird.f32 %v1542
    %vm1549 = vmor %vm1547, %vm1548
    %v1550 = vsel %vm1549, %v1542, %v1546
    %v1551 = vand.u32 2147483647, %v1511
    %vm1552 = vcmp.eq.f32.partialorder %v1551, 8.507059e+37
    %v1553 = vand.u32 %v1511, 2147483648
    %v1554 = vor.u32 1.1754944e-38, %v1553
    %v1555 = vsel %vm1552, %v1554, %v1550
    %v1556 = vmul.f32 1.0, %v1555
    %v1557 = vtanh.pop %v1499
    %v1558 = vmul.f32 %v1541, %v1438
    %v1559 = vmul.f32 %v1526, %v1557
    %v1560 = vadd.f32 %v1558, %v1559
    %1561 = vst [vmem:[#allocation4] sm:$0xff] %v1560
    %v1562 = vtanh.pop %v1560
    %v1563 = vmul.f32 %v1556, %v1562
    %v1564 = vpack.c.bf16 %v1563, %v1563
    %1565 = vst [vmem:[#allocation3] sm:$0xf] %v1564
    %s1566 = scalar_lea.vmem %s1, 40
    %v1567 = vld [vmem:[%s1566] sm:$0xff]
    %v1568 = vld [vmem:[#allocation3] sm:$0xf]
    %v1569 = vld [vmem:[#allocation4] sm:$0xff]
    %v1570 = vpack.c.bf16 %v1569, %v1569
    %1571 = vmatpush.bf16.msra.mxu0 %v633
    %1572 = vmatpush.bf16.msra.mxu0 %v632
    %1573 = vmatpush.bf16.msra.mxu0 %v631
    %1574 = vmatpush.bf16.msra.mxu0 %v630
    %1575 = vmatpush.bf16.msra.mxu0 %v629
    %1576 = vmatpush.bf16.msra.mxu0 %v628
    %1577 = vmatpush.bf16.msra.mxu0 %v627
    %1578 = vmatpush.bf16.msra.mxu0 %v626
    %1579 = vmatmul.bf16.gmra.mxu0 %v1570
    %v1580 = vpop.f32.mrf.mxu0
    %v1581 = vadd.f32 %v588, %v1580
    %v1582 = vpop.f32.mrf.mxu0
    %1583 = vdwg.mxu0
    %v1584 = vtanh.pop %v1581
    %v1585 = vsub.f32 %v1569, %v1584
    %1587 = vset.pattern.permute.xlu0 0
    %1588 = vperm.xlu0 %1587, %v1567
    %v1589 = vpop.permute.xlu0 %1588
    %v1591 = vmul.f32 %v1589, %v1584
    %v1592 = vadd.f32 %v1585, %v1591
    %s1593 = scalar_lea.vmem [#allocation2], 160
    %v1594 = vld [vmem:[%s1593] sm:$0xff]
    %v1595 = vld [vmem:[%s1593 + $0x8] sm:$0xff]
    %v1596 = vld [vmem:[%s1593 + $0x10] sm:$0xff]
    %v1597 = vld [vmem:[%s1593 + $0x18] sm:$0xff]
    %1598 = vmatpush.bf16.msra.mxu0 %v792
    %1599 = vmatpush.bf16.msra.mxu0 %v788
    %1600 = vmatpush.bf16.msra.mxu0 %v784
    %1601 = vmatpush.bf16.msra.mxu0 %v780
    %1602 = vmatpush.bf16.msra.mxu0 %v776
    %1603 = vmatpush.bf16.msra.mxu0 %v772
    %1604 = vmatpush.bf16.msra.mxu0 %v768
    %1605 = vmatpush.bf16.msra.mxu0 %v764
    %1606 = vmatmul.bf16.gmra.mxu0 %v1568
    %v1607 = vpop.f32.mrf.mxu0
    %v1608 = vadd.f32 0.0, %v1607
    %v1609 = vpop.f32.mrf.mxu0
    %1610 = vdwg.mxu0
    %1611 = vmatpush.bf16.msra.mxu0 %v793
    %1612 = vmatpush.bf16.msra.mxu0 %v789
    %1613 = vmatpush.bf16.msra.mxu0 %v785
    %1614 = vmatpush.bf16.msra.mxu0 %v781
    %1615 = vmatpush.bf16.msra.mxu0 %v777
    %1616 = vmatpush.bf16.msra.mxu0 %v773
    %1617 = vmatpush.bf16.msra.mxu0 %v769
    %1618 = vmatpush.bf16.msra.mxu0 %v765
    %1619 = vmatmul.bf16.gmra.mxu0 %v1568
    %v1620 = vpop.f32.mrf.mxu0
    %v1621 = vadd.f32 0.0, %v1620
    %v1622 = vpop.f32.mrf.mxu0
    %1623 = vdwg.mxu0
    %1624 = vmatpush.bf16.msra.mxu0 %v794
    %1625 = vmatpush.bf16.msra.mxu0 %v790
    %1626 = vmatpush.bf16.msra.mxu0 %v786
    %1627 = vmatpush.bf16.msra.mxu0 %v782
    %1628 = vmatpush.bf16.msra.mxu0 %v778
    %1629 = vmatpush.bf16.msra.mxu0 %v774
    %1630 = vmatpush.bf16.msra.mxu0 %v770
    %1631 = vmatpush.bf16.msra.mxu0 %v766
    %1632 = vmatmul.bf16.gmra.mxu0 %v1568
    %v1633 = vpop.f32.mrf.mxu0
    %v1634 = vadd.f32 0.0, %v1633
    %v1635 = vpop.f32.mrf.mxu0
    %1636 = vdwg.mxu0
    %1637 = vmatpush.bf16.msra.mxu0 %v795
    %1638 = vmatpush.bf16.msra.mxu0 %v791
    %1639 = vmatpush.bf16.msra.mxu0 %v787
    %1640 = vmatpush.bf16.msra.mxu0 %v783
    %1641 = vmatpush.bf16.msra.mxu0 %v779
    %1642 = vmatpush.bf16.msra.mxu0 %v775
    %1643 = vmatpush.bf16.msra.mxu0 %v771
    %1644 = vmatpush.bf16.msra.mxu0 %v767
    %1645 = vmatmul.bf16.gmra.mxu0 %v1568
    %v1646 = vpop.f32.mrf.mxu0
    %v1647 = vadd.f32 0.0, %v1646
    %v1648 = vpop.f32.mrf.mxu0
    %1649 = vdwg.mxu0
    %v1650 = vadd.f32 %v1594, %v1608
    %v1651 = vadd.f32 %v1595, %v1621
    %v1652 = vadd.f32 %v1596, %v1634
    %v1653 = vadd.f32 %v1597, %v1647
    %v1654 = vxor.u32 %v1650, 2147483648
    %v1655 = vxor.u32 %v1651, 2147483648
    %v1656 = vxor.u32 %v1652, 2147483648
    %v1657 = vmul.f32 %v1654, 1.442695
    %v1658 = vpow.pop %v1657
    %v1659 = vmul.f32 %v1655, 1.442695
    %v1660 = vpow.pop %v1659
    %v1661 = vmul.f32 %v1656, 1.442695
    %v1662 = vpow.pop %v1661
    %v1663 = vadd.f32 %v1658, 1.0
    %v1664 = vadd.f32 %v1660, 1.0
    %v1665 = vadd.f32 %v1662, 1.0
    %v1666 = vrcp.pop %v1663
    %v1667 = vmul.f32 %v1663, %v1666
    %v1668 = vsub.f32 1.0, %v1667
    %v1669 = vmul.f32 %v1666, %v1668
    %v1670 = vadd.f32 %v1666, %v1669
    %vm1671 = vweird.f32 %v1663
    %vm1672 = vweird.f32 %v1666
    %vm1673 = vmor %vm1671, %vm1672
    %v1674 = vsel %vm1673, %v1666, %v1670
    %v1675 = vand.u32 2147483647, %v1663
    %vm1676 = vcmp.eq.f32.partialorder %v1675, 8.507059e+37
    %v1677 = vand.u32 %v1663, 2147483648
    %v1678 = vor.u32 1.1754944e-38, %v1677
    %v1679 = vsel %vm1676, %v1678, %v1674
    %v1680 = vmul.f32 1.0, %v1679
    %v1681 = vrcp.pop %v1664
    %v1682 = vmul.f32 %v1664, %v1681
    %v1683 = vsub.f32 1.0, %v1682
    %v1684 = vmul.f32 %v1681, %v1683
    %v1685 = vadd.f32 %v1681, %v1684
    %vm1686 = vweird.f32 %v1664
    %vm1687 = vweird.f32 %v1681
    %vm1688 = vmor %vm1686, %vm1687
    %v1689 = vsel %vm1688, %v1681, %v1685
    %v1690 = vand.u32 2147483647, %v1664
    %vm1691 = vcmp.eq.f32.partialorder %v1690, 8.507059e+37
    %v1692 = vand.u32 %v1664, 2147483648
    %v1693 = vor.u32 1.1754944e-38, %v1692
    %v1694 = vsel %vm1691, %v1693, %v1689
    %v1695 = vmul.f32 1.0, %v1694
    %v1696 = vrcp.pop %v1665
    %v1697 = vmul.f32 %v1665, %v1696
    %v1698 = vsub.f32 1.0, %v1697
    %v1699 = vmul.f32 %v1696, %v1698
    %v1700 = vadd.f32 %v1696, %v1699
    %vm1701 = vweird.f32 %v1665
    %vm1702 = vweird.f32 %v1696
    %vm1703 = vmor %vm1701, %vm1702
    %v1704 = vsel %vm1703, %v1696, %v1700
    %v1705 = vand.u32 2147483647, %v1665
    %vm1706 = vcmp.eq.f32.partialorder %v1705, 8.507059e+37
    %v1707 = vand.u32 %v1665, 2147483648
    %v1708 = vor.u32 1.1754944e-38, %v1707
    %v1709 = vsel %vm1706, %v1708, %v1704
    %v1710 = vmul.f32 1.0, %v1709
    %v1711 = vtanh.pop %v1653
    %v1712 = vmul.f32 %v1695, %v1592
    %v1713 = vmul.f32 %v1680, %v1711
    %v1714 = vadd.f32 %v1712, %v1713
    %1715 = vst [vmem:[#allocation4] sm:$0xff] %v1714
    %v1716 = vtanh.pop %v1714
    %v1717 = vmul.f32 %v1710, %v1716
    %v1718 = vpack.c.bf16 %v1717, %v1717
    %1719 = vst [vmem:[#allocation3] sm:$0xf] %v1718
    %s1720 = scalar_lea.vmem %s1, 48
    %v1721 = vld [vmem:[%s1720] sm:$0xff]
    %v1722 = vld [vmem:[#allocation3] sm:$0xf]
    %v1723 = vld [vmem:[#allocation4] sm:$0xff]
    %v1724 = vpack.c.bf16 %v1723, %v1723
    %1725 = vmatpush.bf16.msra.mxu0 %v633
    %1726 = vmatpush.bf16.msra.mxu0 %v632
    %1727 = vmatpush.bf16.msra.mxu0 %v631
    %1728 = vmatpush.bf16.msra.mxu0 %v630
    %1729 = vmatpush.bf16.msra.mxu0 %v629
    %1730 = vmatpush.bf16.msra.mxu0 %v628
    %1731 = vmatpush.bf16.msra.mxu0 %v627
    %1732 = vmatpush.bf16.msra.mxu0 %v626
    %1733 = vmatmul.bf16.gmra.mxu0 %v1724
    %v1734 = vpop.f32.mrf.mxu0
    %v1735 = vadd.f32 %v588, %v1734
    %v1736 = vpop.f32.mrf.mxu0
    %1737 = vdwg.mxu0
    %v1738 = vtanh.pop %v1735
    %v1739 = vsub.f32 %v1723, %v1738
    %1741 = vset.pattern.permute.xlu0 0
    %1742 = vperm.xlu0 %1741, %v1721
    %v1743 = vpop.permute.xlu0 %1742
    %v1745 = vmul.f32 %v1743, %v1738
    %v1746 = vadd.f32 %v1739, %v1745
    %s1747 = scalar_lea.vmem [#allocation2], 192
    %v1748 = vld [vmem:[%s1747] sm:$0xff]
    %v1749 = vld [vmem:[%s1747 + $0x8] sm:$0xff]
    %v1750 = vld [vmem:[%s1747 + $0x10] sm:$0xff]
    %v1751 = vld [vmem:[%s1747 + $0x18] sm:$0xff]
    %1752 = vmatpush.bf16.msra.mxu0 %v792
    %1753 = vmatpush.bf16.msra.mxu0 %v788
    %1754 = vmatpush.bf16.msra.mxu0 %v784
    %1755 = vmatpush.bf16.msra.mxu0 %v780
    %1756 = vmatpush.bf16.msra.mxu0 %v776
    %1757 = vmatpush.bf16.msra.mxu0 %v772
    %1758 = vmatpush.bf16.msra.mxu0 %v768
    %1759 = vmatpush.bf16.msra.mxu0 %v764
    %1760 = vmatmul.bf16.gmra.mxu0 %v1722
    %v1761 = vpop.f32.mrf.mxu0
    %v1762 = vadd.f32 0.0, %v1761
    %v1763 = vpop.f32.mrf.mxu0
    %1764 = vdwg.mxu0
    %1765 = vmatpush.bf16.msra.mxu0 %v793
    %1766 = vmatpush.bf16.msra.mxu0 %v789
    %1767 = vmatpush.bf16.msra.mxu0 %v785
    %1768 = vmatpush.bf16.msra.mxu0 %v781
    %1769 = vmatpush.bf16.msra.mxu0 %v777
    %1770 = vmatpush.bf16.msra.mxu0 %v773
    %1771 = vmatpush.bf16.msra.mxu0 %v769
    %1772 = vmatpush.bf16.msra.mxu0 %v765
    %1773 = vmatmul.bf16.gmra.mxu0 %v1722
    %v1774 = vpop.f32.mrf.mxu0
    %v1775 = vadd.f32 0.0, %v1774
    %v1776 = vpop.f32.mrf.mxu0
    %1777 = vdwg.mxu0
    %1778 = vmatpush.bf16.msra.mxu0 %v794
    %1779 = vmatpush.bf16.msra.mxu0 %v790
    %1780 = vmatpush.bf16.msra.mxu0 %v786
    %1781 = vmatpush.bf16.msra.mxu0 %v782
    %1782 = vmatpush.bf16.msra.mxu0 %v778
    %1783 = vmatpush.bf16.msra.mxu0 %v774
    %1784 = vmatpush.bf16.msra.mxu0 %v770
    %1785 = vmatpush.bf16.msra.mxu0 %v766
    %1786 = vmatmul.bf16.gmra.mxu0 %v1722
    %v1787 = vpop.f32.mrf.mxu0
    %v1788 = vadd.f32 0.0, %v1787
    %v1789 = vpop.f32.mrf.mxu0
    %1790 = vdwg.mxu0
    %1791 = vmatpush.bf16.msra.mxu0 %v795
    %1792 = vmatpush.bf16.msra.mxu0 %v791
    %1793 = vmatpush.bf16.msra.mxu0 %v787
    %1794 = vmatpush.bf16.msra.mxu0 %v783
    %1795 = vmatpush.bf16.msra.mxu0 %v779
    %1796 = vmatpush.bf16.msra.mxu0 %v775
    %1797 = vmatpush.bf16.msra.mxu0 %v771
    %1798 = vmatpush.bf16.msra.mxu0 %v767
    %1799 = vmatmul.bf16.gmra.mxu0 %v1722
    %v1800 = vpop.f32.mrf.mxu0
    %v1801 = vadd.f32 0.0, %v1800
    %v1802 = vpop.f32.mrf.mxu0
    %1803 = vdwg.mxu0
    %v1804 = vadd.f32 %v1748, %v1762
    %v1805 = vadd.f32 %v1749, %v1775
    %v1806 = vadd.f32 %v1750, %v1788
    %v1807 = vadd.f32 %v1751, %v1801
    %v1808 = vxor.u32 %v1804, 2147483648
    %v1809 = vxor.u32 %v1805, 2147483648
    %v1810 = vxor.u32 %v1806, 2147483648
    %v1811 = vmul.f32 %v1808, 1.442695
    %v1812 = vpow.pop %v1811
    %v1813 = vmul.f32 %v1809, 1.442695
    %v1814 = vpow.pop %v1813
    %v1815 = vmul.f32 %v1810, 1.442695
    %v1816 = vpow.pop %v1815
    %v1817 = vadd.f32 %v1812, 1.0
    %v1818 = vadd.f32 %v1814, 1.0
    %v1819 = vadd.f32 %v1816, 1.0
    %v1820 = vrcp.pop %v1817
    %v1821 = vmul.f32 %v1817, %v1820
    %v1822 = vsub.f32 1.0, %v1821
    %v1823 = vmul.f32 %v1820, %v1822
    %v1824 = vadd.f32 %v1820, %v1823
    %vm1825 = vweird.f32 %v1817
    %vm1826 = vweird.f32 %v1820
    %vm1827 = vmor %vm1825, %vm1826
    %v1828 = vsel %vm1827, %v1820, %v1824
    %v1829 = vand.u32 2147483647, %v1817
    %vm1830 = vcmp.eq.f32.partialorder %v1829, 8.507059e+37
    %v1831 = vand.u32 %v1817, 2147483648
    %v1832 = vor.u32 1.1754944e-38, %v1831
    %v1833 = vsel %vm1830, %v1832, %v1828
    %v1834 = vmul.f32 1.0, %v1833
    %v1835 = vrcp.pop %v1818
    %v1836 = vmul.f32 %v1818, %v1835
    %v1837 = vsub.f32 1.0, %v1836
    %v1838 = vmul.f32 %v1835, %v1837
    %v1839 = vadd.f32 %v1835, %v1838
    %vm1840 = vweird.f32 %v1818
    %vm1841 = vweird.f32 %v1835
    %vm1842 = vmor %vm1840, %vm1841
    %v1843 = vsel %vm1842, %v1835, %v1839
    %v1844 = vand.u32 2147483647, %v1818
    %vm1845 = vcmp.eq.f32.partialorder %v1844, 8.507059e+37
    %v1846 = vand.u32 %v1818, 2147483648
    %v1847 = vor.u32 1.1754944e-38, %v1846
    %v1848 = vsel %vm1845, %v1847, %v1843
    %v1849 = vmul.f32 1.0, %v1848
    %v1850 = vrcp.pop %v1819
    %v1851 = vmul.f32 %v1819, %v1850
    %v1852 = vsub.f32 1.0, %v1851
    %v1853 = vmul.f32 %v1850, %v1852
    %v1854 = vadd.f32 %v1850, %v1853
    %vm1855 = vweird.f32 %v1819
    %vm1856 = vweird.f32 %v1850
    %vm1857 = vmor %vm1855, %vm1856
    %v1858 = vsel %vm1857, %v1850, %v1854
    %v1859 = vand.u32 2147483647, %v1819
    %vm1860 = vcmp.eq.f32.partialorder %v1859, 8.507059e+37
    %v1861 = vand.u32 %v1819, 2147483648
    %v1862 = vor.u32 1.1754944e-38, %v1861
    %v1863 = vsel %vm1860, %v1862, %v1858
    %v1864 = vmul.f32 1.0, %v1863
    %v1865 = vtanh.pop %v1807
    %v1866 = vmul.f32 %v1849, %v1746
    %v1867 = vmul.f32 %v1834, %v1865
    %v1868 = vadd.f32 %v1866, %v1867
    %1869 = vst [vmem:[#allocation4] sm:$0xff] %v1868
    %v1870 = vtanh.pop %v1868
    %v1871 = vmul.f32 %v1864, %v1870
    %v1872 = vpack.c.bf16 %v1871, %v1871
    %1873 = vst [vmem:[#allocation3] sm:$0xf] %v1872
    %s1874 = scalar_lea.vmem %s1, 56
    %v1875 = vld [vmem:[%s1874] sm:$0xff]
    %v1876 = vld [vmem:[#allocation3] sm:$0xf]
    %v1877 = vld [vmem:[#allocation4] sm:$0xff]
    %v1878 = vpack.c.bf16 %v1877, %v1877
    %1879 = vmatpush.bf16.msra.mxu0 %v633
    %1880 = vmatpush.bf16.msra.mxu0 %v632
    %1881 = vmatpush.bf16.msra.mxu0 %v631
    %1882 = vmatpush.bf16.msra.mxu0 %v630
    %1883 = vmatpush.bf16.msra.mxu0 %v629
    %1884 = vmatpush.bf16.msra.mxu0 %v628
    %1885 = vmatpush.bf16.msra.mxu0 %v627
    %1886 = vmatpush.bf16.msra.mxu0 %v626
    %1887 = vmatmul.bf16.gmra.mxu0 %v1878
    %v1888 = vpop.f32.mrf.mxu0
    %v1889 = vadd.f32 %v588, %v1888
    %v1890 = vpop.f32.mrf.mxu0
    %1891 = vdwg.mxu0
    %v1892 = vtanh.pop %v1889
    %v1893 = vsub.f32 %v1877, %v1892
    %1895 = vset.pattern.permute.xlu0 0
    %1896 = vperm.xlu0 %1895, %v1875
    %v1897 = vpop.permute.xlu0 %1896
    %v1899 = vmul.f32 %v1897, %v1892
    %v1900 = vadd.f32 %v1893, %v1899
    %s1901 = scalar_lea.vmem [#allocation2], 224
    %v1902 = vld [vmem:[%s1901] sm:$0xff]
    %v1903 = vld [vmem:[%s1901 + $0x8] sm:$0xff]
    %v1904 = vld [vmem:[%s1901 + $0x10] sm:$0xff]
    %v1905 = vld [vmem:[%s1901 + $0x18] sm:$0xff]
    %1906 = vmatpush.bf16.msra.mxu0 %v792
    %1907 = vmatpush.bf16.msra.mxu0 %v788
    %1908 = vmatpush.bf16.msra.mxu0 %v784
    %1909 = vmatpush.bf16.msra.mxu0 %v780
    %1910 = vmatpush.bf16.msra.mxu0 %v776
    %1911 = vmatpush.bf16.msra.mxu0 %v772
    %1912 = vmatpush.bf16.msra.mxu0 %v768
    %1913 = vmatpush.bf16.msra.mxu0 %v764
    %1914 = vmatmul.bf16.gmra.mxu0 %v1876
    %v1915 = vpop.f32.mrf.mxu0
    %v1916 = vadd.f32 0.0, %v1915
    %v1917 = vpop.f32.mrf.mxu0
    %1918 = vdwg.mxu0
    %1919 = vmatpush.bf16.msra.mxu0 %v793
    %1920 = vmatpush.bf16.msra.mxu0 %v789
    %1921 = vmatpush.bf16.msra.mxu0 %v785
    %1922 = vmatpush.bf16.msra.mxu0 %v781
    %1923 = vmatpush.bf16.msra.mxu0 %v777
    %1924 = vmatpush.bf16.msra.mxu0 %v773
    %1925 = vmatpush.bf16.msra.mxu0 %v769
    %1926 = vmatpush.bf16.msra.mxu0 %v765
    %1927 = vmatmul.bf16.gmra.mxu0 %v1876
    %v1928 = vpop.f32.mrf.mxu0
    %v1929 = vadd.f32 0.0, %v1928
    %v1930 = vpop.f32.mrf.mxu0
    %1931 = vdwg.mxu0
    %1932 = vmatpush.bf16.msra.mxu0 %v794
    %1933 = vmatpush.bf16.msra.mxu0 %v790
    %1934 = vmatpush.bf16.msra.mxu0 %v786
    %1935 = vmatpush.bf16.msra.mxu0 %v782
    %1936 = vmatpush.bf16.msra.mxu0 %v778
    %1937 = vmatpush.bf16.msra.mxu0 %v774
    %1938 = vmatpush.bf16.msra.mxu0 %v770
    %1939 = vmatpush.bf16.msra.mxu0 %v766
    %1940 = vmatmul.bf16.gmra.mxu0 %v1876
    %v1941 = vpop.f32.mrf.mxu0
    %v1942 = vadd.f32 0.0, %v1941
    %v1943 = vpop.f32.mrf.mxu0
    %1944 = vdwg.mxu0
    %1945 = vmatpush.bf16.msra.mxu0 %v795
    %1946 = vmatpush.bf16.msra.mxu0 %v791
    %1947 = vmatpush.bf16.msra.mxu0 %v787
    %1948 = vmatpush.bf16.msra.mxu0 %v783
    %1949 = vmatpush.bf16.msra.mxu0 %v779
    %1950 = vmatpush.bf16.msra.mxu0 %v775
    %1951 = vmatpush.bf16.msra.mxu0 %v771
    %1952 = vmatpush.bf16.msra.mxu0 %v767
    %1953 = vmatmul.bf16.gmra.mxu0 %v1876
    %v1954 = vpop.f32.mrf.mxu0
    %v1955 = vadd.f32 0.0, %v1954
    %v1956 = vpop.f32.mrf.mxu0
    %1957 = vdwg.mxu0
    %v1958 = vadd.f32 %v1902, %v1916
    %v1959 = vadd.f32 %v1903, %v1929
    %v1960 = vadd.f32 %v1904, %v1942
    %v1961 = vadd.f32 %v1905, %v1955
    %v1962 = vxor.u32 %v1958, 2147483648
    %v1963 = vxor.u32 %v1959, 2147483648
    %v1964 = vxor.u32 %v1960, 2147483648
    %v1965 = vmul.f32 %v1962, 1.442695
    %v1966 = vpow.pop %v1965
    %v1967 = vmul.f32 %v1963, 1.442695
    %v1968 = vpow.pop %v1967
    %v1969 = vmul.f32 %v1964, 1.442695
    %v1970 = vpow.pop %v1969
    %v1971 = vadd.f32 %v1966, 1.0
    %v1972 = vadd.f32 %v1968, 1.0
    %v1973 = vadd.f32 %v1970, 1.0
    %v1974 = vrcp.pop %v1971
    %v1975 = vmul.f32 %v1971, %v1974
    %v1976 = vsub.f32 1.0, %v1975
    %v1977 = vmul.f32 %v1974, %v1976
    %v1978 = vadd.f32 %v1974, %v1977
    %vm1979 = vweird.f32 %v1971
    %vm1980 = vweird.f32 %v1974
    %vm1981 = vmor %vm1979, %vm1980
    %v1982 = vsel %vm1981, %v1974, %v1978
    %v1983 = vand.u32 2147483647, %v1971
    %vm1984 = vcmp.eq.f32.partialorder %v1983, 8.507059e+37
    %v1985 = vand.u32 %v1971, 2147483648
    %v1986 = vor.u32 1.1754944e-38, %v1985
    %v1987 = vsel %vm1984, %v1986, %v1982
    %v1988 = vmul.f32 1.0, %v1987
    %v1989 = vrcp.pop %v1972
    %v1990 = vmul.f32 %v1972, %v1989
    %v1991 = vsub.f32 1.0, %v1990
    %v1992 = vmul.f32 %v1989, %v1991
    %v1993 = vadd.f32 %v1989, %v1992
    %vm1994 = vweird.f32 %v1972
    %vm1995 = vweird.f32 %v1989
    %vm1996 = vmor %vm1994, %vm1995
    %v1997 = vsel %vm1996, %v1989, %v1993
    %v1998 = vand.u32 2147483647, %v1972
    %vm1999 = vcmp.eq.f32.partialorder %v1998, 8.507059e+37
    %v2000 = vand.u32 %v1972, 2147483648
    %v2001 = vor.u32 1.1754944e-38, %v2000
    %v2002 = vsel %vm1999, %v2001, %v1997
    %v2003 = vmul.f32 1.0, %v2002
    %v2004 = vrcp.pop %v1973
    %v2005 = vmul.f32 %v1973, %v2004
    %v2006 = vsub.f32 1.0, %v2005
    %v2007 = vmul.f32 %v2004, %v2006
    %v2008 = vadd.f32 %v2004, %v2007
    %vm2009 = vweird.f32 %v1973
    %vm2010 = vweird.f32 %v2004
    %vm2011 = vmor %vm2009, %vm2010
    %v2012 = vsel %vm2011, %v2004, %v2008
    %v2013 = vand.u32 2147483647, %v1973
    %vm2014 = vcmp.eq.f32.partialorder %v2013, 8.507059e+37
    %v2015 = vand.u32 %v1973, 2147483648
    %v2016 = vor.u32 1.1754944e-38, %v2015
    %v2017 = vsel %vm2014, %v2016, %v2012
    %v2018 = vmul.f32 1.0, %v2017
    %v2019 = vtanh.pop %v1961
    %v2020 = vmul.f32 %v2003, %v1900
    %v2021 = vmul.f32 %v1988, %v2019
    %v2022 = vadd.f32 %v2020, %v2021
    %2023 = vst [vmem:[#allocation4] sm:$0xff] %v2022
    %v2024 = vtanh.pop %v2022
    %v2025 = vmul.f32 %v2018, %v2024
    %v2026 = vpack.c.bf16 %v2025, %v2025
    %2027 = vst [vmem:[#allocation3] sm:$0xf] %v2026
    // Predicated region
    $region70: #{tpu_custom_call.1} parent=1 // pred_check
      %p2028 = pneg %p118
    $region71: #{tpu_custom_call.1} parent=1 // pred_check_branch
      %2030 = sbr.rel (%p2028) target = $region73
    $region72: #{tpu_custom_call.1} parent=1 // pred_region
      %v2031 = vld [vmem:[#allocation3] sm:$0xf]
      %v2032 = vld [vmem:[#allocation11] sm:$0xf]
      %v2033 = vld [vmem:[#allocation11 + $0x4] sm:$0xf]
      %v2034 = vld [vmem:[#allocation11 + $0x8] sm:$0xf]
      %v2035 = vld [vmem:[#allocation11 + $0xc] sm:$0xf]
      %v2036 = vld [vmem:[#allocation11 + $0x10] sm:$0xf]
      %v2037 = vld [vmem:[#allocation11 + $0x14] sm:$0xf]
      %v2038 = vld [vmem:[#allocation11 + $0x18] sm:$0xf]
      %v2039 = vld [vmem:[#allocation11 + $0x1c] sm:$0xf]
      %v2040 = vld [vmem:[#allocation11 + $0x20] sm:$0xf]
      %v2041 = vld [vmem:[#allocation11 + $0x24] sm:$0xf]
      %v2042 = vld [vmem:[#allocation11 + $0x28] sm:$0xf]
      %v2043 = vld [vmem:[#allocation11 + $0x2c] sm:$0xf]
      %v2044 = vld [vmem:[#allocation11 + $0x30] sm:$0xf]
      %v2045 = vld [vmem:[#allocation11 + $0x34] sm:$0xf]
      %v2046 = vld [vmem:[#allocation11 + $0x38] sm:$0xf]
      %v2047 = vld [vmem:[#allocation11 + $0x3c] sm:$0xf]
      %v2048 = vld [vmem:[%s8] sm:$0x1]
      %v2050 = vperm.slane %v2048, 0
      %v2068 = vunpack.c.l.b16 %v2032
      %v2069 = vunpack.c.l.b16 %v2033
      %v2070 = vunpack.c.l.b16 %v2034
      %v2071 = vunpack.c.l.b16 %v2035
      %v2072 = vunpack.c.l.b16 %v2036
      %v2073 = vunpack.c.l.b16 %v2037
      %v2074 = vunpack.c.l.b16 %v2038
      %v2075 = vunpack.c.l.b16 %v2039
      %v2076 = vunpack.c.l.b16 %v2040
      %v2077 = vunpack.c.l.b16 %v2041
      %v2078 = vunpack.c.l.b16 %v2042
      %v2079 = vunpack.c.l.b16 %v2043
      %v2080 = vunpack.c.l.b16 %v2044
      %v2081 = vunpack.c.l.b16 %v2045
      %v2082 = vunpack.c.l.b16 %v2046
      %v2083 = vunpack.c.l.b16 %v2047
      %v2084 = vpack.c.b16 %v2069, %v2068
      %v2085 = vpack.c.b16 %v2071, %v2070
      %v2086 = vpack.c.b16 %v2073, %v2072
      %v2087 = vpack.c.b16 %v2075, %v2074
      %v2088 = vpack.c.b16 %v2077, %v2076
      %v2089 = vpack.c.b16 %v2079, %v2078
      %v2090 = vpack.c.b16 %v2081, %v2080
      %v2091 = vpack.c.b16 %v2083, %v2082
      %2100 = vmatpush.bf16.msra.mxu0 %v2091
      %2101 = vmatpush.bf16.msra.mxu0 %v2090
      %2102 = vmatpush.bf16.msra.mxu0 %v2089
      %2103 = vmatpush.bf16.msra.mxu0 %v2088
      %2104 = vmatpush.bf16.msra.mxu0 %v2087
      %2105 = vmatpush.bf16.msra.mxu0 %v2086
      %2106 = vmatpush.bf16.msra.mxu0 %v2085
      %2107 = vmatpush.bf16.msra.mxu0 %v2084
      %2108 = vmatmul.bf16.gmra.mxu0 %v2031
      %v2109 = vpop.f32.mrf.mxu0
      %v2110 = vadd.f32 %v2050, %v2109
      %v2111 = vpop.f32.mrf.mxu0
      %2112 = vdwg.mxu0
      %v2113 = vmax.f32 %v2110, 0.0
      %v2114 = vpack.c.bf16 %v2113, %v2113
      %v2115 = vld [vmem:[#allocation13] sm:$0xf]
      %v2116 = vld [vmem:[#allocation13 + $0x4] sm:$0xf]
      %v2117 = vld [vmem:[#allocation13 + $0x8] sm:$0xf]
      %v2118 = vld [vmem:[#allocation13 + $0xc] sm:$0xf]
      %v2119 = vld [vmem:[#allocation13 + $0x10] sm:$0xf]
      %v2120 = vld [vmem:[#allocation13 + $0x14] sm:$0xf]
      %v2121 = vld [vmem:[#allocation13 + $0x18] sm:$0xf]
      %v2122 = vld [vmem:[#allocation13 + $0x1c] sm:$0xf]
      %v2123 = vld [vmem:[#allocation13 + $0x20] sm:$0xf]
      %v2124 = vld [vmem:[#allocation13 + $0x24] sm:$0xf]
      %v2125 = vld [vmem:[#allocation13 + $0x28] sm:$0xf]
      %v2126 = vld [vmem:[#allocation13 + $0x2c] sm:$0xf]
      %v2127 = vld [vmem:[#allocation13 + $0x30] sm:$0xf]
      %v2128 = vld [vmem:[#allocation13 + $0x34] sm:$0xf]
      %v2129 = vld [vmem:[#allocation13 + $0x38] sm:$0xf]
      %v2130 = vld [vmem:[#allocation13 + $0x3c] sm:$0xf]
      %v2131 = vld [vmem:[%s10] sm:$0x1]
      %v2133 = vperm.slane %v2131, 0
      %v2151 = vunpack.c.l.b16 %v2115
      %v2152 = vunpack.c.l.b16 %v2116
      %v2153 = vunpack.c.l.b16 %v2117
      %v2154 = vunpack.c.l.b16 %v2118
      %v2155 = vunpack.c.l.b16 %v2119
      %v2156 = vunpack.c.l.b16 %v2120
      %v2157 = vunpack.c.l.b16 %v2121
      %v2158 = vunpack.c.l.b16 %v2122
      %v2159 = vunpack.c.l.b16 %v2123
      %v2160 = vunpack.c.l.b16 %v2124
      %v2161 = vunpack.c.l.b16 %v2125
      %v2162 = vunpack.c.l.b16 %v2126
      %v2163 = vunpack.c.l.b16 %v2127
      %v2164 = vunpack.c.l.b16 %v2128
      %v2165 = vunpack.c.l.b16 %v2129
      %v2166 = vunpack.c.l.b16 %v2130
      %v2167 = vpack.c.b16 %v2152, %v2151
      %v2168 = vpack.c.b16 %v2154, %v2153
      %v2169 = vpack.c.b16 %v2156, %v2155
      %v2170 = vpack.c.b16 %v2158, %v2157
      %v2171 = vpack.c.b16 %v2160, %v2159
      %v2172 = vpack.c.b16 %v2162, %v2161
      %v2173 = vpack.c.b16 %v2164, %v2163
      %v2174 = vpack.c.b16 %v2166, %v2165
      %2183 = vmatpush.bf16.msra.mxu0 %v2174
      %2184 = vmatpush.bf16.msra.mxu0 %v2173
      %2185 = vmatpush.bf16.msra.mxu0 %v2172
      %2186 = vmatpush.bf16.msra.mxu0 %v2171
      %2187 = vmatpush.bf16.msra.mxu0 %v2170
      %2188 = vmatpush.bf16.msra.mxu0 %v2169
      %2189 = vmatpush.bf16.msra.mxu0 %v2168
      %2190 = vmatpush.bf16.msra.mxu0 %v2167
      %2191 = vmatmul.bf16.gmra.mxu0 %v2114
      %v2192 = vpop.f32.mrf.mxu0
      %v2193 = vadd.f32 %v2133, %v2192
      %v2194 = vpop.f32.mrf.mxu0
      %2195 = vdwg.mxu0
      %2196 = vst [vmem:[#allocation14] sm:$0xff] %v2193
    $region73: #{tpu_custom_call.1} parent=1 // pred_fallthru
      _
    // Predicated region
    $region74: #{tpu_custom_call.1} parent=1 // pred_check
      _
    $region75: #{tpu_custom_call.1} parent=1 // pred_check_branch
      %2198 = sbr.rel (0) target = $region77
    $region76: #{tpu_custom_call.1} parent=1 // pred_region
      %2200 = vsyncadd [#allocation7], 0
      %s2202 = sshll.u32 [#allocation14], 4
      %s2203 = int_to_ptr.vmem [resolvable:$true] %s2202
      %s2204 = sshll.u32 %s11, 4
      %s2205 = int_to_ptr.hbm [resolvable:$true] %s2204
      %2207 = dma.vmem_to_hbm [thread:$0]  %s2203, 128, %s2205, [#allocation7]
    $region77: #{tpu_custom_call.1} parent=1 // pred_fallthru
      _
    // Predicated region
    $region78: #{tpu_custom_call.1} parent=1 // pred_check
      _
    $region79: #{tpu_custom_call.1} parent=1 // pred_check_branch
      %2209 = sbr.rel (0) target = $region81
    $region80: #{tpu_custom_call.1} parent=1 // pred_region
      %2211 = dma.done [#allocation7], 128
    $region81: #{tpu_custom_call.1} parent=1 // pred_fallthru
      _
    %2212 = vsyncpa [#allocation6], 1
    %2213 = vsyncpa [#allocation9], 1
    %2214 = vsyncpa [#allocation12], 1
    %2215 = vsyncpa [#allocation7], 1

</llo_original>
